<compile_context>
chip_gen: v5e
topology: v5e:2x2
jax: 0.10.0
libtpu: 0.0.40
codegen_flags: <defaults>
</compile_context>

<pallas_src>
import math
import functools

import jax
import jax.numpy as jnp
from jax.experimental import pallas as pl
from jax.experimental.pallas import tpu as pltpu


def _round_up(v, m):
    return (v + m - 1) // m * m


# --------------------------------------------------------------------------------------
# Fused BasicBlock kernel
# --------------------------------------------------------------------------------------

def _basic_block_kernel(*refs, stride, bt, Ho, Wo, cin, planes, hb, has_ds):
    """conv1(3x3,s)+bn1+relu -> conv2(3x3,1)+bn2 (+ shortcut) + relu, fully on-chip.

    Input tile layout: (bt, s*s, Hp2, Wp2, cin) = stride-parity-split, zero-padded
    NHWC input, so every conv tap is an un-strided, contiguous static slice.
    The conv1 activation lives in a VMEM scratch (never touches HBM).
    """
    if has_ds:
        (x_ref, w1_ref, s1_ref, b1_ref, w2_ref, s2_ref, b2_ref,
         wd_ref, sd_ref, bd_ref, o_ref, hpad_ref) = refs
    else:
        (x_ref, w1_ref, s1_ref, b1_ref, w2_ref, s2_ref, b2_ref,
         o_ref, hpad_ref) = refs
        wd_ref = sd_ref = bd_ref = None

    s = stride
    Wop = hpad_ref.shape[2]          # sublane-padded width of the conv1 scratch
    nb = Ho // hb                    # number of output row-bands

    s1 = s1_ref[...]
    b1 = b1_ref[...]
    s2 = s2_ref[...]
    b2 = b2_ref[...]

    # Zero only the top/bottom halo rows of the conv1 scratch each step; the side
    # halos are rewritten with every band's full-width store below.  Deliberately
    # NOT keyed on pl.program_id: with a "parallel" grid on a 2-core v7x each core
    # has its own scratch instance and must see zeroed halos.
    zrow = jnp.zeros((bt, 1, Wop, planes), jnp.bfloat16)
    hpad_ref[:, 0:1, :, :] = zrow
    hpad_ref[:, Ho + 1:Ho + 2, :, :] = zrow

    # ---- conv1 (3x3, stride s, pad 1) + bn1 + relu1  ->  VMEM scratch -------------
    for band in range(nb):
        r0 = band * hb
        m = bt * hb * Wo
        acc = None
        for i in range(3):
            # Merge the 3 W-taps into one K = 3*cin contraction.
            taps = []
            for j in range(3):
                p = (i % s) * s + (j % s)              # stride-parity plane of tap (i,j)
                taps.append(x_ref[:, p,
                                  r0 + i // s:r0 + i // s + hb,
                                  j // s:j // s + Wo, :])
            lhs = jnp.concatenate(taps, axis=-1).reshape(m, 3 * cin)
            d = jnp.dot(lhs, w1_ref[i], preferred_element_type=jnp.float32)
            acc = d if acc is None else acc + d        # uninterrupted dot chain
        h = jnp.maximum(acc * s1 + b1, 0.0).astype(jnp.bfloat16)
        h = h.reshape(bt, hb, Wo, planes)
        # Full-width, sublane-aligned store; rewrites the zero side halos for free.
        zl = jnp.zeros((bt, hb, 1, planes), jnp.bfloat16)
        zr = jnp.zeros((bt, hb, Wop - Wo - 1, planes), jnp.bfloat16)
        hpad_ref[:, 1 + r0:1 + r0 + hb, :, :] = jnp.concatenate([zl, h, zr], axis=2)

    # ---- conv2 (3x3, stride 1, pad 1) + bn2 + shortcut + relu2 --------------------
    pr = 1 % s            # parity of the padded "center" coordinate (padding = 1)
    off = 1 // s          # its offset inside that parity plane
    pc = pr * s + pr
    for band in range(nb):
        r0 = band * hb
        m = bt * hb * Wo
        acc = None
        for i in range(3):
            taps = [hpad_ref[:, r0 + i:r0 + i + hb, j:j + Wo, :] for j in range(3)]
            lhs = jnp.concatenate(taps, axis=-1).reshape(m, 3 * planes)
            d = jnp.dot(lhs, w2_ref[i], preferred_element_type=jnp.float32)
            acc = d if acc is None else acc + d
        out = acc * s2 + b2

        # Shortcut: strided center rows of the already-resident input tile.
        xr = x_ref[:, pc, off + r0:off + r0 + hb, off:off + Wo, :]
        if has_ds:
            res = jnp.dot(xr.reshape(m, cin), wd_ref[...],
                          preferred_element_type=jnp.float32)
            res = res * sd_ref[...] + bd_ref[...]
        else:
            res = xr.reshape(m, planes).astype(jnp.float32)

        y = jnp.maximum(out + res, 0.0).astype(o_ref.dtype)
        o_ref[:, r0:r0 + hb, :, :] = y.reshape(bt, hb, Wo, planes)


# --------------------------------------------------------------------------------------
# Wrapper (NHWC/bf16 end-to-end; only pad + (stride-2 only) parity split in XLA)
# --------------------------------------------------------------------------------------

def _bn_fold(bn, planes, eps=1e-5):
    scale = bn["gamma"] / jnp.sqrt(bn["var"] + eps)
    bias = bn["beta"] - bn["mean"] * scale
    return (scale.reshape(1, planes).astype(jnp.float32),
            bias.reshape(1, planes).astype(jnp.float32))


def _pick_batch_tile(B, block_bytes_per_image, pref_steps=4, min_steps=2,
                     vmem_budget=20 << 20):
    """Largest bt dividing B with >= pref_steps (else min_steps) grid steps and the
    per-step (double-buffered) blocks inside a conservative VMEM budget (v7x-safe)."""
    divisors = [d for d in range(1, B + 1) if B % d == 0]
    for steps in (pref_steps, min_steps, 1):
        cands = [d for d in divisors
                 if B // d >= min(steps, B) and d * block_bytes_per_image <= vmem_budget]
        if cands:
            return max(cands)
    return 1


def _pick_band(Ho, Wo, bt, planes, acc_budget=64 << 10):
    """Largest divisor hb of Ho whose f32 band accumulator stays ~vreg-resident."""
    max_rows = max(1, acc_budget // (4 * planes))
    for hb in range(Ho, 0, -1):
        if Ho % hb == 0 and bt * hb * Wo <= max_rows:
            return hb
    return 1


def basic_block_forward(x_nhwc, params):
    """Fused BasicBlock forward.

    x_nhwc: (B, H, W, cin) f32/bf16, NHWC.  Returns (B, Ho, Wo, planes) bf16, NHWC.
    The network is kept NHWC/bf16 so consecutive blocks chain with no layout passes.
    """
    stride = int(params["stride"])
    w1 = params["conv1_w"]                         # (planes, cin, 3, 3)
    w2 = params["conv2_w"]                         # (planes, planes, 3, 3)
    has_ds = "ds_w" in params
    planes, cin = int(w1.shape[0]), int(w1.shape[1])

    B, H, W, C = x_nhwc.shape
    assert C == cin
    assert H % stride == 0 and W % stride == 0, "stride must divide spatial dims"
    assert has_ds or (stride == 1 and cin == planes), "identity shortcut shape mismatch"
    Ho = (H + 2 - 3) // stride + 1
    Wo = (W + 2 - 3) // stride + 1

    # bf16, zero-pad by 1 (right-pad extra so the parity-split width is a multiple
    # of 8 sublanes), then split into stride-parity planes so every 3x3 tap in the
    # kernel is a contiguous un-strided static slice.
    x = x_nhwc.astype(jnp.bfloat16)
    Wp = _round_up(W + 2, 8 * stride)
    xp = jnp.pad(x, ((0, 0), (1, 1), (1, Wp - W - 1), (0, 0)))
    Hp = H + 2
    assert Hp % stride == 0
    if stride == 1:
        Hp2, Wp2 = Hp, Wp
        x_ps = xp.reshape(B, 1, Hp, Wp, cin)
    else:
        Hp2, Wp2 = Hp // stride, Wp // stride
        x_ps = (xp.reshape(B, Hp2, stride, Wp2, stride, cin)
                  .transpose(0, 2, 4, 1, 3, 5)
                  .reshape(B, stride * stride, Hp2, Wp2, cin))
    ss = int(x_ps.shape[1])

    # Weights with the 3 W-taps merged on the contraction axis; folded BN in f32.
    w1m = jnp.transpose(w1, (2, 3, 1, 0)).reshape(3, 3 * cin, planes).astype(jnp.bfloat16)
    w2m = jnp.transpose(w2, (2, 3, 1, 0)).reshape(3, 3 * planes, planes).astype(jnp.bfloat16)
    s1, b1 = _bn_fold(params["bn1"], planes)
    s2, b2 = _bn_fold(params["bn2"], planes)

    Wop = _round_up(Wo + 2, 8)
    per_image_bytes = (ss * Hp2 * Wp2 * cin * 2            # input block
                       + Ho * Wo * planes * 2              # output block
                       + (Ho + 2) * Wop * planes * 2)      # conv1 scratch
    bt = _pick_batch_tile(B, 2 * per_image_bytes)          # x2: double buffering
    hb = _pick_band(Ho, Wo, bt, planes)

    args = [x_ps, w1m, s1, b1, w2m, s2, b2]
    in_specs = [
        pl.BlockSpec((bt, ss, Hp2, Wp2, cin), lambda g: (g, 0, 0, 0, 0)),
        pl.BlockSpec((3, 3 * cin, planes), lambda g: (0, 0, 0)),
        pl.BlockSpec((1, planes), lambda g: (0, 0)),
        pl.BlockSpec((1, planes), lambda g: (0, 0)),
        pl.BlockSpec((3, 3 * planes, planes), lambda g: (0, 0, 0)),
        pl.BlockSpec((1, planes), lambda g: (0, 0)),
        pl.BlockSpec((1, planes), lambda g: (0, 0)),
    ]
    ds_flops = 0
    if has_ds:
        wdk = jnp.transpose(params["ds_w"][:, :, 0, 0], (1, 0)).astype(jnp.bfloat16)
        sd, bd = _bn_fold(params["ds_bn"], planes)
        args += [wdk, sd, bd]
        in_specs += [pl.BlockSpec((cin, planes), lambda g: (0, 0)),
                     pl.BlockSpec((1, planes), lambda g: (0, 0)),
                     pl.BlockSpec((1, planes), lambda g: (0, 0))]
        ds_flops = cin

    kernel = functools.partial(
        _basic_block_kernel, stride=stride, bt=bt, Ho=Ho, Wo=Wo,
        cin=cin, planes=planes, hb=hb, has_ds=has_ds)

    flops = int(2 * B * Ho * Wo * planes * (9 * cin + 9 * planes + ds_flops))
    bytes_accessed = int(x_ps.size * 2 + w1m.size * 2 + w2m.size * 2
                         + (cin * planes * 2 if has_ds else 0)
                         + B * Ho * Wo * planes * 2)

    # Explicit VMEM limit (scoped default is only 16 MiB on v5e); capped at 48 MiB
    # so the same request also fits a 64-MiB v7x part.
    vmem_limit = int(min(48 << 20, max(16 << 20, 4 * bt * per_image_bytes)))

    return pl.pallas_call(
        kernel,
        out_shape=jax.ShapeDtypeStruct((B, Ho, Wo, planes), jnp.bfloat16),
        grid=(B // bt,),
        in_specs=in_specs,
        out_specs=pl.BlockSpec((bt, Ho, Wo, planes), lambda g: (g, 0, 0, 0)),
        scratch_shapes=[pltpu.VMEM((bt, Ho + 2, Wop, planes), jnp.bfloat16)],
        compiler_params=pltpu.CompilerParams(
            dimension_semantics=("parallel",),
            vmem_limit_bytes=vmem_limit),
        cost_estimate=pl.CostEstimate(flops=flops, transcendentals=0,
                                      bytes_accessed=bytes_accessed),
    )(*args)


# --------------------------------------------------------------------------------------
# Plain-XLA reference with the same precision policy (bf16 operands, f32 accumulation)
# --------------------------------------------------------------------------------------

def basic_block_ref(x_nhwc, params):
    stride = int(params["stride"])
    x = x_nhwc.astype(jnp.bfloat16).astype(jnp.float32)

    def conv(inp, w, s, pad):
        wb = jnp.transpose(w, (2, 3, 1, 0)).astype(jnp.bfloat16).astype(jnp.float32)
        return jax.lax.conv_general_dilated(
            inp, wb, (s, s), [(pad, pad), (pad, pad)],
            dimension_numbers=("NHWC", "HWIO", "NHWC"))

    def bn(y, b, eps=1e-5):
        sc = b["gamma"] / jnp.sqrt(b["var"] + eps)
        return y * sc + (b["beta"] - b["mean"] * sc)

    h = jnp.maximum(bn(conv(x, params["conv1_w"], stride, 1), params["bn1"]), 0.0)
    h = h.astype(jnp.bfloat16).astype(jnp.float32)   # matches kernel's VMEM bf16 handoff
    out = bn(conv(h, params["conv2_w"], 1, 1), params["bn2"])
    if "ds_w" in params:
        res = bn(conv(x, params["ds_w"], stride, 0), params["ds_bn"])
    else:
        res = x
    return jnp.maximum(out + res, 0.0)               # NHWC f32


# --------------------------------------------------------------------------------------
# Deterministic parameter construction (mirrors BasicBlock / _make_layer init)
# --------------------------------------------------------------------------------------

def make_block_params(key, cin, planes, stride):
    ks = jax.random.split(key, 6)

    def conv_w(k, co, ci, kh):
        n = kh * kh * co
        return jax.random.normal(k, (co, ci, kh, kh), jnp.float32) * math.sqrt(2.0 / n)

    def bn_p(k, c):
        k1, k2, k3, k4 = jax.random.split(k, 4)
        return {"gamma": 1.0 + 0.1 * jax.random.normal(k1, (c,), jnp.float32),
                "beta": 0.1 * jax.random.normal(k2, (c,), jnp.float32),
                "mean": 0.1 * jax.random.normal(k3, (c,), jnp.float32),
                "var": 1.0 + 0.1 * jax.random.uniform(k4, (c,), jnp.float32)}

    p = {"stride": stride,
         "conv1_w": conv_w(ks[0], planes, cin, 3), "bn1": bn_p(ks[1], planes),
         "conv2_w": conv_w(ks[2], planes, planes, 3), "bn2": bn_p(ks[3], planes)}
    if stride != 1 or cin != planes:   # BasicBlock.expansion == 1
        p["ds_w"] = conv_w(ks[4], planes, cin, 1)
        p["ds_bn"] = bn_p(ks[5], planes)
    return p


# --------------------------------------------------------------------------------------
# Main
# --------------------------------------------------------------------------------------

if __name__ == "__main__":
    key = jax.random.PRNGKey(0)
    kx, k1, k2 = jax.random.split(key, 3)

    # CIFAR-style input, kept NHWC end-to-end (a real port would do the single
    # NCHW<->NHWC transpose once at the model boundary, not per block).
    x = jax.random.normal(kx, (2, 16, 16, 64), jnp.float32)

    cases = [
        ("identity   block  (64 ->  64, stride 1)", make_block_params(k1, 64, 64, 1)),
        ("downsample block  (64 -> 128, stride 2)", make_block_params(k2, 64, 128, 2)),
    ]
    for name, params in cases:
        out = jax.block_until_ready(basic_block_forward(x, params))
        ref = basic_block_ref(x, params)
        assert out.shape == ref.shape, (name, out.shape, ref.shape)
        err = float(jnp.max(jnp.abs(out.astype(jnp.float32) - ref)))
        scale = float(jnp.max(jnp.abs(ref))) + 1e-6
        if err > 2.5e-2 * scale + 2.5e-2:
            raise AssertionError(f"{name}: max abs err = {err} (ref scale {scale})")

    print("KERNEL_OK")
</pallas_src>

<mosaic_0001>
module attributes {stable_mosaic.version = 11 : i64} {
  func.func @_basic_block_kernel(%arg0: i32, %arg1: memref<1x1x18x24x64xbf16, #tpu.memory_space<vmem>>, %arg2: memref<3x192x64xbf16, #tpu.memory_space<vmem>>, %arg3: memref<1x64xf32, #tpu.memory_space<vmem>>, %arg4: memref<1x64xf32, #tpu.memory_space<vmem>>, %arg5: memref<3x192x64xbf16, #tpu.memory_space<vmem>>, %arg6: memref<1x64xf32, #tpu.memory_space<vmem>>, %arg7: memref<1x64xf32, #tpu.memory_space<vmem>>, %arg8: memref<1x16x16x64xbf16, #tpu.memory_space<vmem>>, %arg9: memref<1x18x24x64xbf16, #tpu.memory_space<vmem>>) attributes {dimension_semantics = [#tpu.dimension_semantics<parallel>], iteration_bounds = array<i64: 2>, scalar_prefetch = 0 : i64, scratch_operands = 1 : i64, tpu.core_type = #tpu.core_type<tc>, window_params = [{transform_indices = @transform_0, window_bounds = array<i64: 1, 1, 18, 24, 64>}, {pipeline_mode = #tpu.pipeline_mode<synchronous>, transform_indices = @transform_1, window_bounds = array<i64: 3, 192, 64>}, {pipeline_mode = #tpu.pipeline_mode<synchronous>, transform_indices = @transform_2, window_bounds = array<i64: 1, 64>}, {pipeline_mode = #tpu.pipeline_mode<synchronous>, transform_indices = @transform_3, window_bounds = array<i64: 1, 64>}, {pipeline_mode = #tpu.pipeline_mode<synchronous>, transform_indices = @transform_4, window_bounds = array<i64: 3, 192, 64>}, {pipeline_mode = #tpu.pipeline_mode<synchronous>, transform_indices = @transform_5, window_bounds = array<i64: 1, 64>}, {pipeline_mode = #tpu.pipeline_mode<synchronous>, transform_indices = @transform_6, window_bounds = array<i64: 1, 64>}, {transform_indices = @transform_7, window_bounds = array<i64: 1, 16, 16, 64>}]} {
    %c0 = arith.constant 0 : index
    %c0_0 = arith.constant 0 : index
    %0 = vector.load %arg3[%c0, %c0_0] : memref<1x64xf32, #tpu.memory_space<vmem>>, vector<1x64xf32>
    %c0_1 = arith.constant 0 : index
    %c0_2 = arith.constant 0 : index
    %1 = vector.load %arg4[%c0_1, %c0_2] : memref<1x64xf32, #tpu.memory_space<vmem>>, vector<1x64xf32>
    %c0_3 = arith.constant 0 : index
    %c0_4 = arith.constant 0 : index
    %2 = vector.load %arg6[%c0_3, %c0_4] : memref<1x64xf32, #tpu.memory_space<vmem>>, vector<1x64xf32>
    %c0_5 = arith.constant 0 : index
    %c0_6 = arith.constant 0 : index
    %3 = vector.load %arg7[%c0_5, %c0_6] : memref<1x64xf32, #tpu.memory_space<vmem>>, vector<1x64xf32>
    %cst = arith.constant 0.000000e+00 : bf16
    %4 = vector.broadcast %cst : bf16 to vector<1x1x24x64xbf16>
    %c0_7 = arith.constant 0 : index
    %c0_8 = arith.constant 0 : index
    %c0_9 = arith.constant 0 : index
    %c0_10 = arith.constant 0 : index
    %5 = vector.load %arg9[%c0_7, %c0_8, %c0_9, %c0_10] : memref<1x18x24x64xbf16, #tpu.memory_space<vmem>>, vector<1x1x24x64xbf16>
    tpu.vector_store %arg9[%c0_7, %c0_8, %c0_9, %c0_10], %4 {strides = array<i32>} : memref<1x18x24x64xbf16, #tpu.memory_space<vmem>>, vector<1x1x24x64xbf16>,
    %c0_11 = arith.constant 0 : index
    %c17 = arith.constant 17 : index
    %c0_12 = arith.constant 0 : index
    %c0_13 = arith.constant 0 : index
    %6 = vector.load %arg9[%c0_11, %c17, %c0_12, %c0_13] : memref<1x18x24x64xbf16, #tpu.memory_space<vmem>>, vector<1x1x24x64xbf16>
    tpu.vector_store %arg9[%c0_11, %c17, %c0_12, %c0_13], %4 {strides = array<i32>} : memref<1x18x24x64xbf16, #tpu.memory_space<vmem>>, vector<1x1x24x64xbf16>,
    %c0_14 = arith.constant 0 : index
    %c0_15 = arith.constant 0 : index
    %c0_16 = arith.constant 0 : index
    %c0_17 = arith.constant 0 : index
    %c0_18 = arith.constant 0 : index
    %7 = vector.load %arg1[%c0_14, %c0_15, %c0_16, %c0_17, %c0_18] : memref<1x1x18x24x64xbf16, #tpu.memory_space<vmem>>, vector<1x1x16x16x64xbf16>
    %8 = vector.shape_cast %7 : vector<1x1x16x16x64xbf16> to vector<1x16x16x64xbf16>
    %c0_19 = arith.constant 0 : index
    %c0_20 = arith.constant 0 : index
    %c0_21 = arith.constant 0 : index
    %c1 = arith.constant 1 : index
    %c0_22 = arith.constant 0 : index
    %9 = vector.load %arg1[%c0_19, %c0_20, %c0_21, %c1, %c0_22] : memref<1x1x18x24x64xbf16, #tpu.memory_space<vmem>>, vector<1x1x16x16x64xbf16>
    %10 = vector.shape_cast %9 : vector<1x1x16x16x64xbf16> to vector<1x16x16x64xbf16>
    %c0_23 = arith.constant 0 : index
    %c0_24 = arith.constant 0 : index
    %c0_25 = arith.constant 0 : index
    %c2 = arith.constant 2 : index
    %c0_26 = arith.constant 0 : index
    %11 = vector.load %arg1[%c0_23, %c0_24, %c0_25, %c2, %c0_26] : memref<1x1x18x24x64xbf16, #tpu.memory_space<vmem>>, vector<1x1x16x16x64xbf16>
    %12 = vector.shape_cast %11 : vector<1x1x16x16x64xbf16> to vector<1x16x16x64xbf16>
    %13 = tpu.concatenate %8, %10, %12 in 3 : vector<1x16x16x64xbf16>, vector<1x16x16x64xbf16>, vector<1x16x16x64xbf16> -> vector<1x16x16x192xbf16>
    %14 = vector.shape_cast %13 : vector<1x16x16x192xbf16> to vector<256x192xbf16>
    %c0_27 = arith.constant 0 : index
    %c0_28 = arith.constant 0 : index
    %c0_29 = arith.constant 0 : index
    %15 = vector.load %arg2[%c0_27, %c0_28, %c0_29] : memref<3x192x64xbf16, #tpu.memory_space<vmem>>, vector<1x192x64xbf16>
    %16 = vector.shape_cast %15 : vector<1x192x64xbf16> to vector<192x64xbf16>
    %cst_30 = arith.constant dense<0.000000e+00> : vector<256x64xf32>
    %17 = tpu.matmul %14, %16, %cst_30 {dimension_numbers = #tpu.dot_dimension_numbers<[1], [0], [0], [1], [0, 0, 1, 1], [], []>} : vector<256x192xbf16>, vector<192x64xbf16>, vector<256x64xf32> -> vector<256x64xf32>
    %c0_31 = arith.constant 0 : index
    %c0_32 = arith.constant 0 : index
    %c1_33 = arith.constant 1 : index
    %c0_34 = arith.constant 0 : index
    %c0_35 = arith.constant 0 : index
    %18 = vector.load %arg1[%c0_31, %c0_32, %c1_33, %c0_34, %c0_35] : memref<1x1x18x24x64xbf16, #tpu.memory_space<vmem>>, vector<1x1x16x16x64xbf16>
    %19 = vector.shape_cast %18 : vector<1x1x16x16x64xbf16> to vector<1x16x16x64xbf16>
    %c0_36 = arith.constant 0 : index
    %c0_37 = arith.constant 0 : index
    %c1_38 = arith.constant 1 : index
    %c1_39 = arith.constant 1 : index
    %c0_40 = arith.constant 0 : index
    %20 = vector.load %arg1[%c0_36, %c0_37, %c1_38, %c1_39, %c0_40] : memref<1x1x18x24x64xbf16, #tpu.memory_space<vmem>>, vector<1x1x16x16x64xbf16>
    %21 = vector.shape_cast %20 : vector<1x1x16x16x64xbf16> to vector<1x16x16x64xbf16>
    %c0_41 = arith.constant 0 : index
    %c0_42 = arith.constant 0 : index
    %c1_43 = arith.constant 1 : index
    %c2_44 = arith.constant 2 : index
    %c0_45 = arith.constant 0 : index
    %22 = vector.load %arg1[%c0_41, %c0_42, %c1_43, %c2_44, %c0_45] : memref<1x1x18x24x64xbf16, #tpu.memory_space<vmem>>, vector<1x1x16x16x64xbf16>
    %23 = vector.shape_cast %22 : vector<1x1x16x16x64xbf16> to vector<1x16x16x64xbf16>
    %24 = tpu.concatenate %19, %21, %23 in 3 : vector<1x16x16x64xbf16>, vector<1x16x16x64xbf16>, vector<1x16x16x64xbf16> -> vector<1x16x16x192xbf16>
    %25 = vector.shape_cast %24 : vector<1x16x16x192xbf16> to vector<256x192xbf16>
    %c1_46 = arith.constant 1 : index
    %c0_47 = arith.constant 0 : index
    %c0_48 = arith.constant 0 : index
    %26 = vector.load %arg2[%c1_46, %c0_47, %c0_48] : memref<3x192x64xbf16, #tpu.memory_space<vmem>>, vector<1x192x64xbf16>
    %27 = vector.shape_cast %26 : vector<1x192x64xbf16> to vector<192x64xbf16>
    %cst_49 = arith.constant dense<0.000000e+00> : vector<256x64xf32>
    %28 = tpu.matmul %25, %27, %cst_49 {dimension_numbers = #tpu.dot_dimension_numbers<[1], [0], [0], [1], [0, 0, 1, 1], [], []>} : vector<256x192xbf16>, vector<192x64xbf16>, vector<256x64xf32> -> vector<256x64xf32>
    %29 = arith.addf %17, %28 : vector<256x64xf32>
    %c0_50 = arith.constant 0 : index
    %c0_51 = arith.constant 0 : index
    %c2_52 = arith.constant 2 : index
    %c0_53 = arith.constant 0 : index
    %c0_54 = arith.constant 0 : index
    %30 = vector.load %arg1[%c0_50, %c0_51, %c2_52, %c0_53, %c0_54] : memref<1x1x18x24x64xbf16, #tpu.memory_space<vmem>>, vector<1x1x16x16x64xbf16>
    %31 = vector.shape_cast %30 : vector<1x1x16x16x64xbf16> to vector<1x16x16x64xbf16>
    %c0_55 = arith.constant 0 : index
    %c0_56 = arith.constant 0 : index
    %c2_57 = arith.constant 2 : index
    %c1_58 = arith.constant 1 : index
    %c0_59 = arith.constant 0 : index
    %32 = vector.load %arg1[%c0_55, %c0_56, %c2_57, %c1_58, %c0_59] : memref<1x1x18x24x64xbf16, #tpu.memory_space<vmem>>, vector<1x1x16x16x64xbf16>
    %33 = vector.shape_cast %32 : vector<1x1x16x16x64xbf16> to vector<1x16x16x64xbf16>
    %c0_60 = arith.constant 0 : index
    %c0_61 = arith.constant 0 : index
    %c2_62 = arith.constant 2 : index
    %c2_63 = arith.constant 2 : index
    %c0_64 = arith.constant 0 : index
    %34 = vector.load %arg1[%c0_60, %c0_61, %c2_62, %c2_63, %c0_64] : memref<1x1x18x24x64xbf16, #tpu.memory_space<vmem>>, vector<1x1x16x16x64xbf16>
    %35 = vector.shape_cast %34 : vector<1x1x16x16x64xbf16> to vector<1x16x16x64xbf16>
    %36 = tpu.concatenate %31, %33, %35 in 3 : vector<1x16x16x64xbf16>, vector<1x16x16x64xbf16>, vector<1x16x16x64xbf16> -> vector<1x16x16x192xbf16>
    %37 = vector.shape_cast %36 : vector<1x16x16x192xbf16> to vector<256x192xbf16>
    %c2_65 = arith.constant 2 : index
    %c0_66 = arith.constant 0 : index
    %c0_67 = arith.constant 0 : index
    %38 = vector.load %arg2[%c2_65, %c0_66, %c0_67] : memref<3x192x64xbf16, #tpu.memory_space<vmem>>, vector<1x192x64xbf16>
    %39 = vector.shape_cast %38 : vector<1x192x64xbf16> to vector<192x64xbf16>
    %cst_68 = arith.constant dense<0.000000e+00> : vector<256x64xf32>
    %40 = tpu.matmul %37, %39, %cst_68 {dimension_numbers = #tpu.dot_dimension_numbers<[1], [0], [0], [1], [0, 0, 1, 1], [], []>} : vector<256x192xbf16>, vector<192x64xbf16>, vector<256x64xf32> -> vector<256x64xf32>
    %41 = arith.addf %29, %40 : vector<256x64xf32>
    %42 = vector.broadcast %0 : vector<1x64xf32> to vector<256x64xf32>
    %43 = arith.mulf %41, %42 : vector<256x64xf32>
    %44 = vector.broadcast %1 : vector<1x64xf32> to vector<256x64xf32>
    %45 = arith.addf %43, %44 : vector<256x64xf32>
    %cst_69 = arith.constant 0.000000e+00 : f32
    %46 = vector.broadcast %cst_69 : f32 to vector<256x64xf32>
    %47 = arith.maximumf %45, %46 : vector<256x64xf32>
    %48 = arith.truncf %47 : vector<256x64xf32> to vector<256x64xbf16>
    %49 = vector.shape_cast %48 : vector<256x64xbf16> to vector<1x16x16x64xbf16>
    %cst_70 = arith.constant 0.000000e+00 : bf16
    %50 = vector.broadcast %cst_70 : bf16 to vector<1x16x1x64xbf16>
    %cst_71 = arith.constant 0.000000e+00 : bf16
    %51 = vector.broadcast %cst_71 : bf16 to vector<1x16x7x64xbf16>
    %52 = tpu.concatenate %50, %49, %51 in 2 : vector<1x16x1x64xbf16>, vector<1x16x16x64xbf16>, vector<1x16x7x64xbf16> -> vector<1x16x24x64xbf16>
    %c0_72 = arith.constant 0 : index
    %c1_73 = arith.constant 1 : index
    %c0_74 = arith.constant 0 : index
    %c0_75 = arith.constant 0 : index
    %53 = vector.load %arg9[%c0_72, %c1_73, %c0_74, %c0_75] : memref<1x18x24x64xbf16, #tpu.memory_space<vmem>>, vector<1x16x24x64xbf16>
    tpu.vector_store %arg9[%c0_72, %c1_73, %c0_74, %c0_75], %52 {strides = array<i32>} : memref<1x18x24x64xbf16, #tpu.memory_space<vmem>>, vector<1x16x24x64xbf16>,
    %c0_76 = arith.constant 0 : index
    %c0_77 = arith.constant 0 : index
    %c0_78 = arith.constant 0 : index
    %c0_79 = arith.constant 0 : index
    %54 = vector.load %arg9[%c0_76, %c0_77, %c0_78, %c0_79] : memref<1x18x24x64xbf16, #tpu.memory_space<vmem>>, vector<1x16x16x64xbf16>
    %c0_80 = arith.constant 0 : index
    %c0_81 = arith.constant 0 : index
    %c1_82 = arith.constant 1 : index
    %c0_83 = arith.constant 0 : index
    %55 = vector.load %arg9[%c0_80, %c0_81, %c1_82, %c0_83] : memref<1x18x24x64xbf16, #tpu.memory_space<vmem>>, vector<1x16x16x64xbf16>
    %c0_84 = arith.constant 0 : index
    %c0_85 = arith.constant 0 : index
    %c2_86 = arith.constant 2 : index
    %c0_87 = arith.constant 0 : index
    %56 = vector.load %arg9[%c0_84, %c0_85, %c2_86, %c0_87] : memref<1x18x24x64xbf16, #tpu.memory_space<vmem>>, vector<1x16x16x64xbf16>
    %57 = tpu.concatenate %54, %55, %56 in 3 : vector<1x16x16x64xbf16>, vector<1x16x16x64xbf16>, vector<1x16x16x64xbf16> -> vector<1x16x16x192xbf16>
    %58 = vector.shape_cast %57 : vector<1x16x16x192xbf16> to vector<256x192xbf16>
    %c0_88 = arith.constant 0 : index
    %c0_89 = arith.constant 0 : index
    %c0_90 = arith.constant 0 : index
    %59 = vector.load %arg5[%c0_88, %c0_89, %c0_90] : memref<3x192x64xbf16, #tpu.memory_space<vmem>>, vector<1x192x64xbf16>
    %60 = vector.shape_cast %59 : vector<1x192x64xbf16> to vector<192x64xbf16>
    %cst_91 = arith.constant dense<0.000000e+00> : vector<256x64xf32>
    %61 = tpu.matmul %58, %60, %cst_91 {dimension_numbers = #tpu.dot_dimension_numbers<[1], [0], [0], [1], [0, 0, 1, 1], [], []>} : vector<256x192xbf16>, vector<192x64xbf16>, vector<256x64xf32> -> vector<256x64xf32>
    %c0_92 = arith.constant 0 : index
    %c1_93 = arith.constant 1 : index
    %c0_94 = arith.constant 0 : index
    %c0_95 = arith.constant 0 : index
    %62 = vector.load %arg9[%c0_92, %c1_93, %c0_94, %c0_95] : memref<1x18x24x64xbf16, #tpu.memory_space<vmem>>, vector<1x16x16x64xbf16>
    %c0_96 = arith.constant 0 : index
    %c1_97 = arith.constant 1 : index
    %c1_98 = arith.constant 1 : index
    %c0_99 = arith.constant 0 : index
    %63 = vector.load %arg9[%c0_96, %c1_97, %c1_98, %c0_99] : memref<1x18x24x64xbf16, #tpu.memory_space<vmem>>, vector<1x16x16x64xbf16>
    %c0_100 = arith.constant 0 : index
    %c1_101 = arith.constant 1 : index
    %c2_102 = arith.constant 2 : index
    %c0_103 = arith.constant 0 : index
    %64 = vector.load %arg9[%c0_100, %c1_101, %c2_102, %c0_103] : memref<1x18x24x64xbf16, #tpu.memory_space<vmem>>, vector<1x16x16x64xbf16>
    %65 = tpu.concatenate %62, %63, %64 in 3 : vector<1x16x16x64xbf16>, vector<1x16x16x64xbf16>, vector<1x16x16x64xbf16> -> vector<1x16x16x192xbf16>
    %66 = vector.shape_cast %65 : vector<1x16x16x192xbf16> to vector<256x192xbf16>
    %c1_104 = arith.constant 1 : index
    %c0_105 = arith.constant 0 : index
    %c0_106 = arith.constant 0 : index
    %67 = vector.load %arg5[%c1_104, %c0_105, %c0_106] : memref<3x192x64xbf16, #tpu.memory_space<vmem>>, vector<1x192x64xbf16>
    %68 = vector.shape_cast %67 : vector<1x192x64xbf16> to vector<192x64xbf16>
    %cst_107 = arith.constant dense<0.000000e+00> : vector<256x64xf32>
    %69 = tpu.matmul %66, %68, %cst_107 {dimension_numbers = #tpu.dot_dimension_numbers<[1], [0], [0], [1], [0, 0, 1, 1], [], []>} : vector<256x192xbf16>, vector<192x64xbf16>, vector<256x64xf32> -> vector<256x64xf32>
    %70 = arith.addf %61, %69 : vector<256x64xf32>
    %c0_108 = arith.constant 0 : index
    %c2_109 = arith.constant 2 : index
    %c0_110 = arith.constant 0 : index
    %c0_111 = arith.constant 0 : index
    %71 = vector.load %arg9[%c0_108, %c2_109, %c0_110, %c0_111] : memref<1x18x24x64xbf16, #tpu.memory_space<vmem>>, vector<1x16x16x64xbf16>
    %c0_112 = arith.constant 0 : index
    %c2_113 = arith.constant 2 : index
    %c1_114 = arith.constant 1 : index
    %c0_115 = arith.constant 0 : index
    %72 = vector.load %arg9[%c0_112, %c2_113, %c1_114, %c0_115] : memref<1x18x24x64xbf16, #tpu.memory_space<vmem>>, vector<1x16x16x64xbf16>
    %c0_116 = arith.constant 0 : index
    %c2_117 = arith.constant 2 : index
    %c2_118 = arith.constant 2 : index
    %c0_119 = arith.constant 0 : index
    %73 = vector.load %arg9[%c0_116, %c2_117, %c2_118, %c0_119] : memref<1x18x24x64xbf16, #tpu.memory_space<vmem>>, vector<1x16x16x64xbf16>
    %74 = tpu.concatenate %71, %72, %73 in 3 : vector<1x16x16x64xbf16>, vector<1x16x16x64xbf16>, vector<1x16x16x64xbf16> -> vector<1x16x16x192xbf16>
    %75 = vector.shape_cast %74 : vector<1x16x16x192xbf16> to vector<256x192xbf16>
    %c2_120 = arith.constant 2 : index
    %c0_121 = arith.constant 0 : index
    %c0_122 = arith.constant 0 : index
    %76 = vector.load %arg5[%c2_120, %c0_121, %c0_122] : memref<3x192x64xbf16, #tpu.memory_space<vmem>>, vector<1x192x64xbf16>
    %77 = vector.shape_cast %76 : vector<1x192x64xbf16> to vector<192x64xbf16>
    %cst_123 = arith.constant dense<0.000000e+00> : vector<256x64xf32>
    %78 = tpu.matmul %75, %77, %cst_123 {dimension_numbers = #tpu.dot_dimension_numbers<[1], [0], [0], [1], [0, 0, 1, 1], [], []>} : vector<256x192xbf16>, vector<192x64xbf16>, vector<256x64xf32> -> vector<256x64xf32>
    %79 = arith.addf %70, %78 : vector<256x64xf32>
    %80 = vector.broadcast %2 : vector<1x64xf32> to vector<256x64xf32>
    %81 = arith.mulf %79, %80 : vector<256x64xf32>
    %82 = vector.broadcast %3 : vector<1x64xf32> to vector<256x64xf32>
    %83 = arith.addf %81, %82 : vector<256x64xf32>
    %c0_124 = arith.constant 0 : index
    %c0_125 = arith.constant 0 : index
    %c1_126 = arith.constant 1 : index
    %c1_127 = arith.constant 1 : index
    %c0_128 = arith.constant 0 : index
    %84 = vector.load %arg1[%c0_124, %c0_125, %c1_126, %c1_127, %c0_128] : memref<1x1x18x24x64xbf16, #tpu.memory_space<vmem>>, vector<1x1x16x16x64xbf16>
    %85 = vector.shape_cast %84 : vector<1x1x16x16x64xbf16> to vector<1x16x16x64xbf16>
    %86 = vector.shape_cast %85 : vector<1x16x16x64xbf16> to vector<256x64xbf16>
    %87 = arith.extf %86 : vector<256x64xbf16> to vector<256x64xf32>
    %88 = arith.addf %83, %87 : vector<256x64xf32>
    %cst_129 = arith.constant 0.000000e+00 : f32
    %89 = vector.broadcast %cst_129 : f32 to vector<256x64xf32>
    %90 = arith.maximumf %88, %89 : vector<256x64xf32>
    %91 = arith.truncf %90 : vector<256x64xf32> to vector<256x64xbf16>
    %92 = vector.shape_cast %91 : vector<256x64xbf16> to vector<1x16x16x64xbf16>
    %c0_130 = arith.constant 0 : index
    %c0_131 = arith.constant 0 : index
    %c0_132 = arith.constant 0 : index
    %c0_133 = arith.constant 0 : index
    %93 = vector.load %arg8[%c0_130, %c0_131, %c0_132, %c0_133] : memref<1x16x16x64xbf16, #tpu.memory_space<vmem>>, vector<1x16x16x64xbf16>
    tpu.vector_store %arg8[%c0_130, %c0_131, %c0_132, %c0_133], %92 {strides = array<i32>} : memref<1x16x16x64xbf16, #tpu.memory_space<vmem>>, vector<1x16x16x64xbf16>,
    return
  }
  func.func @transform_0(%arg0: i32) -> (i32, i32, i32, i32, i32) {
    %c0_i32 = arith.constant 0 : i32
    %c0_i32_0 = arith.constant 0 : i32
    %c0_i32_1 = arith.constant 0 : i32
    %c0_i32_2 = arith.constant 0 : i32
    %c0_i32_3 = arith.constant 0 : i32
    return %arg0, %c0_i32, %c0_i32_0, %c0_i32_1, %c0_i32_2 : i32, i32, i32, i32, i32
  }
  func.func @transform_1(%arg0: i32) -> (i32, i32, i32) {
    %c0_i32 = arith.constant 0 : i32
    %c0_i32_0 = arith.constant 0 : i32
    %c0_i32_1 = arith.constant 0 : i32
    %c0_i32_2 = arith.constant 0 : i32
    return %c0_i32, %c0_i32_0, %c0_i32_1 : i32, i32, i32
  }
  func.func @transform_2(%arg0: i32) -> (i32, i32) {
    %c0_i32 = arith.constant 0 : i32
    %c0_i32_0 = arith.constant 0 : i32
    %c0_i32_1 = arith.constant 0 : i32
    return %c0_i32, %c0_i32_0 : i32, i32
  }
  func.func @transform_3(%arg0: i32) -> (i32, i32) {
    %c0_i32 = arith.constant 0 : i32
    %c0_i32_0 = arith.constant 0 : i32
    %c0_i32_1 = arith.constant 0 : i32
    return %c0_i32, %c0_i32_0 : i32, i32
  }
  func.func @transform_4(%arg0: i32) -> (i32, i32, i32) {
    %c0_i32 = arith.constant 0 : i32
    %c0_i32_0 = arith.constant 0 : i32
    %c0_i32_1 = arith.constant 0 : i32
    %c0_i32_2 = arith.constant 0 : i32
    return %c0_i32, %c0_i32_0, %c0_i32_1 : i32, i32, i32
  }
  func.func @transform_5(%arg0: i32) -> (i32, i32) {
    %c0_i32 = arith.constant 0 : i32
    %c0_i32_0 = arith.constant 0 : i32
    %c0_i32_1 = arith.constant 0 : i32
    return %c0_i32, %c0_i32_0 : i32, i32
  }
  func.func @transform_6(%arg0: i32) -> (i32, i32) {
    %c0_i32 = arith.constant 0 : i32
    %c0_i32_0 = arith.constant 0 : i32
    %c0_i32_1 = arith.constant 0 : i32
    return %c0_i32, %c0_i32_0 : i32, i32
  }
  func.func @transform_7(%arg0: i32) -> (i32, i32, i32, i32) {
    %c0_i32 = arith.constant 0 : i32
    %c0_i32_0 = arith.constant 0 : i32
    %c0_i32_1 = arith.constant 0 : i32
    %c0_i32_2 = arith.constant 0 : i32
    return %arg0, %c0_i32, %c0_i32_0, %c0_i32_1 : i32, i32, i32, i32
  }
}

</mosaic_0001>

<llo_original>
// kernel: tpu_custom_call.1
$region0: #{tpu_custom_call.1}
  #allocation0 [shape = 'u32[]', space=smem, size = 0x4, offset = 0x4, fixed_abs, tag = 'smem constant byte address 0x4 - core index']
  #allocation1 [shape = 'u32[72,128]{1,0:T(1,128)}', space=vmem, size = 0x9000, scoped, tag = 'internal scratch']
  #allocation2 [shape = 'bf16[1,18,24,64]{3,2,1,0:T(8,128)(2,1)}', space=vmem, size = 0x1b000, scoped, tag = 'scratch operand']
  %s0 = inlined_call_operand.vmem [shape: bf16[2,1,18,24,64], index: 0, kind: input, shape index: {}]
  %s1 = inlined_call_operand.vmem [shape: bf16[3,192,64], index: 1, kind: input, shape index: {}]
  %s2 = inlined_call_operand.vmem [shape: f32[1,64], index: 2, kind: input, shape index: {}]
  %s3 = inlined_call_operand.vmem [shape: f32[1,64], index: 3, kind: input, shape index: {}]
  %s4 = inlined_call_operand.vmem [shape: bf16[3,192,64], index: 4, kind: input, shape index: {}]
  %s5 = inlined_call_operand.vmem [shape: f32[1,64], index: 5, kind: input, shape index: {}]
  %s6 = inlined_call_operand.vmem [shape: f32[1,64], index: 6, kind: input, shape index: {}]
  %s7 = inlined_call_operand.hbm [shape: bf16[2,16,16,64], index: 7, kind: output, shape index: {}]
  %s8 = sld [smem:[#allocation0]]
  $region61: #{tpu_custom_call.1} parent=0
    _
  %s10 = ssub.s32 1, %s8
  %s11 = scalar_select 0, %s10, %s8
  $region1: #{tpu_custom_call.1} parent=0
    #allocation3 [shape = 'u8[131072]{0}', space=vmem, size = 0x20000, scoped, tag = 'output window, operand 0']
    #allocation4 [shape = 's32[2]{0}', space=sflag, size = 0x8, scoped, tag = 'scoped memory for tpu_custom_call.1']
    %12 = vsyncpa [#allocation4], 0
    %s13 = scalar_lea.sflag [#allocation4], 1
    %14 = vsyncpa %s13, 0
    loop: start=0, step=1, limit=4
    $region2: #{tpu_custom_call.1} parent=1 // loop_pre_header
      _
    $region3: #{tpu_custom_call.1} parent=1 // loop_header
      %s16 = sphi 0, %s20
      %p17 = scmp.ge.s32.totalorder %s16, 4
      %s26 = sphi 0, %s28
      %s29 = sphi 0, %s26
      %s30 = sphi 0, %s29
      %s46 = sphi 0, %s30
      %s50 = sphi 0, %s50
      %s52 = sphi 0, %s50
      %s53 = sphi 0, %s52
      %s67 = sphi 0, %s53
      %s71 = sphi 0, %s71
      %s73 = sphi 0, %s71
      %s74 = sphi 0, %s73
      %s88 = sphi 0, %s74
      %s92 = sphi 0, %s92
      %s94 = sphi 0, %s92
      %s95 = sphi 0, %s94
      %s109 = sphi 0, %s95
      %s113 = sphi 0, %s113
      %s115 = sphi 0, %s113
      %s116 = sphi 0, %s115
      %s130 = sphi 0, %s116
      %s134 = sphi 0, %s134
      %s136 = sphi 0, %s134
      %s137 = sphi 0, %s136
      %s151 = sphi 0, %s137
      %s155 = sphi 0, %s155
      %s157 = sphi 0, %s155
      %s158 = sphi 0, %s157
      %s172 = sphi 0, %s158
      %s178 = sphi 0, %s180
      %s181 = sphi 0, %s178
      %s182 = sphi 0, %s181
      %s198 = sphi 0, %s182
    $region4: #{tpu_custom_call.1} parent=1 // loop_header_branch
      %19 = sbr.rel (%p17) target = $region8
    $region5: #{tpu_custom_call.1} parent=1 // loop_body
      %s21 = ssub.s32 %s16, 1
      %s22 = ssub.s32 %s16, 2
      %s23 = sadd.s32 %s16, 1
      %s24 = ssub.s32 %s16, %s23
      %p25 = scmp.eq.s32.totalorder %s24, 0
      %s27 = sadd.s32 %s26, 1
      %s28 = scalar_select %p25, %s26, %s27
      %p31 = pneg %p25
      %p32 = scmp.eq.s32.totalorder %s16, 1
      %p33 = por %p31, %p32
      %p34 = scmp.ne.s32.totalorder %s26, %s29
      %p35 = scmp.eq.s32.totalorder %s16, 0
      %p36 = por %p34, %p35
      %p37 = scmp.ne.s32.totalorder %s26, %s29
      %p38 = scmp.eq.s32.totalorder %s21, 1
      %p39 = por %p37, %p38
      %p40 = scmp.ne.s32.totalorder %s29, %s30
      %p41 = scmp.eq.s32.totalorder %s21, 0
      %p42 = por %p40, %p41
      %p43 = scmp.ne.s32.totalorder %s29, %s30
      %p44 = scmp.eq.s32.totalorder %s22, 1
      %p45 = por %p43, %p44
      %p47 = scmp.ne.s32.totalorder %s30, %s46
      %p48 = scmp.eq.s32.totalorder %s22, 0
      %p49 = por %p47, %p48
      %s51 = sadd.s32 %s50, 1
      %p54 = scmp.eq.s32.totalorder %s16, 1
      %p55 = scmp.ne.s32.totalorder %s50, %s52
      %p56 = scmp.eq.s32.totalorder %s16, 0
      %p57 = por %p55, %p56
      %p58 = scmp.ne.s32.totalorder %s50, %s52
      %p59 = scmp.eq.s32.totalorder %s21, 1
      %p60 = por %p58, %p59
      %p61 = scmp.ne.s32.totalorder %s52, %s53
      %p62 = scmp.eq.s32.totalorder %s21, 0
      %p63 = por %p61, %p62
      %p64 = scmp.ne.s32.totalorder %s52, %s53
      %p65 = scmp.eq.s32.totalorder %s22, 1
      %p66 = por %p64, %p65
      %p68 = scmp.ne.s32.totalorder %s53, %s67
      %p69 = scmp.eq.s32.totalorder %s22, 0
      %p70 = por %p68, %p69
      %s72 = sadd.s32 %s71, 1
      %p75 = scmp.eq.s32.totalorder %s16, 1
      %p76 = scmp.ne.s32.totalorder %s71, %s73
      %p77 = scmp.eq.s32.totalorder %s16, 0
      %p78 = por %p76, %p77
      %p79 = scmp.ne.s32.totalorder %s71, %s73
      %p80 = scmp.eq.s32.totalorder %s21, 1
      %p81 = por %p79, %p80
      %p82 = scmp.ne.s32.totalorder %s73, %s74
      %p83 = scmp.eq.s32.totalorder %s21, 0
      %p84 = por %p82, %p83
      %p85 = scmp.ne.s32.totalorder %s73, %s74
      %p86 = scmp.eq.s32.totalorder %s22, 1
      %p87 = por %p85, %p86
      %p89 = scmp.ne.s32.totalorder %s74, %s88
      %p90 = scmp.eq.s32.totalorder %s22, 0
      %p91 = por %p89, %p90
      %s93 = sadd.s32 %s92, 1
      %p96 = scmp.eq.s32.totalorder %s16, 1
      %p97 = scmp.ne.s32.totalorder %s92, %s94
      %p98 = scmp.eq.s32.totalorder %s16, 0
      %p99 = por %p97, %p98
      %p100 = scmp.ne.s32.totalorder %s92, %s94
      %p101 = scmp.eq.s32.totalorder %s21, 1
      %p102 = por %p100, %p101
      %p103 = scmp.ne.s32.totalorder %s94, %s95
      %p104 = scmp.eq.s32.totalorder %s21, 0
      %p105 = por %p103, %p104
      %p106 = scmp.ne.s32.totalorder %s94, %s95
      %p107 = scmp.eq.s32.totalorder %s22, 1
      %p108 = por %p106, %p107
      %p110 = scmp.ne.s32.totalorder %s95, %s109
      %p111 = scmp.eq.s32.totalorder %s22, 0
      %p112 = por %p110, %p111
      %s114 = sadd.s32 %s113, 1
      %p117 = scmp.eq.s32.totalorder %s16, 1
      %p118 = scmp.ne.s32.totalorder %s113, %s115
      %p119 = scmp.eq.s32.totalorder %s16, 0
      %p120 = por %p118, %p119
      %p121 = scmp.ne.s32.totalorder %s113, %s115
      %p122 = scmp.eq.s32.totalorder %s21, 1
      %p123 = por %p121, %p122
      %p124 = scmp.ne.s32.totalorder %s115, %s116
      %p125 = scmp.eq.s32.totalorder %s21, 0
      %p126 = por %p124, %p125
      %p127 = scmp.ne.s32.totalorder %s115, %s116
      %p128 = scmp.eq.s32.totalorder %s22, 1
      %p129 = por %p127, %p128
      %p131 = scmp.ne.s32.totalorder %s116, %s130
      %p132 = scmp.eq.s32.totalorder %s22, 0
      %p133 = por %p131, %p132
      %s135 = sadd.s32 %s134, 1
      %p138 = scmp.eq.s32.totalorder %s16, 1
      %p139 = scmp.ne.s32.totalorder %s134, %s136
      %p140 = scmp.eq.s32.totalorder %s16, 0
      %p141 = por %p139, %p140
      %p142 = scmp.ne.s32.totalorder %s134, %s136
      %p143 = scmp.eq.s32.totalorder %s21, 1
      %p144 = por %p142, %p143
      %p145 = scmp.ne.s32.totalorder %s136, %s137
      %p146 = scmp.eq.s32.totalorder %s21, 0
      %p147 = por %p145, %p146
      %p148 = scmp.ne.s32.totalorder %s136, %s137
      %p149 = scmp.eq.s32.totalorder %s22, 1
      %p150 = por %p148, %p149
      %p152 = scmp.ne.s32.totalorder %s137, %s151
      %p153 = scmp.eq.s32.totalorder %s22, 0
      %p154 = por %p152, %p153
      %s156 = sadd.s32 %s155, 1
      %p159 = scmp.eq.s32.totalorder %s16, 1
      %p160 = scmp.ne.s32.totalorder %s155, %s157
      %p161 = scmp.eq.s32.totalorder %s16, 0
      %p162 = por %p160, %p161
      %p163 = scmp.ne.s32.totalorder %s155, %s157
      %p164 = scmp.eq.s32.totalorder %s21, 1
      %p165 = por %p163, %p164
      %p166 = scmp.ne.s32.totalorder %s157, %s158
      %p167 = scmp.eq.s32.totalorder %s21, 0
      %p168 = por %p166, %p167
      %p169 = scmp.ne.s32.totalorder %s157, %s158
      %p170 = scmp.eq.s32.totalorder %s22, 1
      %p171 = por %p169, %p170
      %p173 = scmp.ne.s32.totalorder %s158, %s172
      %p174 = scmp.eq.s32.totalorder %s22, 0
      %p175 = por %p173, %p174
      %s176 = ssub.s32 %s16, %s23
      %p177 = scmp.eq.s32.totalorder %s176, 0
      %s179 = sadd.s32 %s178, 1
      %s180 = scalar_select %p177, %s178, %s179
      %p183 = pneg %p177
      %p184 = scmp.eq.s32.totalorder %s16, 1
      %p185 = por %p183, %p184
      %p186 = scmp.ne.s32.totalorder %s178, %s181
      %p187 = scmp.eq.s32.totalorder %s16, 0
      %p188 = por %p186, %p187
      %p189 = scmp.ne.s32.totalorder %s178, %s181
      %p190 = scmp.eq.s32.totalorder %s21, 1
      %p191 = por %p189, %p190
      %p192 = scmp.ne.s32.totalorder %s181, %s182
      %p193 = scmp.eq.s32.totalorder %s21, 0
      %p194 = por %p192, %p193
      %p195 = scmp.ne.s32.totalorder %s181, %s182
      %p196 = scmp.eq.s32.totalorder %s22, 1
      %p197 = por %p195, %p196
      %p199 = scmp.ne.s32.totalorder %s182, %s198
      %p200 = scmp.eq.s32.totalorder %s22, 0
      %p201 = por %p199, %p200
      %p202 = scmp.le.s32.totalorder 1, %s16
      %p203 = scmp.lt.s32.totalorder %s16, 3
      %p204 = pnand %p202, %p203
      %p205 = pneg %p204
      // Predicated region
      $region9: #{tpu_custom_call.1} parent=5 // pred_check
        _
      $region10: #{tpu_custom_call.1} parent=5 // pred_check_branch
        %207 = sbr.rel (%p204) target = $region12
      $region11: #{tpu_custom_call.1} parent=5 // pred_region
        %s208 = ssub.s32 %s16, 1
        // Predicated region
        $region13: #{tpu_custom_call.1} parent=11 // pred_check
          %p209 = pneg %p63
        $region14: #{tpu_custom_call.1} parent=11 // pred_check_branch
          %211 = sbr.rel (%p209) target = $region16
        $region15: #{tpu_custom_call.1} parent=11 // pred_region
          _
        $region16: #{tpu_custom_call.1} parent=11 // pred_fallthru
          _
        // Predicated region
        $region17: #{tpu_custom_call.1} parent=11 // pred_check
          %p212 = pneg %p84
        $region18: #{tpu_custom_call.1} parent=11 // pred_check_branch
          %214 = sbr.rel (%p212) target = $region20
        $region19: #{tpu_custom_call.1} parent=11 // pred_region
          _
        $region20: #{tpu_custom_call.1} parent=11 // pred_fallthru
          _
        // Predicated region
        $region21: #{tpu_custom_call.1} parent=11 // pred_check
          %p215 = pneg %p105
        $region22: #{tpu_custom_call.1} parent=11 // pred_check_branch
          %217 = sbr.rel (%p215) target = $region24
        $region23: #{tpu_custom_call.1} parent=11 // pred_region
          _
        $region24: #{tpu_custom_call.1} parent=11 // pred_fallthru
          _
        // Predicated region
        $region25: #{tpu_custom_call.1} parent=11 // pred_check
          %p218 = pneg %p126
        $region26: #{tpu_custom_call.1} parent=11 // pred_check_branch
          %220 = sbr.rel (%p218) target = $region28
        $region27: #{tpu_custom_call.1} parent=11 // pred_region
          _
        $region28: #{tpu_custom_call.1} parent=11 // pred_fallthru
          _
        // Predicated region
        $region29: #{tpu_custom_call.1} parent=11 // pred_check
          %p221 = pneg %p147
        $region30: #{tpu_custom_call.1} parent=11 // pred_check_branch
          %223 = sbr.rel (%p221) target = $region32
        $region31: #{tpu_custom_call.1} parent=11 // pred_region
          _
        $region32: #{tpu_custom_call.1} parent=11 // pred_fallthru
          _
        // Predicated region
        $region33: #{tpu_custom_call.1} parent=11 // pred_check
          %p224 = pneg %p168
        $region34: #{tpu_custom_call.1} parent=11 // pred_check_branch
          %226 = sbr.rel (%p224) target = $region36
        $region35: #{tpu_custom_call.1} parent=11 // pred_region
          _
        $region36: #{tpu_custom_call.1} parent=11 // pred_fallthru
          _
      $region12: #{tpu_custom_call.1} parent=5 // pred_fallthru
        _
      %p227 = scmp.lt.s32.totalorder %s16, 2
      // Predicated region
      $region37: #{tpu_custom_call.1} parent=5 // pred_check
        %p228 = pneg %p227
      $region38: #{tpu_custom_call.1} parent=5 // pred_check_branch
        %230 = sbr.rel (%p228) target = $region40
      $region39: #{tpu_custom_call.1} parent=5 // pred_region
        // Predicated region
        $region41: #{tpu_custom_call.1} parent=39 // pred_check
          %p231 = pneg %p36
        $region42: #{tpu_custom_call.1} parent=39 // pred_check_branch
          %233 = sbr.rel (%p231) target = $region44
        $region43: #{tpu_custom_call.1} parent=39 // pred_region
          %p234 = scmp.lt.s32.totalorder %s16, 1
          %s235 = scalar_select %p234, %s16, 1
          %s236 = smul.addr %s235, 54
          %s237 = smul.addr %s236, 4
          %s238 = scalar_lea.vmem %s0, %s237
        $region44: #{tpu_custom_call.1} parent=39 // pred_fallthru
          _
      $region40: #{tpu_custom_call.1} parent=5 // pred_fallthru
        _
      %p239 = scmp.le.s32.totalorder 1, %s16
      %p240 = scmp.lt.s32.totalorder %s16, 3
      %p241 = pnand %p239, %p240
      %p242 = pneg %p241
      // Predicated region
      $region45: #{tpu_custom_call.1} parent=5 // pred_check
        _
      $region46: #{tpu_custom_call.1} parent=5 // pred_check_branch
        %244 = sbr.rel (%p241) target = $region48
      $region47: #{tpu_custom_call.1} parent=5 // pred_region
        %s245 = ssub.s32 %s16, 1
        %p246 = scmp.lt.s32.totalorder %s21, 1
        %s247 = scalar_select %p246, %s21, 1
        %s248 = smul.addr %s247, 54
        %s249 = smul.addr %s248, 4
        %s250 = scalar_lea.vmem %s0, %s249
        %p251 = pneg %p42
        %p252 = pneg %p39
        %p253 = pneg %p63
        %p254 = pneg %p60
        %p255 = pneg %p84
        %p256 = pneg %p81
        %p257 = pneg %p105
        %p258 = pneg %p102
        %p259 = pneg %p126
        %p260 = pneg %p123
        %p261 = pneg %p147
        %p262 = pneg %p144
        %p263 = pneg %p168
        %p264 = pneg %p165
        %p265 = pneg %p194
        %p266 = pneg %p191
        %s267 = sand.u32 %s181, 1
        %s268 = scalar_lea.sflag [#allocation4], %s267
        %s269 = sand.u32 %s181, 1
        %s270 = smul.addr %s269, 128
        %s271 = scalar_lea.vmem [#allocation3], %s270
        %p272 = scmp.lt.s32.totalorder %s21, 1
        %s273 = scalar_select %p272, %s21, 1
        %s274 = smul.addr %s273, 54
        %s275 = smul.addr %s274, 4
        %s276 = scalar_lea.vmem %s0, %s275
        %v278 = vld [vmem:[%s2] sm:$0x1]
        %v279 = vld [vmem:[%s3] sm:$0x1]
        %v280 = vld [vmem:[%s5] sm:$0x1]
        %v281 = vld [vmem:[%s6] sm:$0x1]
        %vm282 = vcmask 519168
        %283 = vst.msk [vmem:[#allocation2] sm:$0xf] %vm282, 0
        %284 = vst.msk [vmem:[#allocation2 + $0x4] sm:$0xf] %vm282, 0
        %285 = vst.msk [vmem:[#allocation2 + $0x8] sm:$0xf] %vm282, 0
        %s286 = scalar_lea.vmem [#allocation2], 204
        %287 = vst.msk [vmem:[%s286] sm:$0xf] %vm282, 0
        %288 = vst.msk [vmem:[%s286 + $0x4] sm:$0xf] %vm282, 0
        %289 = vst.msk [vmem:[%s286 + $0x8] sm:$0xf] %vm282, 0
        %v290 = vld [vmem:[%s276] sm:$0xf]
        %v291 = vld [vmem:[%s276 + $0x4] sm:$0xf]
        %v292 = vld [vmem:[%s276 + $0xc] sm:$0xf]
        %v293 = vld [vmem:[%s276 + $0x10] sm:$0xf]
        %v294 = vld [vmem:[%s276 + $0x18] sm:$0xf]
        %v295 = vld [vmem:[%s276 + $0x1c] sm:$0xf]
        %v296 = vld [vmem:[%s276 + $0x24] sm:$0xf]
        %v297 = vld [vmem:[%s276 + $0x28] sm:$0xf]
        %v298 = vld [vmem:[%s276 + $0x30] sm:$0xf]
        %v299 = vld [vmem:[%s276 + $0x34] sm:$0xf]
        %v300 = vld [vmem:[%s276 + $0x3c] sm:$0xf]
        %v301 = vld [vmem:[%s276 + $0x40] sm:$0xf]
        %v302 = vld [vmem:[%s276 + $0x48] sm:$0xf]
        %v303 = vld [vmem:[%s276 + $0x4c] sm:$0xf]
        %v304 = vld [vmem:[%s276 + $0x54] sm:$0xf]
        %v305 = vld [vmem:[%s276 + $0x58] sm:$0xf]
        %v306 = vld [vmem:[%s276 + $0x60] sm:$0xf]
        %v307 = vld [vmem:[%s276 + $0x64] sm:$0xf]
        %v308 = vld [vmem:[%s276 + $0x6c] sm:$0xf]
        %v309 = vld [vmem:[%s276 + $0x70] sm:$0xf]
        %v310 = vld [vmem:[%s276 + $0x78] sm:$0xf]
        %v311 = vld [vmem:[%s276 + $0x7c] sm:$0xf]
        %v312 = vld [vmem:[%s276 + $0x84] sm:$0xf]
        %v313 = vld [vmem:[%s276 + $0x88] sm:$0xf]
        %v314 = vld [vmem:[%s276 + $0x90] sm:$0xf]
        %v315 = vld [vmem:[%s276 + $0x94] sm:$0xf]
        %v316 = vld [vmem:[%s276 + $0x9c] sm:$0xf]
        %v317 = vld [vmem:[%s276 + $0xa0] sm:$0xf]
        %v318 = vld [vmem:[%s276 + $0xa8] sm:$0xf]
        %v319 = vld [vmem:[%s276 + $0xac] sm:$0xf]
        %v320 = vld [vmem:[%s276 + $0xb4] sm:$0xf]
        %v321 = vld [vmem:[%s276 + $0xb8] sm:$0xf]
        %v322 = vld [vmem:[%s276 + $0x8] sm:$0x1]
        %v323 = vld [vmem:[%s276 + $0x14] sm:$0x1]
        %v324 = vld [vmem:[%s276 + $0x20] sm:$0x1]
        %v325 = vld [vmem:[%s276 + $0x2c] sm:$0x1]
        %v326 = vld [vmem:[%s276 + $0x38] sm:$0x1]
        %v327 = vld [vmem:[%s276 + $0x44] sm:$0x1]
        %v328 = vld [vmem:[%s276 + $0x50] sm:$0x1]
        %v329 = vld [vmem:[%s276 + $0x5c] sm:$0x1]
        %v330 = vld [vmem:[%s276 + $0x68] sm:$0x1]
        %v331 = vld [vmem:[%s276 + $0x74] sm:$0x1]
        %v332 = vld [vmem:[%s276 + $0x80] sm:$0x1]
        %v333 = vld [vmem:[%s276 + $0x8c] sm:$0x1]
        %v334 = vld [vmem:[%s276 + $0x98] sm:$0x1]
        %v335 = vld [vmem:[%s276 + $0xa4] sm:$0x1]
        %v336 = vld [vmem:[%s276 + $0xb0] sm:$0x1]
        %v337 = vld [vmem:[%s276 + $0xbc] sm:$0x1]
        %v338 = vld [vmem:[%s276] sm:$0xe]
        %v339 = vld [vmem:[%s276 + $0xc] sm:$0xe]
        %v340 = vld [vmem:[%s276 + $0x18] sm:$0xe]
        %v341 = vld [vmem:[%s276 + $0x24] sm:$0xe]
        %v342 = vld [vmem:[%s276 + $0x30] sm:$0xe]
        %v343 = vld [vmem:[%s276 + $0x3c] sm:$0xe]
        %v344 = vld [vmem:[%s276 + $0x48] sm:$0xe]
        %v345 = vld [vmem:[%s276 + $0x54] sm:$0xe]
        %v346 = vld [vmem:[%s276 + $0x60] sm:$0xe]
        %v347 = vld [vmem:[%s276 + $0x6c] sm:$0xe]
        %v348 = vld [vmem:[%s276 + $0x78] sm:$0xe]
        %v349 = vld [vmem:[%s276 + $0x84] sm:$0xe]
        %v350 = vld [vmem:[%s276 + $0x90] sm:$0xe]
        %v351 = vld [vmem:[%s276 + $0x9c] sm:$0xe]
        %v352 = vld [vmem:[%s276 + $0xa8] sm:$0xe]
        %v353 = vld [vmem:[%s276 + $0xb4] sm:$0xe]
        %v386 = vunpack.c.l.b16 %v290
        %v387 = vunpack.c.l.b16 %v291
        %v388 = vunpack.c.l.b16 %v292
        %v389 = vunpack.c.l.b16 %v293
        %v390 = vunpack.c.l.b16 %v294
        %v391 = vunpack.c.l.b16 %v295
        %v392 = vunpack.c.l.b16 %v296
        %v393 = vunpack.c.l.b16 %v297
        %v394 = vunpack.c.l.b16 %v298
        %v395 = vunpack.c.l.b16 %v299
        %v396 = vunpack.c.l.b16 %v300
        %v397 = vunpack.c.l.b16 %v301
        %v398 = vunpack.c.l.b16 %v302
        %v399 = vunpack.c.l.b16 %v303
        %v400 = vunpack.c.l.b16 %v304
        %v401 = vunpack.c.l.b16 %v305
        %v402 = vunpack.c.l.b16 %v306
        %v403 = vunpack.c.l.b16 %v307
        %v404 = vunpack.c.l.b16 %v308
        %v405 = vunpack.c.l.b16 %v309
        %v406 = vunpack.c.l.b16 %v310
        %v407 = vunpack.c.l.b16 %v311
        %v408 = vunpack.c.l.b16 %v312
        %v409 = vunpack.c.l.b16 %v313
        %v410 = vunpack.c.l.b16 %v314
        %v411 = vunpack.c.l.b16 %v315
        %v412 = vunpack.c.l.b16 %v316
        %v413 = vunpack.c.l.b16 %v317
        %v414 = vunpack.c.l.b16 %v318
        %v415 = vunpack.c.l.b16 %v319
        %v416 = vunpack.c.l.b16 %v320
        %v417 = vunpack.c.l.b16 %v321
        %v418 = vpack.c.b16 %v387, %v386
        %v419 = vpack.c.b16 %v389, %v388
        %v420 = vpack.c.b16 %v391, %v390
        %v421 = vpack.c.b16 %v393, %v392
        %v422 = vpack.c.b16 %v395, %v394
        %v423 = vpack.c.b16 %v397, %v396
        %v424 = vpack.c.b16 %v399, %v398
        %v425 = vpack.c.b16 %v401, %v400
        %v426 = vpack.c.b16 %v403, %v402
        %v427 = vpack.c.b16 %v405, %v404
        %v428 = vpack.c.b16 %v407, %v406
        %v429 = vpack.c.b16 %v409, %v408
        %v430 = vpack.c.b16 %v411, %v410
        %v431 = vpack.c.b16 %v413, %v412
        %v432 = vpack.c.b16 %v415, %v414
        %v433 = vpack.c.b16 %v417, %v416
        %v450 = vunpack.c.l.b16 %v322
        %v451 = vunpack.c.l.b16 %v323
        %v452 = vunpack.c.l.b16 %v324
        %v453 = vunpack.c.l.b16 %v325
        %v454 = vunpack.c.l.b16 %v326
        %v455 = vunpack.c.l.b16 %v327
        %v456 = vunpack.c.l.b16 %v328
        %v457 = vunpack.c.l.b16 %v329
        %v458 = vunpack.c.l.b16 %v330
        %v459 = vunpack.c.l.b16 %v331
        %v460 = vunpack.c.l.b16 %v332
        %v461 = vunpack.c.l.b16 %v333
        %v462 = vunpack.c.l.b16 %v334
        %v463 = vunpack.c.l.b16 %v335
        %v464 = vunpack.c.l.b16 %v336
        %v465 = vunpack.c.l.b16 %v337
        %v466 = vpack.c.b16 %v450, %v450
        %v467 = vpack.c.b16 %v451, %v451
        %v468 = vpack.c.b16 %v452, %v452
        %v469 = vpack.c.b16 %v453, %v453
        %v470 = vpack.c.b16 %v454, %v454
        %v471 = vpack.c.b16 %v455, %v455
        %v472 = vpack.c.b16 %v456, %v456
        %v473 = vpack.c.b16 %v457, %v457
        %v474 = vpack.c.b16 %v458, %v458
        %v475 = vpack.c.b16 %v459, %v459
        %v476 = vpack.c.b16 %v460, %v460
        %v477 = vpack.c.b16 %v461, %v461
        %v478 = vpack.c.b16 %v462, %v462
        %v479 = vpack.c.b16 %v463, %v463
        %v480 = vpack.c.b16 %v464, %v464
        %v481 = vpack.c.b16 %v465, %v465
        %vm482 = vsmask.f32 7424
        %v484 = vshrl.u32 %v418, 16
        %v486 = vshll.u32 %v418, 16
        %v488 = vrot.slane %v486, 1
        %v489 = vor.u32 %v484, %v488
        %v491 = vshll.u32 %v466, 16
        %v493 = vrot.slane %v491, 1
        %v494 = vsel %vm482, %v489, %v493
        %v496 = vshrl.u32 %v419, 16
        %v498 = vshll.u32 %v419, 16
        %v500 = vrot.slane %v498, 1
        %v501 = vor.u32 %v496, %v500
        %v503 = vshll.u32 %v467, 16
        %v505 = vrot.slane %v503, 1
        %v506 = vsel %vm482, %v501, %v505
        %v508 = vshrl.u32 %v420, 16
        %v510 = vshll.u32 %v420, 16
        %v512 = vrot.slane %v510, 1
        %v513 = vor.u32 %v508, %v512
        %v515 = vshll.u32 %v468, 16
        %v517 = vrot.slane %v515, 1
        %v518 = vsel %vm482, %v513, %v517
        %v520 = vshrl.u32 %v421, 16
        %v522 = vshll.u32 %v421, 16
        %v524 = vrot.slane %v522, 1
        %v525 = vor.u32 %v520, %v524
        %v527 = vshll.u32 %v469, 16
        %v529 = vrot.slane %v527, 1
        %v530 = vsel %vm482, %v525, %v529
        %v532 = vshrl.u32 %v422, 16
        %v534 = vshll.u32 %v422, 16
        %v536 = vrot.slane %v534, 1
        %v537 = vor.u32 %v532, %v536
        %v539 = vshll.u32 %v470, 16
        %v541 = vrot.slane %v539, 1
        %v542 = vsel %vm482, %v537, %v541
        %v544 = vshrl.u32 %v423, 16
        %v546 = vshll.u32 %v423, 16
        %v548 = vrot.slane %v546, 1
        %v549 = vor.u32 %v544, %v548
        %v551 = vshll.u32 %v471, 16
        %v553 = vrot.slane %v551, 1
        %v554 = vsel %vm482, %v549, %v553
        %v556 = vshrl.u32 %v424, 16
        %v558 = vshll.u32 %v424, 16
        %v560 = vrot.slane %v558, 1
        %v561 = vor.u32 %v556, %v560
        %v563 = vshll.u32 %v472, 16
        %v565 = vrot.slane %v563, 1
        %v566 = vsel %vm482, %v561, %v565
        %v568 = vshrl.u32 %v425, 16
        %v570 = vshll.u32 %v425, 16
        %v572 = vrot.slane %v570, 1
        %v573 = vor.u32 %v568, %v572
        %v575 = vshll.u32 %v473, 16
        %v577 = vrot.slane %v575, 1
        %v578 = vsel %vm482, %v573, %v577
        %v580 = vshrl.u32 %v426, 16
        %v582 = vshll.u32 %v426, 16
        %v584 = vrot.slane %v582, 1
        %v585 = vor.u32 %v580, %v584
        %v587 = vshll.u32 %v474, 16
        %v589 = vrot.slane %v587, 1
        %v590 = vsel %vm482, %v585, %v589
        %v592 = vshrl.u32 %v427, 16
        %v594 = vshll.u32 %v427, 16
        %v596 = vrot.slane %v594, 1
        %v597 = vor.u32 %v592, %v596
        %v599 = vshll.u32 %v475, 16
        %v601 = vrot.slane %v599, 1
        %v602 = vsel %vm482, %v597, %v601
        %v604 = vshrl.u32 %v428, 16
        %v606 = vshll.u32 %v428, 16
        %v608 = vrot.slane %v606, 1
        %v609 = vor.u32 %v604, %v608
        %v611 = vshll.u32 %v476, 16
        %v613 = vrot.slane %v611, 1
        %v614 = vsel %vm482, %v609, %v613
        %v616 = vshrl.u32 %v429, 16
        %v618 = vshll.u32 %v429, 16
        %v620 = vrot.slane %v618, 1
        %v621 = vor.u32 %v616, %v620
        %v623 = vshll.u32 %v477, 16
        %v625 = vrot.slane %v623, 1
        %v626 = vsel %vm482, %v621, %v625
        %v628 = vshrl.u32 %v430, 16
        %v630 = vshll.u32 %v430, 16
        %v632 = vrot.slane %v630, 1
        %v633 = vor.u32 %v628, %v632
        %v635 = vshll.u32 %v478, 16
        %v637 = vrot.slane %v635, 1
        %v638 = vsel %vm482, %v633, %v637
        %v640 = vshrl.u32 %v431, 16
        %v642 = vshll.u32 %v431, 16
        %v644 = vrot.slane %v642, 1
        %v645 = vor.u32 %v640, %v644
        %v647 = vshll.u32 %v479, 16
        %v649 = vrot.slane %v647, 1
        %v650 = vsel %vm482, %v645, %v649
        %v652 = vshrl.u32 %v432, 16
        %v654 = vshll.u32 %v432, 16
        %v656 = vrot.slane %v654, 1
        %v657 = vor.u32 %v652, %v656
        %v659 = vshll.u32 %v480, 16
        %v661 = vrot.slane %v659, 1
        %v662 = vsel %vm482, %v657, %v661
        %v664 = vshrl.u32 %v433, 16
        %v666 = vshll.u32 %v433, 16
        %v668 = vrot.slane %v666, 1
        %v669 = vor.u32 %v664, %v668
        %v671 = vshll.u32 %v481, 16
        %v673 = vrot.slane %v671, 1
        %v674 = vsel %vm482, %v669, %v673
        %675 = vrot.lane.b32.xlu0 %v494, 64
        %v676 = vpop.permute.xlu0 %675
        %677 = vrot.lane.b32.xlu0 %v506, 64
        %v678 = vpop.permute.xlu0 %677
        %679 = vrot.lane.b32.xlu0 %v518, 64
        %v680 = vpop.permute.xlu0 %679
        %681 = vrot.lane.b32.xlu0 %v530, 64
        %v682 = vpop.permute.xlu0 %681
        %683 = vrot.lane.b32.xlu0 %v542, 64
        %v684 = vpop.permute.xlu0 %683
        %685 = vrot.lane.b32.xlu0 %v554, 64
        %v686 = vpop.permute.xlu0 %685
        %687 = vrot.lane.b32.xlu0 %v566, 64
        %v688 = vpop.permute.xlu0 %687
        %689 = vrot.lane.b32.xlu0 %v578, 64
        %v690 = vpop.permute.xlu0 %689
        %691 = vrot.lane.b32.xlu0 %v590, 64
        %v692 = vpop.permute.xlu0 %691
        %693 = vrot.lane.b32.xlu0 %v602, 64
        %v694 = vpop.permute.xlu0 %693
        %695 = vrot.lane.b32.xlu0 %v614, 64
        %v696 = vpop.permute.xlu0 %695
        %697 = vrot.lane.b32.xlu0 %v626, 64
        %v698 = vpop.permute.xlu0 %697
        %699 = vrot.lane.b32.xlu0 %v638, 64
        %v700 = vpop.permute.xlu0 %699
        %701 = vrot.lane.b32.xlu0 %v650, 64
        %v702 = vpop.permute.xlu0 %701
        %703 = vrot.lane.b32.xlu0 %v662, 64
        %v704 = vpop.permute.xlu0 %703
        %705 = vrot.lane.b32.xlu0 %v674, 64
        %v706 = vpop.permute.xlu0 %705
        %v723 = vunpack.c.l.b16 %v338
        %v724 = vunpack.c.l.b16 %v339
        %v725 = vunpack.c.l.b16 %v340
        %v726 = vunpack.c.l.b16 %v341
        %v727 = vunpack.c.l.b16 %v342
        %v728 = vunpack.c.l.b16 %v343
        %v729 = vunpack.c.l.b16 %v344
        %v730 = vunpack.c.l.b16 %v345
        %v731 = vunpack.c.l.b16 %v346
        %v732 = vunpack.c.l.b16 %v347
        %v733 = vunpack.c.l.b16 %v348
        %v734 = vunpack.c.l.b16 %v349
        %v735 = vunpack.c.l.b16 %v350
        %v736 = vunpack.c.l.b16 %v351
        %v737 = vunpack.c.l.b16 %v352
        %v738 = vunpack.c.l.b16 %v353
        %v739 = vpack.c.b16 %v387, %v723
        %v740 = vpack.c.b16 %v389, %v724
        %v741 = vpack.c.b16 %v391, %v725
        %v742 = vpack.c.b16 %v393, %v726
        %v743 = vpack.c.b16 %v395, %v727
        %v744 = vpack.c.b16 %v397, %v728
        %v745 = vpack.c.b16 %v399, %v729
        %v746 = vpack.c.b16 %v401, %v730
        %v747 = vpack.c.b16 %v403, %v731
        %v748 = vpack.c.b16 %v405, %v732
        %v749 = vpack.c.b16 %v407, %v733
        %v750 = vpack.c.b16 %v409, %v734
        %v751 = vpack.c.b16 %v411, %v735
        %v752 = vpack.c.b16 %v413, %v736
        %v753 = vpack.c.b16 %v415, %v737
        %v754 = vpack.c.b16 %v417, %v738
        %vm755 = vcmask 1046528
        %v756 = vrot.slane %v739, 1
        %v757 = vrot.slane %v466, 1
        %v758 = vsel %vm755, %v756, %v757
        %v759 = vrot.slane %v740, 1
        %v760 = vrot.slane %v467, 1
        %v761 = vsel %vm755, %v759, %v760
        %v762 = vrot.slane %v741, 1
        %v763 = vrot.slane %v468, 1
        %v764 = vsel %vm755, %v762, %v763
        %v765 = vrot.slane %v742, 1
        %v766 = vrot.slane %v469, 1
        %v767 = vsel %vm755, %v765, %v766
        %v768 = vrot.slane %v743, 1
        %v769 = vrot.slane %v470, 1
        %v770 = vsel %vm755, %v768, %v769
        %v771 = vrot.slane %v744, 1
        %v772 = vrot.slane %v471, 1
        %v773 = vsel %vm755, %v771, %v772
        %v774 = vrot.slane %v745, 1
        %v775 = vrot.slane %v472, 1
        %v776 = vsel %vm755, %v774, %v775
        %v777 = vrot.slane %v746, 1
        %v778 = vrot.slane %v473, 1
        %v779 = vsel %vm755, %v777, %v778
        %v780 = vrot.slane %v747, 1
        %v781 = vrot.slane %v474, 1
        %v782 = vsel %vm755, %v780, %v781
        %v783 = vrot.slane %v748, 1
        %v784 = vrot.slane %v475, 1
        %v785 = vsel %vm755, %v783, %v784
        %v786 = vrot.slane %v749, 1
        %v787 = vrot.slane %v476, 1
        %v788 = vsel %vm755, %v786, %v787
        %v789 = vrot.slane %v750, 1
        %v790 = vrot.slane %v477, 1
        %v791 = vsel %vm755, %v789, %v790
        %v792 = vrot.slane %v751, 1
        %v793 = vrot.slane %v478, 1
        %v794 = vsel %vm755, %v792, %v793
        %v795 = vrot.slane %v752, 1
        %v796 = vrot.slane %v479, 1
        %v797 = vsel %vm755, %v795, %v796
        %v798 = vrot.slane %v753, 1
        %v799 = vrot.slane %v480, 1
        %v800 = vsel %vm755, %v798, %v799
        %v801 = vrot.slane %v754, 1
        %v802 = vrot.slane %v481, 1
        %v803 = vsel %vm755, %v801, %v802
        %vm804 = vcmask 523264
        %v806 = vsel %vm804, %v418, %v676
        %v809 = vsel %vm804, %v419, %v678
        %v812 = vsel %vm804, %v420, %v680
        %v815 = vsel %vm804, %v421, %v682
        %v818 = vsel %vm804, %v422, %v684
        %v821 = vsel %vm804, %v423, %v686
        %v824 = vsel %vm804, %v424, %v688
        %v827 = vsel %vm804, %v425, %v690
        %v830 = vsel %vm804, %v426, %v692
        %v833 = vsel %vm804, %v427, %v694
        %v836 = vsel %vm804, %v428, %v696
        %v839 = vsel %vm804, %v429, %v698
        %v842 = vsel %vm804, %v430, %v700
        %v845 = vsel %vm804, %v431, %v702
        %v848 = vsel %vm804, %v432, %v704
        %v851 = vsel %vm804, %v433, %v706
        %v853 = vld [vmem:[%s1] sm:$0xf]
        %v854 = vld [vmem:[%s1 + $0x4] sm:$0xf]
        %v855 = vld [vmem:[%s1 + $0x8] sm:$0xf]
        %v856 = vld [vmem:[%s1 + $0xc] sm:$0xf]
        %v857 = vld [vmem:[%s1 + $0x10] sm:$0xf]
        %v858 = vld [vmem:[%s1 + $0x14] sm:$0xf]
        %v859 = vld [vmem:[%s1 + $0x18] sm:$0xf]
        %v860 = vld [vmem:[%s1 + $0x1c] sm:$0xf]
        %v861 = vld [vmem:[%s1 + $0x20] sm:$0xf]
        %v862 = vld [vmem:[%s1 + $0x24] sm:$0xf]
        %v863 = vld [vmem:[%s1 + $0x28] sm:$0xf]
        %v864 = vld [vmem:[%s1 + $0x2c] sm:$0xf]
        %v865 = vld [vmem:[%s1 + $0x30] sm:$0xf]
        %v866 = vld [vmem:[%s1 + $0x34] sm:$0xf]
        %v867 = vld [vmem:[%s1 + $0x38] sm:$0xf]
        %v868 = vld [vmem:[%s1 + $0x3c] sm:$0xf]
        %v869 = vld [vmem:[%s1 + $0x40] sm:$0xf]
        %v870 = vld [vmem:[%s1 + $0x44] sm:$0xf]
        %v871 = vld [vmem:[%s1 + $0x48] sm:$0xf]
        %v872 = vld [vmem:[%s1 + $0x4c] sm:$0xf]
        %v873 = vld [vmem:[%s1 + $0x50] sm:$0xf]
        %v874 = vld [vmem:[%s1 + $0x54] sm:$0xf]
        %v875 = vld [vmem:[%s1 + $0x58] sm:$0xf]
        %v876 = vld [vmem:[%s1 + $0x5c] sm:$0xf]
        %s877 = scalar_lea.vmem %s276, 12
        %v878 = vld [vmem:[%s877] sm:$0xf]
        %v879 = vld [vmem:[%s877 + $0x4] sm:$0xf]
        %v880 = vld [vmem:[%s877 + $0xc] sm:$0xf]
        %v881 = vld [vmem:[%s877 + $0x10] sm:$0xf]
        %v882 = vld [vmem:[%s877 + $0x18] sm:$0xf]
        %v883 = vld [vmem:[%s877 + $0x1c] sm:$0xf]
        %v884 = vld [vmem:[%s877 + $0x24] sm:$0xf]
        %v885 = vld [vmem:[%s877 + $0x28] sm:$0xf]
        %v886 = vld [vmem:[%s877 + $0x30] sm:$0xf]
        %v887 = vld [vmem:[%s877 + $0x34] sm:$0xf]
        %v888 = vld [vmem:[%s877 + $0x3c] sm:$0xf]
        %v889 = vld [vmem:[%s877 + $0x40] sm:$0xf]
        %v890 = vld [vmem:[%s877 + $0x48] sm:$0xf]
        %v891 = vld [vmem:[%s877 + $0x4c] sm:$0xf]
        %v892 = vld [vmem:[%s877 + $0x54] sm:$0xf]
        %v893 = vld [vmem:[%s877 + $0x58] sm:$0xf]
        %v894 = vld [vmem:[%s877 + $0x60] sm:$0xf]
        %v895 = vld [vmem:[%s877 + $0x64] sm:$0xf]
        %v896 = vld [vmem:[%s877 + $0x6c] sm:$0xf]
        %v897 = vld [vmem:[%s877 + $0x70] sm:$0xf]
        %v898 = vld [vmem:[%s877 + $0x78] sm:$0xf]
        %v899 = vld [vmem:[%s877 + $0x7c] sm:$0xf]
        %v900 = vld [vmem:[%s877 + $0x84] sm:$0xf]
        %v901 = vld [vmem:[%s877 + $0x88] sm:$0xf]
        %v902 = vld [vmem:[%s877 + $0x90] sm:$0xf]
        %v903 = vld [vmem:[%s877 + $0x94] sm:$0xf]
        %v904 = vld [vmem:[%s877 + $0x9c] sm:$0xf]
        %v905 = vld [vmem:[%s877 + $0xa0] sm:$0xf]
        %v906 = vld [vmem:[%s877 + $0xa8] sm:$0xf]
        %v907 = vld [vmem:[%s877 + $0xac] sm:$0xf]
        %v908 = vld [vmem:[%s877 + $0xb4] sm:$0xf]
        %v909 = vld [vmem:[%s877 + $0xb8] sm:$0xf]
        %v910 = vld [vmem:[%s877 + $0x8] sm:$0x1]
        %v911 = vld [vmem:[%s877 + $0x14] sm:$0x1]
        %v912 = vld [vmem:[%s877 + $0x20] sm:$0x1]
        %v913 = vld [vmem:[%s877 + $0x2c] sm:$0x1]
        %v914 = vld [vmem:[%s877 + $0x38] sm:$0x1]
        %v915 = vld [vmem:[%s877 + $0x44] sm:$0x1]
        %v916 = vld [vmem:[%s877 + $0x50] sm:$0x1]
        %v917 = vld [vmem:[%s877 + $0x5c] sm:$0x1]
        %v918 = vld [vmem:[%s877 + $0x68] sm:$0x1]
        %v919 = vld [vmem:[%s877 + $0x74] sm:$0x1]
        %v920 = vld [vmem:[%s877 + $0x80] sm:$0x1]
        %v921 = vld [vmem:[%s877 + $0x8c] sm:$0x1]
        %v922 = vld [vmem:[%s877 + $0x98] sm:$0x1]
        %v923 = vld [vmem:[%s877 + $0xa4] sm:$0x1]
        %v924 = vld [vmem:[%s877 + $0xb0] sm:$0x1]
        %v925 = vld [vmem:[%s877 + $0xbc] sm:$0x1]
        %v926 = vld [vmem:[%s877] sm:$0xe]
        %v927 = vld [vmem:[%s877 + $0xc] sm:$0xe]
        %v928 = vld [vmem:[%s877 + $0x18] sm:$0xe]
        %v929 = vld [vmem:[%s877 + $0x24] sm:$0xe]
        %v930 = vld [vmem:[%s877 + $0x30] sm:$0xe]
        %v931 = vld [vmem:[%s877 + $0x3c] sm:$0xe]
        %v932 = vld [vmem:[%s877 + $0x48] sm:$0xe]
        %v933 = vld [vmem:[%s877 + $0x54] sm:$0xe]
        %v934 = vld [vmem:[%s877 + $0x60] sm:$0xe]
        %v935 = vld [vmem:[%s877 + $0x6c] sm:$0xe]
        %v936 = vld [vmem:[%s877 + $0x78] sm:$0xe]
        %v937 = vld [vmem:[%s877 + $0x84] sm:$0xe]
        %v938 = vld [vmem:[%s877 + $0x90] sm:$0xe]
        %v939 = vld [vmem:[%s877 + $0x9c] sm:$0xe]
        %v940 = vld [vmem:[%s877 + $0xa8] sm:$0xe]
        %v941 = vld [vmem:[%s877 + $0xb4] sm:$0xe]
        %v974 = vunpack.c.l.b16 %v878
        %v975 = vunpack.c.l.b16 %v879
        %v976 = vunpack.c.l.b16 %v880
        %v977 = vunpack.c.l.b16 %v881
        %v978 = vunpack.c.l.b16 %v882
        %v979 = vunpack.c.l.b16 %v883
        %v980 = vunpack.c.l.b16 %v884
        %v981 = vunpack.c.l.b16 %v885
        %v982 = vunpack.c.l.b16 %v886
        %v983 = vunpack.c.l.b16 %v887
        %v984 = vunpack.c.l.b16 %v888
        %v985 = vunpack.c.l.b16 %v889
        %v986 = vunpack.c.l.b16 %v890
        %v987 = vunpack.c.l.b16 %v891
        %v988 = vunpack.c.l.b16 %v892
        %v989 = vunpack.c.l.b16 %v893
        %v990 = vunpack.c.l.b16 %v894
        %v991 = vunpack.c.l.b16 %v895
        %v992 = vunpack.c.l.b16 %v896
        %v993 = vunpack.c.l.b16 %v897
        %v994 = vunpack.c.l.b16 %v898
        %v995 = vunpack.c.l.b16 %v899
        %v996 = vunpack.c.l.b16 %v900
        %v997 = vunpack.c.l.b16 %v901
        %v998 = vunpack.c.l.b16 %v902
        %v999 = vunpack.c.l.b16 %v903
        %v1000 = vunpack.c.l.b16 %v904
        %v1001 = vunpack.c.l.b16 %v905
        %v1002 = vunpack.c.l.b16 %v906
        %v1003 = vunpack.c.l.b16 %v907
        %v1004 = vunpack.c.l.b16 %v908
        %v1005 = vunpack.c.l.b16 %v909
        %v1006 = vpack.c.b16 %v975, %v974
        %v1007 = vpack.c.b16 %v977, %v976
        %v1008 = vpack.c.b16 %v979, %v978
        %v1009 = vpack.c.b16 %v981, %v980
        %v1010 = vpack.c.b16 %v983, %v982
        %v1011 = vpack.c.b16 %v985, %v984
        %v1012 = vpack.c.b16 %v987, %v986
        %v1013 = vpack.c.b16 %v989, %v988
        %v1014 = vpack.c.b16 %v991, %v990
        %v1015 = vpack.c.b16 %v993, %v992
        %v1016 = vpack.c.b16 %v995, %v994
        %v1017 = vpack.c.b16 %v997, %v996
        %v1018 = vpack.c.b16 %v999, %v998
        %v1019 = vpack.c.b16 %v1001, %v1000
        %v1020 = vpack.c.b16 %v1003, %v1002
        %v1021 = vpack.c.b16 %v1005, %v1004
        %v1038 = vunpack.c.l.b16 %v910
        %v1039 = vunpack.c.l.b16 %v911
        %v1040 = vunpack.c.l.b16 %v912
        %v1041 = vunpack.c.l.b16 %v913
        %v1042 = vunpack.c.l.b16 %v914
        %v1043 = vunpack.c.l.b16 %v915
        %v1044 = vunpack.c.l.b16 %v916
        %v1045 = vunpack.c.l.b16 %v917
        %v1046 = vunpack.c.l.b16 %v918
        %v1047 = vunpack.c.l.b16 %v919
        %v1048 = vunpack.c.l.b16 %v920
        %v1049 = vunpack.c.l.b16 %v921
        %v1050 = vunpack.c.l.b16 %v922
        %v1051 = vunpack.c.l.b16 %v923
        %v1052 = vunpack.c.l.b16 %v924
        %v1053 = vunpack.c.l.b16 %v925
        %v1054 = vpack.c.b16 %v1038, %v1038
        %v1055 = vpack.c.b16 %v1039, %v1039
        %v1056 = vpack.c.b16 %v1040, %v1040
        %v1057 = vpack.c.b16 %v1041, %v1041
        %v1058 = vpack.c.b16 %v1042, %v1042
        %v1059 = vpack.c.b16 %v1043, %v1043
        %v1060 = vpack.c.b16 %v1044, %v1044
        %v1061 = vpack.c.b16 %v1045, %v1045
        %v1062 = vpack.c.b16 %v1046, %v1046
        %v1063 = vpack.c.b16 %v1047, %v1047
        %v1064 = vpack.c.b16 %v1048, %v1048
        %v1065 = vpack.c.b16 %v1049, %v1049
        %v1066 = vpack.c.b16 %v1050, %v1050
        %v1067 = vpack.c.b16 %v1051, %v1051
        %v1068 = vpack.c.b16 %v1052, %v1052
        %v1069 = vpack.c.b16 %v1053, %v1053
        %v1071 = vshrl.u32 %v1006, 16
        %v1073 = vshll.u32 %v1006, 16
        %v1075 = vrot.slane %v1073, 1
        %v1076 = vor.u32 %v1071, %v1075
        %v1078 = vshll.u32 %v1054, 16
        %v1080 = vrot.slane %v1078, 1
        %v1081 = vsel %vm482, %v1076, %v1080
        %v1083 = vshrl.u32 %v1007, 16
        %v1085 = vshll.u32 %v1007, 16
        %v1087 = vrot.slane %v1085, 1
        %v1088 = vor.u32 %v1083, %v1087
        %v1090 = vshll.u32 %v1055, 16
        %v1092 = vrot.slane %v1090, 1
        %v1093 = vsel %vm482, %v1088, %v1092
        %v1095 = vshrl.u32 %v1008, 16
        %v1097 = vshll.u32 %v1008, 16
        %v1099 = vrot.slane %v1097, 1
        %v1100 = vor.u32 %v1095, %v1099
        %v1102 = vshll.u32 %v1056, 16
        %v1104 = vrot.slane %v1102, 1
        %v1105 = vsel %vm482, %v1100, %v1104
        %v1107 = vshrl.u32 %v1009, 16
        %v1109 = vshll.u32 %v1009, 16
        %v1111 = vrot.slane %v1109, 1
        %v1112 = vor.u32 %v1107, %v1111
        %v1114 = vshll.u32 %v1057, 16
        %v1116 = vrot.slane %v1114, 1
        %v1117 = vsel %vm482, %v1112, %v1116
        %v1119 = vshrl.u32 %v1010, 16
        %v1121 = vshll.u32 %v1010, 16
        %v1123 = vrot.slane %v1121, 1
        %v1124 = vor.u32 %v1119, %v1123
        %v1126 = vshll.u32 %v1058, 16
        %v1128 = vrot.slane %v1126, 1
        %v1129 = vsel %vm482, %v1124, %v1128
        %v1131 = vshrl.u32 %v1011, 16
        %v1133 = vshll.u32 %v1011, 16
        %v1135 = vrot.slane %v1133, 1
        %v1136 = vor.u32 %v1131, %v1135
        %v1138 = vshll.u32 %v1059, 16
        %v1140 = vrot.slane %v1138, 1
        %v1141 = vsel %vm482, %v1136, %v1140
        %v1143 = vshrl.u32 %v1012, 16
        %v1145 = vshll.u32 %v1012, 16
        %v1147 = vrot.slane %v1145, 1
        %v1148 = vor.u32 %v1143, %v1147
        %v1150 = vshll.u32 %v1060, 16
        %v1152 = vrot.slane %v1150, 1
        %v1153 = vsel %vm482, %v1148, %v1152
        %v1155 = vshrl.u32 %v1013, 16
        %v1157 = vshll.u32 %v1013, 16
        %v1159 = vrot.slane %v1157, 1
        %v1160 = vor.u32 %v1155, %v1159
        %v1162 = vshll.u32 %v1061, 16
        %v1164 = vrot.slane %v1162, 1
        %v1165 = vsel %vm482, %v1160, %v1164
        %v1167 = vshrl.u32 %v1014, 16
        %v1169 = vshll.u32 %v1014, 16
        %v1171 = vrot.slane %v1169, 1
        %v1172 = vor.u32 %v1167, %v1171
        %v1174 = vshll.u32 %v1062, 16
        %v1176 = vrot.slane %v1174, 1
        %v1177 = vsel %vm482, %v1172, %v1176
        %v1179 = vshrl.u32 %v1015, 16
        %v1181 = vshll.u32 %v1015, 16
        %v1183 = vrot.slane %v1181, 1
        %v1184 = vor.u32 %v1179, %v1183
        %v1186 = vshll.u32 %v1063, 16
        %v1188 = vrot.slane %v1186, 1
        %v1189 = vsel %vm482, %v1184, %v1188
        %v1191 = vshrl.u32 %v1016, 16
        %v1193 = vshll.u32 %v1016, 16
        %v1195 = vrot.slane %v1193, 1
        %v1196 = vor.u32 %v1191, %v1195
        %v1198 = vshll.u32 %v1064, 16
        %v1200 = vrot.slane %v1198, 1
        %v1201 = vsel %vm482, %v1196, %v1200
        %v1203 = vshrl.u32 %v1017, 16
        %v1205 = vshll.u32 %v1017, 16
        %v1207 = vrot.slane %v1205, 1
        %v1208 = vor.u32 %v1203, %v1207
        %v1210 = vshll.u32 %v1065, 16
        %v1212 = vrot.slane %v1210, 1
        %v1213 = vsel %vm482, %v1208, %v1212
        %v1215 = vshrl.u32 %v1018, 16
        %v1217 = vshll.u32 %v1018, 16
        %v1219 = vrot.slane %v1217, 1
        %v1220 = vor.u32 %v1215, %v1219
        %v1222 = vshll.u32 %v1066, 16
        %v1224 = vrot.slane %v1222, 1
        %v1225 = vsel %vm482, %v1220, %v1224
        %v1227 = vshrl.u32 %v1019, 16
        %v1229 = vshll.u32 %v1019, 16
        %v1231 = vrot.slane %v1229, 1
        %v1232 = vor.u32 %v1227, %v1231
        %v1234 = vshll.u32 %v1067, 16
        %v1236 = vrot.slane %v1234, 1
        %v1237 = vsel %vm482, %v1232, %v1236
        %v1239 = vshrl.u32 %v1020, 16
        %v1241 = vshll.u32 %v1020, 16
        %v1243 = vrot.slane %v1241, 1
        %v1244 = vor.u32 %v1239, %v1243
        %v1246 = vshll.u32 %v1068, 16
        %v1248 = vrot.slane %v1246, 1
        %v1249 = vsel %vm482, %v1244, %v1248
        %v1251 = vshrl.u32 %v1021, 16
        %v1253 = vshll.u32 %v1021, 16
        %v1255 = vrot.slane %v1253, 1
        %v1256 = vor.u32 %v1251, %v1255
        %v1258 = vshll.u32 %v1069, 16
        %v1260 = vrot.slane %v1258, 1
        %v1261 = vsel %vm482, %v1256, %v1260
        %1262 = vrot.lane.b32.xlu0 %v1081, 64
        %v1263 = vpop.permute.xlu0 %1262
        %1264 = vrot.lane.b32.xlu0 %v1093, 64
        %v1265 = vpop.permute.xlu0 %1264
        %1266 = vrot.lane.b32.xlu0 %v1105, 64
        %v1267 = vpop.permute.xlu0 %1266
        %1268 = vrot.lane.b32.xlu0 %v1117, 64
        %v1269 = vpop.permute.xlu0 %1268
        %1270 = vrot.lane.b32.xlu0 %v1129, 64
        %v1271 = vpop.permute.xlu0 %1270
        %1272 = vrot.lane.b32.xlu0 %v1141, 64
        %v1273 = vpop.permute.xlu0 %1272
        %1274 = vrot.lane.b32.xlu0 %v1153, 64
        %v1275 = vpop.permute.xlu0 %1274
        %1276 = vrot.lane.b32.xlu0 %v1165, 64
        %v1277 = vpop.permute.xlu0 %1276
        %1278 = vrot.lane.b32.xlu0 %v1177, 64
        %v1279 = vpop.permute.xlu0 %1278
        %1280 = vrot.lane.b32.xlu0 %v1189, 64
        %v1281 = vpop.permute.xlu0 %1280
        %1282 = vrot.lane.b32.xlu0 %v1201, 64
        %v1283 = vpop.permute.xlu0 %1282
        %1284 = vrot.lane.b32.xlu0 %v1213, 64
        %v1285 = vpop.permute.xlu0 %1284
        %1286 = vrot.lane.b32.xlu0 %v1225, 64
        %v1287 = vpop.permute.xlu0 %1286
        %1288 = vrot.lane.b32.xlu0 %v1237, 64
        %v1289 = vpop.permute.xlu0 %1288
        %1290 = vrot.lane.b32.xlu0 %v1249, 64
        %v1291 = vpop.permute.xlu0 %1290
        %1292 = vrot.lane.b32.xlu0 %v1261, 64
        %v1293 = vpop.permute.xlu0 %1292
        %v1310 = vunpack.c.l.b16 %v926
        %v1311 = vunpack.c.l.b16 %v927
        %v1312 = vunpack.c.l.b16 %v928
        %v1313 = vunpack.c.l.b16 %v929
        %v1314 = vunpack.c.l.b16 %v930
        %v1315 = vunpack.c.l.b16 %v931
        %v1316 = vunpack.c.l.b16 %v932
        %v1317 = vunpack.c.l.b16 %v933
        %v1318 = vunpack.c.l.b16 %v934
        %v1319 = vunpack.c.l.b16 %v935
        %v1320 = vunpack.c.l.b16 %v936
        %v1321 = vunpack.c.l.b16 %v937
        %v1322 = vunpack.c.l.b16 %v938
        %v1323 = vunpack.c.l.b16 %v939
        %v1324 = vunpack.c.l.b16 %v940
        %v1325 = vunpack.c.l.b16 %v941
        %v1326 = vpack.c.b16 %v975, %v1310
        %v1327 = vpack.c.b16 %v977, %v1311
        %v1328 = vpack.c.b16 %v979, %v1312
        %v1329 = vpack.c.b16 %v981, %v1313
        %v1330 = vpack.c.b16 %v983, %v1314
        %v1331 = vpack.c.b16 %v985, %v1315
        %v1332 = vpack.c.b16 %v987, %v1316
        %v1333 = vpack.c.b16 %v989, %v1317
        %v1334 = vpack.c.b16 %v991, %v1318
        %v1335 = vpack.c.b16 %v993, %v1319
        %v1336 = vpack.c.b16 %v995, %v1320
        %v1337 = vpack.c.b16 %v997, %v1321
        %v1338 = vpack.c.b16 %v999, %v1322
        %v1339 = vpack.c.b16 %v1001, %v1323
        %v1340 = vpack.c.b16 %v1003, %v1324
        %v1341 = vpack.c.b16 %v1005, %v1325
        %v1342 = vrot.slane %v1326, 1
        %v1343 = vrot.slane %v1054, 1
        %v1344 = vsel %vm755, %v1342, %v1343
        %v1345 = vrot.slane %v1327, 1
        %v1346 = vrot.slane %v1055, 1
        %v1347 = vsel %vm755, %v1345, %v1346
        %v1348 = vrot.slane %v1328, 1
        %v1349 = vrot.slane %v1056, 1
        %v1350 = vsel %vm755, %v1348, %v1349
        %v1351 = vrot.slane %v1329, 1
        %v1352 = vrot.slane %v1057, 1
        %v1353 = vsel %vm755, %v1351, %v1352
        %v1354 = vrot.slane %v1330, 1
        %v1355 = vrot.slane %v1058, 1
        %v1356 = vsel %vm755, %v1354, %v1355
        %v1357 = vrot.slane %v1331, 1
        %v1358 = vrot.slane %v1059, 1
        %v1359 = vsel %vm755, %v1357, %v1358
        %v1360 = vrot.slane %v1332, 1
        %v1361 = vrot.slane %v1060, 1
        %v1362 = vsel %vm755, %v1360, %v1361
        %v1363 = vrot.slane %v1333, 1
        %v1364 = vrot.slane %v1061, 1
        %v1365 = vsel %vm755, %v1363, %v1364
        %v1366 = vrot.slane %v1334, 1
        %v1367 = vrot.slane %v1062, 1
        %v1368 = vsel %vm755, %v1366, %v1367
        %v1369 = vrot.slane %v1335, 1
        %v1370 = vrot.slane %v1063, 1
        %v1371 = vsel %vm755, %v1369, %v1370
        %v1372 = vrot.slane %v1336, 1
        %v1373 = vrot.slane %v1064, 1
        %v1374 = vsel %vm755, %v1372, %v1373
        %v1375 = vrot.slane %v1337, 1
        %v1376 = vrot.slane %v1065, 1
        %v1377 = vsel %vm755, %v1375, %v1376
        %v1378 = vrot.slane %v1338, 1
        %v1379 = vrot.slane %v1066, 1
        %v1380 = vsel %vm755, %v1378, %v1379
        %v1381 = vrot.slane %v1339, 1
        %v1382 = vrot.slane %v1067, 1
        %v1383 = vsel %vm755, %v1381, %v1382
        %v1384 = vrot.slane %v1340, 1
        %v1385 = vrot.slane %v1068, 1
        %v1386 = vsel %vm755, %v1384, %v1385
        %v1387 = vrot.slane %v1341, 1
        %v1388 = vrot.slane %v1069, 1
        %v1389 = vsel %vm755, %v1387, %v1388
        %v1391 = vsel %vm804, %v1006, %v1263
        %v1394 = vsel %vm804, %v1007, %v1265
        %v1397 = vsel %vm804, %v1008, %v1267
        %v1400 = vsel %vm804, %v1009, %v1269
        %v1403 = vsel %vm804, %v1010, %v1271
        %v1406 = vsel %vm804, %v1011, %v1273
        %v1409 = vsel %vm804, %v1012, %v1275
        %v1412 = vsel %vm804, %v1013, %v1277
        %v1415 = vsel %vm804, %v1014, %v1279
        %v1418 = vsel %vm804, %v1015, %v1281
        %v1421 = vsel %vm804, %v1016, %v1283
        %v1424 = vsel %vm804, %v1017, %v1285
        %v1427 = vsel %vm804, %v1018, %v1287
        %v1430 = vsel %vm804, %v1019, %v1289
        %v1433 = vsel %vm804, %v1020, %v1291
        %v1436 = vsel %vm804, %v1021, %v1293
        %s1438 = scalar_lea.vmem %s1, 96
        %v1439 = vld [vmem:[%s1438] sm:$0xf]
        %v1440 = vld [vmem:[%s1438 + $0x4] sm:$0xf]
        %v1441 = vld [vmem:[%s1438 + $0x8] sm:$0xf]
        %v1442 = vld [vmem:[%s1438 + $0xc] sm:$0xf]
        %v1443 = vld [vmem:[%s1438 + $0x10] sm:$0xf]
        %v1444 = vld [vmem:[%s1438 + $0x14] sm:$0xf]
        %v1445 = vld [vmem:[%s1438 + $0x18] sm:$0xf]
        %v1446 = vld [vmem:[%s1438 + $0x1c] sm:$0xf]
        %v1447 = vld [vmem:[%s1438 + $0x20] sm:$0xf]
        %v1448 = vld [vmem:[%s1438 + $0x24] sm:$0xf]
        %v1449 = vld [vmem:[%s1438 + $0x28] sm:$0xf]
        %v1450 = vld [vmem:[%s1438 + $0x2c] sm:$0xf]
        %v1451 = vld [vmem:[%s1438 + $0x30] sm:$0xf]
        %v1452 = vld [vmem:[%s1438 + $0x34] sm:$0xf]
        %v1453 = vld [vmem:[%s1438 + $0x38] sm:$0xf]
        %v1454 = vld [vmem:[%s1438 + $0x3c] sm:$0xf]
        %v1455 = vld [vmem:[%s1438 + $0x40] sm:$0xf]
        %v1456 = vld [vmem:[%s1438 + $0x44] sm:$0xf]
        %v1457 = vld [vmem:[%s1438 + $0x48] sm:$0xf]
        %v1458 = vld [vmem:[%s1438 + $0x4c] sm:$0xf]
        %v1459 = vld [vmem:[%s1438 + $0x50] sm:$0xf]
        %v1460 = vld [vmem:[%s1438 + $0x54] sm:$0xf]
        %v1461 = vld [vmem:[%s1438 + $0x58] sm:$0xf]
        %v1462 = vld [vmem:[%s1438 + $0x5c] sm:$0xf]
        %v1487 = vunpack.c.l.b16 %v1439
        %v1488 = vunpack.c.l.b16 %v1440
        %v1489 = vunpack.c.l.b16 %v1441
        %v1490 = vunpack.c.l.b16 %v1442
        %v1491 = vunpack.c.l.b16 %v1443
        %v1492 = vunpack.c.l.b16 %v1444
        %v1493 = vunpack.c.l.b16 %v1445
        %v1494 = vunpack.c.l.b16 %v1446
        %v1495 = vunpack.c.l.b16 %v1447
        %v1496 = vunpack.c.l.b16 %v1448
        %v1497 = vunpack.c.l.b16 %v1449
        %v1498 = vunpack.c.l.b16 %v1450
        %v1499 = vunpack.c.l.b16 %v1451
        %v1500 = vunpack.c.l.b16 %v1452
        %v1501 = vunpack.c.l.b16 %v1453
        %v1502 = vunpack.c.l.b16 %v1454
        %v1503 = vunpack.c.l.b16 %v1455
        %v1504 = vunpack.c.l.b16 %v1456
        %v1505 = vunpack.c.l.b16 %v1457
        %v1506 = vunpack.c.l.b16 %v1458
        %v1507 = vunpack.c.l.b16 %v1459
        %v1508 = vunpack.c.l.b16 %v1460
        %v1509 = vunpack.c.l.b16 %v1461
        %v1510 = vunpack.c.l.b16 %v1462
        %v1511 = vpack.c.b16 %v1488, %v1487
        %v1512 = vpack.c.b16 %v1490, %v1489
        %v1513 = vpack.c.b16 %v1492, %v1491
        %v1514 = vpack.c.b16 %v1494, %v1493
        %v1515 = vpack.c.b16 %v1496, %v1495
        %v1516 = vpack.c.b16 %v1498, %v1497
        %v1517 = vpack.c.b16 %v1500, %v1499
        %v1518 = vpack.c.b16 %v1502, %v1501
        %v1519 = vpack.c.b16 %v1504, %v1503
        %v1520 = vpack.c.b16 %v1506, %v1505
        %v1521 = vpack.c.b16 %v1508, %v1507
        %v1522 = vpack.c.b16 %v1510, %v1509
        %v1536 = vsel %vm804, %v1344, 0
        %v1539 = vsel %vm804, %v1347, 0
        %v1542 = vsel %vm804, %v1350, 0
        %v1545 = vsel %vm804, %v1353, 0
        %v1548 = vsel %vm804, %v1356, 0
        %v1551 = vsel %vm804, %v1359, 0
        %v1554 = vsel %vm804, %v1362, 0
        %v1557 = vsel %vm804, %v1365, 0
        %v1560 = vsel %vm804, %v1368, 0
        %v1563 = vsel %vm804, %v1371, 0
        %v1566 = vsel %vm804, %v1374, 0
        %v1569 = vsel %vm804, %v1377, 0
        %v1572 = vsel %vm804, %v1380, 0
        %v1575 = vsel %vm804, %v1383, 0
        %v1578 = vsel %vm804, %v1386, 0
        %v1581 = vsel %vm804, %v1389, 0
        %1583 = vmatpush.bf16.msra.mxu0 %v1518
        %1584 = vmatpush.bf16.msra.mxu0 %v1517
        %1585 = vmatpush.bf16.msra.mxu0 %v1516
        %1586 = vmatpush.bf16.msra.mxu0 %v1515
        %1587 = vmatpush.bf16.msra.mxu0 %v1514
        %1588 = vmatpush.bf16.msra.mxu0 %v1513
        %1589 = vmatpush.bf16.msra.mxu0 %v1512
        %1590 = vmatpush.bf16.msra.mxu0 %v1511
        %1591 = vmatmul.bf16.gmra.mxu0 %v1391
        %v1592 = vpop.f32.mrf.mxu0
        %v1593 = vadd.f32 0.0, %v1592
        %v1594 = vpop.f32.mrf.mxu0
        %v1595 = vadd.f32 0.0, %v1594
        %1596 = vmatmul.bf16.gmra.mxu0 %v1394
        %v1597 = vpop.f32.mrf.mxu0
        %v1598 = vadd.f32 0.0, %v1597
        %v1599 = vpop.f32.mrf.mxu0
        %v1600 = vadd.f32 0.0, %v1599
        %1601 = vmatmul.bf16.gmra.mxu0 %v1397
        %v1602 = vpop.f32.mrf.mxu0
        %v1603 = vadd.f32 0.0, %v1602
        %v1604 = vpop.f32.mrf.mxu0
        %v1605 = vadd.f32 0.0, %v1604
        %1606 = vmatmul.bf16.gmra.mxu0 %v1400
        %v1607 = vpop.f32.mrf.mxu0
        %v1608 = vadd.f32 0.0, %v1607
        %v1609 = vpop.f32.mrf.mxu0
        %v1610 = vadd.f32 0.0, %v1609
        %1611 = vmatmul.bf16.gmra.mxu0 %v1403
        %v1612 = vpop.f32.mrf.mxu0
        %v1613 = vadd.f32 0.0, %v1612
        %v1614 = vpop.f32.mrf.mxu0
        %v1615 = vadd.f32 0.0, %v1614
        %1616 = vmatmul.bf16.gmra.mxu0 %v1406
        %v1617 = vpop.f32.mrf.mxu0
        %v1618 = vadd.f32 0.0, %v1617
        %v1619 = vpop.f32.mrf.mxu0
        %v1620 = vadd.f32 0.0, %v1619
        %1621 = vmatmul.bf16.gmra.mxu0 %v1409
        %v1622 = vpop.f32.mrf.mxu0
        %v1623 = vadd.f32 0.0, %v1622
        %v1624 = vpop.f32.mrf.mxu0
        %v1625 = vadd.f32 0.0, %v1624
        %1626 = vmatmul.bf16.gmra.mxu0 %v1412
        %v1627 = vpop.f32.mrf.mxu0
        %v1628 = vadd.f32 0.0, %v1627
        %v1629 = vpop.f32.mrf.mxu0
        %v1630 = vadd.f32 0.0, %v1629
        %1631 = vmatmul.bf16.gmra.mxu0 %v1415
        %v1632 = vpop.f32.mrf.mxu0
        %v1633 = vadd.f32 0.0, %v1632
        %v1634 = vpop.f32.mrf.mxu0
        %v1635 = vadd.f32 0.0, %v1634
        %1636 = vmatmul.bf16.gmra.mxu0 %v1418
        %v1637 = vpop.f32.mrf.mxu0
        %v1638 = vadd.f32 0.0, %v1637
        %v1639 = vpop.f32.mrf.mxu0
        %v1640 = vadd.f32 0.0, %v1639
        %1641 = vmatmul.bf16.gmra.mxu0 %v1421
        %v1642 = vpop.f32.mrf.mxu0
        %v1643 = vadd.f32 0.0, %v1642
        %v1644 = vpop.f32.mrf.mxu0
        %v1645 = vadd.f32 0.0, %v1644
        %1646 = vmatmul.bf16.gmra.mxu0 %v1424
        %v1647 = vpop.f32.mrf.mxu0
        %v1648 = vadd.f32 0.0, %v1647
        %v1649 = vpop.f32.mrf.mxu0
        %v1650 = vadd.f32 0.0, %v1649
        %1651 = vmatmul.bf16.gmra.mxu0 %v1427
        %v1652 = vpop.f32.mrf.mxu0
        %v1653 = vadd.f32 0.0, %v1652
        %v1654 = vpop.f32.mrf.mxu0
        %v1655 = vadd.f32 0.0, %v1654
        %1656 = vmatmul.bf16.gmra.mxu0 %v1430
        %v1657 = vpop.f32.mrf.mxu0
        %v1658 = vadd.f32 0.0, %v1657
        %v1659 = vpop.f32.mrf.mxu0
        %v1660 = vadd.f32 0.0, %v1659
        %1661 = vmatmul.bf16.gmra.mxu0 %v1433
        %v1662 = vpop.f32.mrf.mxu0
        %v1663 = vadd.f32 0.0, %v1662
        %v1664 = vpop.f32.mrf.mxu0
        %v1665 = vadd.f32 0.0, %v1664
        %1666 = vmatmul.bf16.gmra.mxu0 %v1436
        %v1667 = vpop.f32.mrf.mxu0
        %v1668 = vadd.f32 0.0, %v1667
        %v1669 = vpop.f32.mrf.mxu0
        %v1670 = vadd.f32 0.0, %v1669
        %1671 = vdwg.mxu0
        %1672 = vmatpush.bf16.msra.mxu0 0
        %1673 = vmatpush.bf16.msra.mxu0 0
        %1674 = vmatpush.bf16.msra.mxu0 0
        %1675 = vmatpush.bf16.msra.mxu0 0
        %1676 = vmatpush.bf16.msra.mxu0 %v1522
        %1677 = vmatpush.bf16.msra.mxu0 %v1521
        %1678 = vmatpush.bf16.msra.mxu0 %v1520
        %1679 = vmatpush.bf16.msra.mxu0 %v1519
        %1680 = vmatmul.bf16.gmra.mxu0 %v1536
        %v1681 = vpop.f32.mrf.mxu0
        %v1682 = vadd.f32 %v1593, %v1681
        %v1683 = vpop.f32.mrf.mxu0
        %v1684 = vadd.f32 %v1595, %v1683
        %1685 = vmatmul.bf16.gmra.mxu0 %v1539
        %v1686 = vpop.f32.mrf.mxu0
        %v1687 = vadd.f32 %v1598, %v1686
        %v1688 = vpop.f32.mrf.mxu0
        %v1689 = vadd.f32 %v1600, %v1688
        %1690 = vmatmul.bf16.gmra.mxu0 %v1542
        %v1691 = vpop.f32.mrf.mxu0
        %v1692 = vadd.f32 %v1603, %v1691
        %v1693 = vpop.f32.mrf.mxu0
        %v1694 = vadd.f32 %v1605, %v1693
        %1695 = vmatmul.bf16.gmra.mxu0 %v1545
        %v1696 = vpop.f32.mrf.mxu0
        %v1697 = vadd.f32 %v1608, %v1696
        %v1698 = vpop.f32.mrf.mxu0
        %v1699 = vadd.f32 %v1610, %v1698
        %1700 = vmatmul.bf16.gmra.mxu0 %v1548
        %v1701 = vpop.f32.mrf.mxu0
        %v1702 = vadd.f32 %v1613, %v1701
        %v1703 = vpop.f32.mrf.mxu0
        %v1704 = vadd.f32 %v1615, %v1703
        %1705 = vmatmul.bf16.gmra.mxu0 %v1551
        %v1706 = vpop.f32.mrf.mxu0
        %v1707 = vadd.f32 %v1618, %v1706
        %v1708 = vpop.f32.mrf.mxu0
        %v1709 = vadd.f32 %v1620, %v1708
        %1710 = vmatmul.bf16.gmra.mxu0 %v1554
        %v1711 = vpop.f32.mrf.mxu0
        %v1712 = vadd.f32 %v1623, %v1711
        %v1713 = vpop.f32.mrf.mxu0
        %v1714 = vadd.f32 %v1625, %v1713
        %1715 = vmatmul.bf16.gmra.mxu0 %v1557
        %v1716 = vpop.f32.mrf.mxu0
        %v1717 = vadd.f32 %v1628, %v1716
        %v1718 = vpop.f32.mrf.mxu0
        %v1719 = vadd.f32 %v1630, %v1718
        %1720 = vmatmul.bf16.gmra.mxu0 %v1560
        %v1721 = vpop.f32.mrf.mxu0
        %v1722 = vadd.f32 %v1633, %v1721
        %v1723 = vpop.f32.mrf.mxu0
        %v1724 = vadd.f32 %v1635, %v1723
        %1725 = vmatmul.bf16.gmra.mxu0 %v1563
        %v1726 = vpop.f32.mrf.mxu0
        %v1727 = vadd.f32 %v1638, %v1726
        %v1728 = vpop.f32.mrf.mxu0
        %v1729 = vadd.f32 %v1640, %v1728
        %1730 = vmatmul.bf16.gmra.mxu0 %v1566
        %v1731 = vpop.f32.mrf.mxu0
        %v1732 = vadd.f32 %v1643, %v1731
        %v1733 = vpop.f32.mrf.mxu0
        %v1734 = vadd.f32 %v1645, %v1733
        %1735 = vmatmul.bf16.gmra.mxu0 %v1569
        %v1736 = vpop.f32.mrf.mxu0
        %v1737 = vadd.f32 %v1648, %v1736
        %v1738 = vpop.f32.mrf.mxu0
        %v1739 = vadd.f32 %v1650, %v1738
        %1740 = vmatmul.bf16.gmra.mxu0 %v1572
        %v1741 = vpop.f32.mrf.mxu0
        %v1742 = vadd.f32 %v1653, %v1741
        %v1743 = vpop.f32.mrf.mxu0
        %v1744 = vadd.f32 %v1655, %v1743
        %1745 = vmatmul.bf16.gmra.mxu0 %v1575
        %v1746 = vpop.f32.mrf.mxu0
        %v1747 = vadd.f32 %v1658, %v1746
        %v1748 = vpop.f32.mrf.mxu0
        %v1749 = vadd.f32 %v1660, %v1748
        %1750 = vmatmul.bf16.gmra.mxu0 %v1578
        %v1751 = vpop.f32.mrf.mxu0
        %v1752 = vadd.f32 %v1663, %v1751
        %v1753 = vpop.f32.mrf.mxu0
        %v1754 = vadd.f32 %v1665, %v1753
        %1755 = vmatmul.bf16.gmra.mxu0 %v1581
        %v1756 = vpop.f32.mrf.mxu0
        %v1757 = vadd.f32 %v1668, %v1756
        %v1758 = vpop.f32.mrf.mxu0
        %v1759 = vadd.f32 %v1670, %v1758
        %1760 = vdwg.mxu0
        %v1785 = vunpack.c.l.b16 %v853
        %v1786 = vunpack.c.l.b16 %v854
        %v1787 = vunpack.c.l.b16 %v855
        %v1788 = vunpack.c.l.b16 %v856
        %v1789 = vunpack.c.l.b16 %v857
        %v1790 = vunpack.c.l.b16 %v858
        %v1791 = vunpack.c.l.b16 %v859
        %v1792 = vunpack.c.l.b16 %v860
        %v1793 = vunpack.c.l.b16 %v861
        %v1794 = vunpack.c.l.b16 %v862
        %v1795 = vunpack.c.l.b16 %v863
        %v1796 = vunpack.c.l.b16 %v864
        %v1797 = vunpack.c.l.b16 %v865
        %v1798 = vunpack.c.l.b16 %v866
        %v1799 = vunpack.c.l.b16 %v867
        %v1800 = vunpack.c.l.b16 %v868
        %v1801 = vunpack.c.l.b16 %v869
        %v1802 = vunpack.c.l.b16 %v870
        %v1803 = vunpack.c.l.b16 %v871
        %v1804 = vunpack.c.l.b16 %v872
        %v1805 = vunpack.c.l.b16 %v873
        %v1806 = vunpack.c.l.b16 %v874
        %v1807 = vunpack.c.l.b16 %v875
        %v1808 = vunpack.c.l.b16 %v876
        %v1809 = vpack.c.b16 %v1786, %v1785
        %v1810 = vpack.c.b16 %v1788, %v1787
        %v1811 = vpack.c.b16 %v1790, %v1789
        %v1812 = vpack.c.b16 %v1792, %v1791
        %v1813 = vpack.c.b16 %v1794, %v1793
        %v1814 = vpack.c.b16 %v1796, %v1795
        %v1815 = vpack.c.b16 %v1798, %v1797
        %v1816 = vpack.c.b16 %v1800, %v1799
        %v1817 = vpack.c.b16 %v1802, %v1801
        %v1818 = vpack.c.b16 %v1804, %v1803
        %v1819 = vpack.c.b16 %v1806, %v1805
        %v1820 = vpack.c.b16 %v1808, %v1807
        %v1834 = vsel %vm804, %v758, 0
        %v1837 = vsel %vm804, %v761, 0
        %v1840 = vsel %vm804, %v764, 0
        %v1843 = vsel %vm804, %v767, 0
        %v1846 = vsel %vm804, %v770, 0
        %v1849 = vsel %vm804, %v773, 0
        %v1852 = vsel %vm804, %v776, 0
        %v1855 = vsel %vm804, %v779, 0
        %v1858 = vsel %vm804, %v782, 0
        %v1861 = vsel %vm804, %v785, 0
        %v1864 = vsel %vm804, %v788, 0
        %v1867 = vsel %vm804, %v791, 0
        %v1870 = vsel %vm804, %v794, 0
        %v1873 = vsel %vm804, %v797, 0
        %v1876 = vsel %vm804, %v800, 0
        %v1879 = vsel %vm804, %v803, 0
        %1881 = vmatpush.bf16.msra.mxu0 %v1816
        %1882 = vmatpush.bf16.msra.mxu0 %v1815
        %1883 = vmatpush.bf16.msra.mxu0 %v1814
        %1884 = vmatpush.bf16.msra.mxu0 %v1813
        %1885 = vmatpush.bf16.msra.mxu0 %v1812
        %1886 = vmatpush.bf16.msra.mxu0 %v1811
        %1887 = vmatpush.bf16.msra.mxu0 %v1810
        %1888 = vmatpush.bf16.msra.mxu0 %v1809
        %1889 = vmatmul.bf16.gmra.mxu0 %v806
        %v1890 = vpop.f32.mrf.mxu0
        %v1891 = vadd.f32 %v1682, %v1890
        %v1892 = vpop.f32.mrf.mxu0
        %v1893 = vadd.f32 %v1684, %v1892
        %1894 = vmatmul.bf16.gmra.mxu0 %v809
        %v1895 = vpop.f32.mrf.mxu0
        %v1896 = vadd.f32 %v1687, %v1895
        %v1897 = vpop.f32.mrf.mxu0
        %v1898 = vadd.f32 %v1689, %v1897
        %1899 = vmatmul.bf16.gmra.mxu0 %v812
        %v1900 = vpop.f32.mrf.mxu0
        %v1901 = vadd.f32 %v1692, %v1900
        %v1902 = vpop.f32.mrf.mxu0
        %v1903 = vadd.f32 %v1694, %v1902
        %1904 = vmatmul.bf16.gmra.mxu0 %v815
        %v1905 = vpop.f32.mrf.mxu0
        %v1906 = vadd.f32 %v1697, %v1905
        %v1907 = vpop.f32.mrf.mxu0
        %v1908 = vadd.f32 %v1699, %v1907
        %1909 = vmatmul.bf16.gmra.mxu0 %v818
        %v1910 = vpop.f32.mrf.mxu0
        %v1911 = vadd.f32 %v1702, %v1910
        %v1912 = vpop.f32.mrf.mxu0
        %v1913 = vadd.f32 %v1704, %v1912
        %1914 = vmatmul.bf16.gmra.mxu0 %v821
        %v1915 = vpop.f32.mrf.mxu0
        %v1916 = vadd.f32 %v1707, %v1915
        %v1917 = vpop.f32.mrf.mxu0
        %v1918 = vadd.f32 %v1709, %v1917
        %1919 = vmatmul.bf16.gmra.mxu0 %v824
        %v1920 = vpop.f32.mrf.mxu0
        %v1921 = vadd.f32 %v1712, %v1920
        %v1922 = vpop.f32.mrf.mxu0
        %v1923 = vadd.f32 %v1714, %v1922
        %1924 = vmatmul.bf16.gmra.mxu0 %v827
        %v1925 = vpop.f32.mrf.mxu0
        %v1926 = vadd.f32 %v1717, %v1925
        %v1927 = vpop.f32.mrf.mxu0
        %v1928 = vadd.f32 %v1719, %v1927
        %1929 = vmatmul.bf16.gmra.mxu0 %v830
        %v1930 = vpop.f32.mrf.mxu0
        %v1931 = vadd.f32 %v1722, %v1930
        %v1932 = vpop.f32.mrf.mxu0
        %v1933 = vadd.f32 %v1724, %v1932
        %1934 = vmatmul.bf16.gmra.mxu0 %v833
        %v1935 = vpop.f32.mrf.mxu0
        %v1936 = vadd.f32 %v1727, %v1935
        %v1937 = vpop.f32.mrf.mxu0
        %v1938 = vadd.f32 %v1729, %v1937
        %1939 = vmatmul.bf16.gmra.mxu0 %v836
        %v1940 = vpop.f32.mrf.mxu0
        %v1941 = vadd.f32 %v1732, %v1940
        %v1942 = vpop.f32.mrf.mxu0
        %v1943 = vadd.f32 %v1734, %v1942
        %1944 = vmatmul.bf16.gmra.mxu0 %v839
        %v1945 = vpop.f32.mrf.mxu0
        %v1946 = vadd.f32 %v1737, %v1945
        %v1947 = vpop.f32.mrf.mxu0
        %v1948 = vadd.f32 %v1739, %v1947
        %1949 = vmatmul.bf16.gmra.mxu0 %v842
        %v1950 = vpop.f32.mrf.mxu0
        %v1951 = vadd.f32 %v1742, %v1950
        %v1952 = vpop.f32.mrf.mxu0
        %v1953 = vadd.f32 %v1744, %v1952
        %1954 = vmatmul.bf16.gmra.mxu0 %v845
        %v1955 = vpop.f32.mrf.mxu0
        %v1956 = vadd.f32 %v1747, %v1955
        %v1957 = vpop.f32.mrf.mxu0
        %v1958 = vadd.f32 %v1749, %v1957
        %1959 = vmatmul.bf16.gmra.mxu0 %v848
        %v1960 = vpop.f32.mrf.mxu0
        %v1961 = vadd.f32 %v1752, %v1960
        %v1962 = vpop.f32.mrf.mxu0
        %v1963 = vadd.f32 %v1754, %v1962
        %1964 = vmatmul.bf16.gmra.mxu0 %v851
        %v1965 = vpop.f32.mrf.mxu0
        %v1966 = vadd.f32 %v1757, %v1965
        %v1967 = vpop.f32.mrf.mxu0
        %v1968 = vadd.f32 %v1759, %v1967
        %1969 = vdwg.mxu0
        %1970 = vmatpush.bf16.msra.mxu0 0
        %1971 = vmatpush.bf16.msra.mxu0 0
        %1972 = vmatpush.bf16.msra.mxu0 0
        %1973 = vmatpush.bf16.msra.mxu0 0
        %1974 = vmatpush.bf16.msra.mxu0 %v1820
        %1975 = vmatpush.bf16.msra.mxu0 %v1819
        %1976 = vmatpush.bf16.msra.mxu0 %v1818
        %1977 = vmatpush.bf16.msra.mxu0 %v1817
        %1978 = vmatmul.bf16.gmra.mxu0 %v1834
        %v1979 = vpop.f32.mrf.mxu0
        %v1980 = vadd.f32 %v1891, %v1979
        %v1981 = vpop.f32.mrf.mxu0
        %v1982 = vadd.f32 %v1893, %v1981
        %1983 = vmatmul.bf16.gmra.mxu0 %v1837
        %v1984 = vpop.f32.mrf.mxu0
        %v1985 = vadd.f32 %v1896, %v1984
        %v1986 = vpop.f32.mrf.mxu0
        %v1987 = vadd.f32 %v1898, %v1986
        %1988 = vmatmul.bf16.gmra.mxu0 %v1840
        %v1989 = vpop.f32.mrf.mxu0
        %v1990 = vadd.f32 %v1901, %v1989
        %v1991 = vpop.f32.mrf.mxu0
        %v1992 = vadd.f32 %v1903, %v1991
        %1993 = vmatmul.bf16.gmra.mxu0 %v1843
        %v1994 = vpop.f32.mrf.mxu0
        %v1995 = vadd.f32 %v1906, %v1994
        %v1996 = vpop.f32.mrf.mxu0
        %v1997 = vadd.f32 %v1908, %v1996
        %1998 = vmatmul.bf16.gmra.mxu0 %v1846
        %v1999 = vpop.f32.mrf.mxu0
        %v2000 = vadd.f32 %v1911, %v1999
        %v2001 = vpop.f32.mrf.mxu0
        %v2002 = vadd.f32 %v1913, %v2001
        %2003 = vmatmul.bf16.gmra.mxu0 %v1849
        %v2004 = vpop.f32.mrf.mxu0
        %v2005 = vadd.f32 %v1916, %v2004
        %v2006 = vpop.f32.mrf.mxu0
        %v2007 = vadd.f32 %v1918, %v2006
        %2008 = vmatmul.bf16.gmra.mxu0 %v1852
        %v2009 = vpop.f32.mrf.mxu0
        %v2010 = vadd.f32 %v1921, %v2009
        %v2011 = vpop.f32.mrf.mxu0
        %v2012 = vadd.f32 %v1923, %v2011
        %2013 = vmatmul.bf16.gmra.mxu0 %v1855
        %v2014 = vpop.f32.mrf.mxu0
        %v2015 = vadd.f32 %v1926, %v2014
        %v2016 = vpop.f32.mrf.mxu0
        %v2017 = vadd.f32 %v1928, %v2016
        %2018 = vmatmul.bf16.gmra.mxu0 %v1858
        %v2019 = vpop.f32.mrf.mxu0
        %v2020 = vadd.f32 %v1931, %v2019
        %v2021 = vpop.f32.mrf.mxu0
        %v2022 = vadd.f32 %v1933, %v2021
        %2023 = vmatmul.bf16.gmra.mxu0 %v1861
        %v2024 = vpop.f32.mrf.mxu0
        %v2025 = vadd.f32 %v1936, %v2024
        %v2026 = vpop.f32.mrf.mxu0
        %v2027 = vadd.f32 %v1938, %v2026
        %2028 = vmatmul.bf16.gmra.mxu0 %v1864
        %v2029 = vpop.f32.mrf.mxu0
        %v2030 = vadd.f32 %v1941, %v2029
        %v2031 = vpop.f32.mrf.mxu0
        %v2032 = vadd.f32 %v1943, %v2031
        %2033 = vmatmul.bf16.gmra.mxu0 %v1867
        %v2034 = vpop.f32.mrf.mxu0
        %v2035 = vadd.f32 %v1946, %v2034
        %v2036 = vpop.f32.mrf.mxu0
        %v2037 = vadd.f32 %v1948, %v2036
        %2038 = vmatmul.bf16.gmra.mxu0 %v1870
        %v2039 = vpop.f32.mrf.mxu0
        %v2040 = vadd.f32 %v1951, %v2039
        %v2041 = vpop.f32.mrf.mxu0
        %v2042 = vadd.f32 %v1953, %v2041
        %2043 = vmatmul.bf16.gmra.mxu0 %v1873
        %v2044 = vpop.f32.mrf.mxu0
        %v2045 = vadd.f32 %v1956, %v2044
        %v2046 = vpop.f32.mrf.mxu0
        %v2047 = vadd.f32 %v1958, %v2046
        %2048 = vmatmul.bf16.gmra.mxu0 %v1876
        %v2049 = vpop.f32.mrf.mxu0
        %v2050 = vadd.f32 %v1961, %v2049
        %v2051 = vpop.f32.mrf.mxu0
        %v2052 = vadd.f32 %v1963, %v2051
        %2053 = vmatmul.bf16.gmra.mxu0 %v1879
        %v2054 = vpop.f32.mrf.mxu0
        %v2055 = vadd.f32 %v1966, %v2054
        %v2056 = vpop.f32.mrf.mxu0
        %v2057 = vadd.f32 %v1968, %v2056
        %2058 = vdwg.mxu0
        %s2059 = scalar_lea.vmem %s276, 24
        %v2060 = vld [vmem:[%s2059] sm:$0xf]
        %v2061 = vld [vmem:[%s2059 + $0x4] sm:$0xf]
        %v2062 = vld [vmem:[%s2059 + $0xc] sm:$0xf]
        %v2063 = vld [vmem:[%s2059 + $0x10] sm:$0xf]
        %v2064 = vld [vmem:[%s2059 + $0x18] sm:$0xf]
        %v2065 = vld [vmem:[%s2059 + $0x1c] sm:$0xf]
        %v2066 = vld [vmem:[%s2059 + $0x24] sm:$0xf]
        %v2067 = vld [vmem:[%s2059 + $0x28] sm:$0xf]
        %v2068 = vld [vmem:[%s2059 + $0x30] sm:$0xf]
        %v2069 = vld [vmem:[%s2059 + $0x34] sm:$0xf]
        %v2070 = vld [vmem:[%s2059 + $0x3c] sm:$0xf]
        %v2071 = vld [vmem:[%s2059 + $0x40] sm:$0xf]
        %v2072 = vld [vmem:[%s2059 + $0x48] sm:$0xf]
        %v2073 = vld [vmem:[%s2059 + $0x4c] sm:$0xf]
        %v2074 = vld [vmem:[%s2059 + $0x54] sm:$0xf]
        %v2075 = vld [vmem:[%s2059 + $0x58] sm:$0xf]
        %v2076 = vld [vmem:[%s2059 + $0x60] sm:$0xf]
        %v2077 = vld [vmem:[%s2059 + $0x64] sm:$0xf]
        %v2078 = vld [vmem:[%s2059 + $0x6c] sm:$0xf]
        %v2079 = vld [vmem:[%s2059 + $0x70] sm:$0xf]
        %v2080 = vld [vmem:[%s2059 + $0x78] sm:$0xf]
        %v2081 = vld [vmem:[%s2059 + $0x7c] sm:$0xf]
        %v2082 = vld [vmem:[%s2059 + $0x84] sm:$0xf]
        %v2083 = vld [vmem:[%s2059 + $0x88] sm:$0xf]
        %v2084 = vld [vmem:[%s2059 + $0x90] sm:$0xf]
        %v2085 = vld [vmem:[%s2059 + $0x94] sm:$0xf]
        %v2086 = vld [vmem:[%s2059 + $0x9c] sm:$0xf]
        %v2087 = vld [vmem:[%s2059 + $0xa0] sm:$0xf]
        %v2088 = vld [vmem:[%s2059 + $0xa8] sm:$0xf]
        %v2089 = vld [vmem:[%s2059 + $0xac] sm:$0xf]
        %v2090 = vld [vmem:[%s2059 + $0xb4] sm:$0xf]
        %v2091 = vld [vmem:[%s2059 + $0xb8] sm:$0xf]
        %v2092 = vld [vmem:[%s2059 + $0x8] sm:$0x1]
        %v2093 = vld [vmem:[%s2059 + $0x14] sm:$0x1]
        %v2094 = vld [vmem:[%s2059 + $0x20] sm:$0x1]
        %v2095 = vld [vmem:[%s2059 + $0x2c] sm:$0x1]
        %v2096 = vld [vmem:[%s2059 + $0x38] sm:$0x1]
        %v2097 = vld [vmem:[%s2059 + $0x44] sm:$0x1]
        %v2098 = vld [vmem:[%s2059 + $0x50] sm:$0x1]
        %v2099 = vld [vmem:[%s2059 + $0x5c] sm:$0x1]
        %v2100 = vld [vmem:[%s2059 + $0x68] sm:$0x1]
        %v2101 = vld [vmem:[%s2059 + $0x74] sm:$0x1]
        %v2102 = vld [vmem:[%s2059 + $0x80] sm:$0x1]
        %v2103 = vld [vmem:[%s2059 + $0x8c] sm:$0x1]
        %v2104 = vld [vmem:[%s2059 + $0x98] sm:$0x1]
        %v2105 = vld [vmem:[%s2059 + $0xa4] sm:$0x1]
        %v2106 = vld [vmem:[%s2059 + $0xb0] sm:$0x1]
        %v2107 = vld [vmem:[%s2059 + $0xbc] sm:$0x1]
        %v2108 = vld [vmem:[%s2059] sm:$0xe]
        %v2109 = vld [vmem:[%s2059 + $0xc] sm:$0xe]
        %v2110 = vld [vmem:[%s2059 + $0x18] sm:$0xe]
        %v2111 = vld [vmem:[%s2059 + $0x24] sm:$0xe]
        %v2112 = vld [vmem:[%s2059 + $0x30] sm:$0xe]
        %v2113 = vld [vmem:[%s2059 + $0x3c] sm:$0xe]
        %v2114 = vld [vmem:[%s2059 + $0x48] sm:$0xe]
        %v2115 = vld [vmem:[%s2059 + $0x54] sm:$0xe]
        %v2116 = vld [vmem:[%s2059 + $0x60] sm:$0xe]
        %v2117 = vld [vmem:[%s2059 + $0x6c] sm:$0xe]
        %v2118 = vld [vmem:[%s2059 + $0x78] sm:$0xe]
        %v2119 = vld [vmem:[%s2059 + $0x84] sm:$0xe]
        %v2120 = vld [vmem:[%s2059 + $0x90] sm:$0xe]
        %v2121 = vld [vmem:[%s2059 + $0x9c] sm:$0xe]
        %v2122 = vld [vmem:[%s2059 + $0xa8] sm:$0xe]
        %v2123 = vld [vmem:[%s2059 + $0xb4] sm:$0xe]
        %v2156 = vunpack.c.l.b16 %v2060
        %v2157 = vunpack.c.l.b16 %v2061
        %v2158 = vunpack.c.l.b16 %v2062
        %v2159 = vunpack.c.l.b16 %v2063
        %v2160 = vunpack.c.l.b16 %v2064
        %v2161 = vunpack.c.l.b16 %v2065
        %v2162 = vunpack.c.l.b16 %v2066
        %v2163 = vunpack.c.l.b16 %v2067
        %v2164 = vunpack.c.l.b16 %v2068
        %v2165 = vunpack.c.l.b16 %v2069
        %v2166 = vunpack.c.l.b16 %v2070
        %v2167 = vunpack.c.l.b16 %v2071
        %v2168 = vunpack.c.l.b16 %v2072
        %v2169 = vunpack.c.l.b16 %v2073
        %v2170 = vunpack.c.l.b16 %v2074
        %v2171 = vunpack.c.l.b16 %v2075
        %v2172 = vunpack.c.l.b16 %v2076
        %v2173 = vunpack.c.l.b16 %v2077
        %v2174 = vunpack.c.l.b16 %v2078
        %v2175 = vunpack.c.l.b16 %v2079
        %v2176 = vunpack.c.l.b16 %v2080
        %v2177 = vunpack.c.l.b16 %v2081
        %v2178 = vunpack.c.l.b16 %v2082
        %v2179 = vunpack.c.l.b16 %v2083
        %v2180 = vunpack.c.l.b16 %v2084
        %v2181 = vunpack.c.l.b16 %v2085
        %v2182 = vunpack.c.l.b16 %v2086
        %v2183 = vunpack.c.l.b16 %v2087
        %v2184 = vunpack.c.l.b16 %v2088
        %v2185 = vunpack.c.l.b16 %v2089
        %v2186 = vunpack.c.l.b16 %v2090
        %v2187 = vunpack.c.l.b16 %v2091
        %v2188 = vpack.c.b16 %v2157, %v2156
        %v2189 = vpack.c.b16 %v2159, %v2158
        %v2190 = vpack.c.b16 %v2161, %v2160
        %v2191 = vpack.c.b16 %v2163, %v2162
        %v2192 = vpack.c.b16 %v2165, %v2164
        %v2193 = vpack.c.b16 %v2167, %v2166
        %v2194 = vpack.c.b16 %v2169, %v2168
        %v2195 = vpack.c.b16 %v2171, %v2170
        %v2196 = vpack.c.b16 %v2173, %v2172
        %v2197 = vpack.c.b16 %v2175, %v2174
        %v2198 = vpack.c.b16 %v2177, %v2176
        %v2199 = vpack.c.b16 %v2179, %v2178
        %v2200 = vpack.c.b16 %v2181, %v2180
        %v2201 = vpack.c.b16 %v2183, %v2182
        %v2202 = vpack.c.b16 %v2185, %v2184
        %v2203 = vpack.c.b16 %v2187, %v2186
        %v2220 = vunpack.c.l.b16 %v2092
        %v2221 = vunpack.c.l.b16 %v2093
        %v2222 = vunpack.c.l.b16 %v2094
        %v2223 = vunpack.c.l.b16 %v2095
        %v2224 = vunpack.c.l.b16 %v2096
        %v2225 = vunpack.c.l.b16 %v2097
        %v2226 = vunpack.c.l.b16 %v2098
        %v2227 = vunpack.c.l.b16 %v2099
        %v2228 = vunpack.c.l.b16 %v2100
        %v2229 = vunpack.c.l.b16 %v2101
        %v2230 = vunpack.c.l.b16 %v2102
        %v2231 = vunpack.c.l.b16 %v2103
        %v2232 = vunpack.c.l.b16 %v2104
        %v2233 = vunpack.c.l.b16 %v2105
        %v2234 = vunpack.c.l.b16 %v2106
        %v2235 = vunpack.c.l.b16 %v2107
        %v2236 = vpack.c.b16 %v2220, %v2220
        %v2237 = vpack.c.b16 %v2221, %v2221
        %v2238 = vpack.c.b16 %v2222, %v2222
        %v2239 = vpack.c.b16 %v2223, %v2223
        %v2240 = vpack.c.b16 %v2224, %v2224
        %v2241 = vpack.c.b16 %v2225, %v2225
        %v2242 = vpack.c.b16 %v2226, %v2226
        %v2243 = vpack.c.b16 %v2227, %v2227
        %v2244 = vpack.c.b16 %v2228, %v2228
        %v2245 = vpack.c.b16 %v2229, %v2229
        %v2246 = vpack.c.b16 %v2230, %v2230
        %v2247 = vpack.c.b16 %v2231, %v2231
        %v2248 = vpack.c.b16 %v2232, %v2232
        %v2249 = vpack.c.b16 %v2233, %v2233
        %v2250 = vpack.c.b16 %v2234, %v2234
        %v2251 = vpack.c.b16 %v2235, %v2235
        %v2253 = vshrl.u32 %v2188, 16
        %v2255 = vshll.u32 %v2188, 16
        %v2257 = vrot.slane %v2255, 1
        %v2258 = vor.u32 %v2253, %v2257
        %v2260 = vshll.u32 %v2236, 16
        %v2262 = vrot.slane %v2260, 1
        %v2263 = vsel %vm482, %v2258, %v2262
        %v2265 = vshrl.u32 %v2189, 16
        %v2267 = vshll.u32 %v2189, 16
        %v2269 = vrot.slane %v2267, 1
        %v2270 = vor.u32 %v2265, %v2269
        %v2272 = vshll.u32 %v2237, 16
        %v2274 = vrot.slane %v2272, 1
        %v2275 = vsel %vm482, %v2270, %v2274
        %v2277 = vshrl.u32 %v2190, 16
        %v2279 = vshll.u32 %v2190, 16
        %v2281 = vrot.slane %v2279, 1
        %v2282 = vor.u32 %v2277, %v2281
        %v2284 = vshll.u32 %v2238, 16
        %v2286 = vrot.slane %v2284, 1
        %v2287 = vsel %vm482, %v2282, %v2286
        %v2289 = vshrl.u32 %v2191, 16
        %v2291 = vshll.u32 %v2191, 16
        %v2293 = vrot.slane %v2291, 1
        %v2294 = vor.u32 %v2289, %v2293
        %v2296 = vshll.u32 %v2239, 16
        %v2298 = vrot.slane %v2296, 1
        %v2299 = vsel %vm482, %v2294, %v2298
        %v2301 = vshrl.u32 %v2192, 16
        %v2303 = vshll.u32 %v2192, 16
        %v2305 = vrot.slane %v2303, 1
        %v2306 = vor.u32 %v2301, %v2305
        %v2308 = vshll.u32 %v2240, 16
        %v2310 = vrot.slane %v2308, 1
        %v2311 = vsel %vm482, %v2306, %v2310
        %v2313 = vshrl.u32 %v2193, 16
        %v2315 = vshll.u32 %v2193, 16
        %v2317 = vrot.slane %v2315, 1
        %v2318 = vor.u32 %v2313, %v2317
        %v2320 = vshll.u32 %v2241, 16
        %v2322 = vrot.slane %v2320, 1
        %v2323 = vsel %vm482, %v2318, %v2322
        %v2325 = vshrl.u32 %v2194, 16
        %v2327 = vshll.u32 %v2194, 16
        %v2329 = vrot.slane %v2327, 1
        %v2330 = vor.u32 %v2325, %v2329
        %v2332 = vshll.u32 %v2242, 16
        %v2334 = vrot.slane %v2332, 1
        %v2335 = vsel %vm482, %v2330, %v2334
        %v2337 = vshrl.u32 %v2195, 16
        %v2339 = vshll.u32 %v2195, 16
        %v2341 = vrot.slane %v2339, 1
        %v2342 = vor.u32 %v2337, %v2341
        %v2344 = vshll.u32 %v2243, 16
        %v2346 = vrot.slane %v2344, 1
        %v2347 = vsel %vm482, %v2342, %v2346
        %v2349 = vshrl.u32 %v2196, 16
        %v2351 = vshll.u32 %v2196, 16
        %v2353 = vrot.slane %v2351, 1
        %v2354 = vor.u32 %v2349, %v2353
        %v2356 = vshll.u32 %v2244, 16
        %v2358 = vrot.slane %v2356, 1
        %v2359 = vsel %vm482, %v2354, %v2358
        %v2361 = vshrl.u32 %v2197, 16
        %v2363 = vshll.u32 %v2197, 16
        %v2365 = vrot.slane %v2363, 1
        %v2366 = vor.u32 %v2361, %v2365
        %v2368 = vshll.u32 %v2245, 16
        %v2370 = vrot.slane %v2368, 1
        %v2371 = vsel %vm482, %v2366, %v2370
        %v2373 = vshrl.u32 %v2198, 16
        %v2375 = vshll.u32 %v2198, 16
        %v2377 = vrot.slane %v2375, 1
        %v2378 = vor.u32 %v2373, %v2377
        %v2380 = vshll.u32 %v2246, 16
        %v2382 = vrot.slane %v2380, 1
        %v2383 = vsel %vm482, %v2378, %v2382
        %v2385 = vshrl.u32 %v2199, 16
        %v2387 = vshll.u32 %v2199, 16
        %v2389 = vrot.slane %v2387, 1
        %v2390 = vor.u32 %v2385, %v2389
        %v2392 = vshll.u32 %v2247, 16
        %v2394 = vrot.slane %v2392, 1
        %v2395 = vsel %vm482, %v2390, %v2394
        %v2397 = vshrl.u32 %v2200, 16
        %v2399 = vshll.u32 %v2200, 16
        %v2401 = vrot.slane %v2399, 1
        %v2402 = vor.u32 %v2397, %v2401
        %v2404 = vshll.u32 %v2248, 16
        %v2406 = vrot.slane %v2404, 1
        %v2407 = vsel %vm482, %v2402, %v2406
        %v2409 = vshrl.u32 %v2201, 16
        %v2411 = vshll.u32 %v2201, 16
        %v2413 = vrot.slane %v2411, 1
        %v2414 = vor.u32 %v2409, %v2413
        %v2416 = vshll.u32 %v2249, 16
        %v2418 = vrot.slane %v2416, 1
        %v2419 = vsel %vm482, %v2414, %v2418
        %v2421 = vshrl.u32 %v2202, 16
        %v2423 = vshll.u32 %v2202, 16
        %v2425 = vrot.slane %v2423, 1
        %v2426 = vor.u32 %v2421, %v2425
        %v2428 = vshll.u32 %v2250, 16
        %v2430 = vrot.slane %v2428, 1
        %v2431 = vsel %vm482, %v2426, %v2430
        %v2433 = vshrl.u32 %v2203, 16
        %v2435 = vshll.u32 %v2203, 16
        %v2437 = vrot.slane %v2435, 1
        %v2438 = vor.u32 %v2433, %v2437
        %v2440 = vshll.u32 %v2251, 16
        %v2442 = vrot.slane %v2440, 1
        %v2443 = vsel %vm482, %v2438, %v2442
        %2444 = vrot.lane.b32.xlu0 %v2263, 64
        %v2445 = vpop.permute.xlu0 %2444
        %2446 = vrot.lane.b32.xlu0 %v2275, 64
        %v2447 = vpop.permute.xlu0 %2446
        %2448 = vrot.lane.b32.xlu0 %v2287, 64
        %v2449 = vpop.permute.xlu0 %2448
        %2450 = vrot.lane.b32.xlu0 %v2299, 64
        %v2451 = vpop.permute.xlu0 %2450
        %2452 = vrot.lane.b32.xlu0 %v2311, 64
        %v2453 = vpop.permute.xlu0 %2452
        %2454 = vrot.lane.b32.xlu0 %v2323, 64
        %v2455 = vpop.permute.xlu0 %2454
        %2456 = vrot.lane.b32.xlu0 %v2335, 64
        %v2457 = vpop.permute.xlu0 %2456
        %2458 = vrot.lane.b32.xlu0 %v2347, 64
        %v2459 = vpop.permute.xlu0 %2458
        %2460 = vrot.lane.b32.xlu0 %v2359, 64
        %v2461 = vpop.permute.xlu0 %2460
        %2462 = vrot.lane.b32.xlu0 %v2371, 64
        %v2463 = vpop.permute.xlu0 %2462
        %2464 = vrot.lane.b32.xlu0 %v2383, 64
        %v2465 = vpop.permute.xlu0 %2464
        %2466 = vrot.lane.b32.xlu0 %v2395, 64
        %v2467 = vpop.permute.xlu0 %2466
        %2468 = vrot.lane.b32.xlu0 %v2407, 64
        %v2469 = vpop.permute.xlu0 %2468
        %2470 = vrot.lane.b32.xlu0 %v2419, 64
        %v2471 = vpop.permute.xlu0 %2470
        %2472 = vrot.lane.b32.xlu0 %v2431, 64
        %v2473 = vpop.permute.xlu0 %2472
        %2474 = vrot.lane.b32.xlu0 %v2443, 64
        %v2475 = vpop.permute.xlu0 %2474
        %v2492 = vunpack.c.l.b16 %v2108
        %v2493 = vunpack.c.l.b16 %v2109
        %v2494 = vunpack.c.l.b16 %v2110
        %v2495 = vunpack.c.l.b16 %v2111
        %v2496 = vunpack.c.l.b16 %v2112
        %v2497 = vunpack.c.l.b16 %v2113
        %v2498 = vunpack.c.l.b16 %v2114
        %v2499 = vunpack.c.l.b16 %v2115
        %v2500 = vunpack.c.l.b16 %v2116
        %v2501 = vunpack.c.l.b16 %v2117
        %v2502 = vunpack.c.l.b16 %v2118
        %v2503 = vunpack.c.l.b16 %v2119
        %v2504 = vunpack.c.l.b16 %v2120
        %v2505 = vunpack.c.l.b16 %v2121
        %v2506 = vunpack.c.l.b16 %v2122
        %v2507 = vunpack.c.l.b16 %v2123
        %v2508 = vpack.c.b16 %v2157, %v2492
        %v2509 = vpack.c.b16 %v2159, %v2493
        %v2510 = vpack.c.b16 %v2161, %v2494
        %v2511 = vpack.c.b16 %v2163, %v2495
        %v2512 = vpack.c.b16 %v2165, %v2496
        %v2513 = vpack.c.b16 %v2167, %v2497
        %v2514 = vpack.c.b16 %v2169, %v2498
        %v2515 = vpack.c.b16 %v2171, %v2499
        %v2516 = vpack.c.b16 %v2173, %v2500
        %v2517 = vpack.c.b16 %v2175, %v2501
        %v2518 = vpack.c.b16 %v2177, %v2502
        %v2519 = vpack.c.b16 %v2179, %v2503
        %v2520 = vpack.c.b16 %v2181, %v2504
        %v2521 = vpack.c.b16 %v2183, %v2505
        %v2522 = vpack.c.b16 %v2185, %v2506
        %v2523 = vpack.c.b16 %v2187, %v2507
        %v2524 = vrot.slane %v2508, 1
        %v2525 = vrot.slane %v2236, 1
        %v2526 = vsel %vm755, %v2524, %v2525
        %v2527 = vrot.slane %v2509, 1
        %v2528 = vrot.slane %v2237, 1
        %v2529 = vsel %vm755, %v2527, %v2528
        %v2530 = vrot.slane %v2510, 1
        %v2531 = vrot.slane %v2238, 1
        %v2532 = vsel %vm755, %v2530, %v2531
        %v2533 = vrot.slane %v2511, 1
        %v2534 = vrot.slane %v2239, 1
        %v2535 = vsel %vm755, %v2533, %v2534
        %v2536 = vrot.slane %v2512, 1
        %v2537 = vrot.slane %v2240, 1
        %v2538 = vsel %vm755, %v2536, %v2537
        %v2539 = vrot.slane %v2513, 1
        %v2540 = vrot.slane %v2241, 1
        %v2541 = vsel %vm755, %v2539, %v2540
        %v2542 = vrot.slane %v2514, 1
        %v2543 = vrot.slane %v2242, 1
        %v2544 = vsel %vm755, %v2542, %v2543
        %v2545 = vrot.slane %v2515, 1
        %v2546 = vrot.slane %v2243, 1
        %v2547 = vsel %vm755, %v2545, %v2546
        %v2548 = vrot.slane %v2516, 1
        %v2549 = vrot.slane %v2244, 1
        %v2550 = vsel %vm755, %v2548, %v2549
        %v2551 = vrot.slane %v2517, 1
        %v2552 = vrot.slane %v2245, 1
        %v2553 = vsel %vm755, %v2551, %v2552
        %v2554 = vrot.slane %v2518, 1
        %v2555 = vrot.slane %v2246, 1
        %v2556 = vsel %vm755, %v2554, %v2555
        %v2557 = vrot.slane %v2519, 1
        %v2558 = vrot.slane %v2247, 1
        %v2559 = vsel %vm755, %v2557, %v2558
        %v2560 = vrot.slane %v2520, 1
        %v2561 = vrot.slane %v2248, 1
        %v2562 = vsel %vm755, %v2560, %v2561
        %v2563 = vrot.slane %v2521, 1
        %v2564 = vrot.slane %v2249, 1
        %v2565 = vsel %vm755, %v2563, %v2564
        %v2566 = vrot.slane %v2522, 1
        %v2567 = vrot.slane %v2250, 1
        %v2568 = vsel %vm755, %v2566, %v2567
        %v2569 = vrot.slane %v2523, 1
        %v2570 = vrot.slane %v2251, 1
        %v2571 = vsel %vm755, %v2569, %v2570
        %v2573 = vsel %vm804, %v2188, %v2445
        %v2576 = vsel %vm804, %v2189, %v2447
        %v2579 = vsel %vm804, %v2190, %v2449
        %v2582 = vsel %vm804, %v2191, %v2451
        %v2585 = vsel %vm804, %v2192, %v2453
        %v2588 = vsel %vm804, %v2193, %v2455
        %v2591 = vsel %vm804, %v2194, %v2457
        %v2594 = vsel %vm804, %v2195, %v2459
        %v2597 = vsel %vm804, %v2196, %v2461
        %v2600 = vsel %vm804, %v2197, %v2463
        %v2603 = vsel %vm804, %v2198, %v2465
        %v2606 = vsel %vm804, %v2199, %v2467
        %v2609 = vsel %vm804, %v2200, %v2469
        %v2612 = vsel %vm804, %v2201, %v2471
        %v2615 = vsel %vm804, %v2202, %v2473
        %v2618 = vsel %vm804, %v2203, %v2475
        %s2620 = scalar_lea.vmem %s1, 192
        %v2621 = vld [vmem:[%s2620] sm:$0xf]
        %v2622 = vld [vmem:[%s2620 + $0x4] sm:$0xf]
        %v2623 = vld [vmem:[%s2620 + $0x8] sm:$0xf]
        %v2624 = vld [vmem:[%s2620 + $0xc] sm:$0xf]
        %v2625 = vld [vmem:[%s2620 + $0x10] sm:$0xf]
        %v2626 = vld [vmem:[%s2620 + $0x14] sm:$0xf]
        %v2627 = vld [vmem:[%s2620 + $0x18] sm:$0xf]
        %v2628 = vld [vmem:[%s2620 + $0x1c] sm:$0xf]
        %v2629 = vld [vmem:[%s2620 + $0x20] sm:$0xf]
        %v2630 = vld [vmem:[%s2620 + $0x24] sm:$0xf]
        %v2631 = vld [vmem:[%s2620 + $0x28] sm:$0xf]
        %v2632 = vld [vmem:[%s2620 + $0x2c] sm:$0xf]
        %v2633 = vld [vmem:[%s2620 + $0x30] sm:$0xf]
        %v2634 = vld [vmem:[%s2620 + $0x34] sm:$0xf]
        %v2635 = vld [vmem:[%s2620 + $0x38] sm:$0xf]
        %v2636 = vld [vmem:[%s2620 + $0x3c] sm:$0xf]
        %v2637 = vld [vmem:[%s2620 + $0x40] sm:$0xf]
        %v2638 = vld [vmem:[%s2620 + $0x44] sm:$0xf]
        %v2639 = vld [vmem:[%s2620 + $0x48] sm:$0xf]
        %v2640 = vld [vmem:[%s2620 + $0x4c] sm:$0xf]
        %v2641 = vld [vmem:[%s2620 + $0x50] sm:$0xf]
        %v2642 = vld [vmem:[%s2620 + $0x54] sm:$0xf]
        %v2643 = vld [vmem:[%s2620 + $0x58] sm:$0xf]
        %v2644 = vld [vmem:[%s2620 + $0x5c] sm:$0xf]
        %v2669 = vunpack.c.l.b16 %v2621
        %v2670 = vunpack.c.l.b16 %v2622
        %v2671 = vunpack.c.l.b16 %v2623
        %v2672 = vunpack.c.l.b16 %v2624
        %v2673 = vunpack.c.l.b16 %v2625
        %v2674 = vunpack.c.l.b16 %v2626
        %v2675 = vunpack.c.l.b16 %v2627
        %v2676 = vunpack.c.l.b16 %v2628
        %v2677 = vunpack.c.l.b16 %v2629
        %v2678 = vunpack.c.l.b16 %v2630
        %v2679 = vunpack.c.l.b16 %v2631
        %v2680 = vunpack.c.l.b16 %v2632
        %v2681 = vunpack.c.l.b16 %v2633
        %v2682 = vunpack.c.l.b16 %v2634
        %v2683 = vunpack.c.l.b16 %v2635
        %v2684 = vunpack.c.l.b16 %v2636
        %v2685 = vunpack.c.l.b16 %v2637
        %v2686 = vunpack.c.l.b16 %v2638
        %v2687 = vunpack.c.l.b16 %v2639
        %v2688 = vunpack.c.l.b16 %v2640
        %v2689 = vunpack.c.l.b16 %v2641
        %v2690 = vunpack.c.l.b16 %v2642
        %v2691 = vunpack.c.l.b16 %v2643
        %v2692 = vunpack.c.l.b16 %v2644
        %v2693 = vpack.c.b16 %v2670, %v2669
        %v2694 = vpack.c.b16 %v2672, %v2671
        %v2695 = vpack.c.b16 %v2674, %v2673
        %v2696 = vpack.c.b16 %v2676, %v2675
        %v2697 = vpack.c.b16 %v2678, %v2677
        %v2698 = vpack.c.b16 %v2680, %v2679
        %v2699 = vpack.c.b16 %v2682, %v2681
        %v2700 = vpack.c.b16 %v2684, %v2683
        %v2701 = vpack.c.b16 %v2686, %v2685
        %v2702 = vpack.c.b16 %v2688, %v2687
        %v2703 = vpack.c.b16 %v2690, %v2689
        %v2704 = vpack.c.b16 %v2692, %v2691
        %v2718 = vsel %vm804, %v2526, 0
        %v2721 = vsel %vm804, %v2529, 0
        %v2724 = vsel %vm804, %v2532, 0
        %v2727 = vsel %vm804, %v2535, 0
        %v2730 = vsel %vm804, %v2538, 0
        %v2733 = vsel %vm804, %v2541, 0
        %v2736 = vsel %vm804, %v2544, 0
        %v2739 = vsel %vm804, %v2547, 0
        %v2742 = vsel %vm804, %v2550, 0
        %v2745 = vsel %vm804, %v2553, 0
        %v2748 = vsel %vm804, %v2556, 0
        %v2751 = vsel %vm804, %v2559, 0
        %v2754 = vsel %vm804, %v2562, 0
        %v2757 = vsel %vm804, %v2565, 0
        %v2760 = vsel %vm804, %v2568, 0
        %v2763 = vsel %vm804, %v2571, 0
        %2765 = vmatpush.bf16.msra.mxu0 %v2700
        %2766 = vmatpush.bf16.msra.mxu0 %v2699
        %2767 = vmatpush.bf16.msra.mxu0 %v2698
        %2768 = vmatpush.bf16.msra.mxu0 %v2697
        %2769 = vmatpush.bf16.msra.mxu0 %v2696
        %2770 = vmatpush.bf16.msra.mxu0 %v2695
        %2771 = vmatpush.bf16.msra.mxu0 %v2694
        %2772 = vmatpush.bf16.msra.mxu0 %v2693
        %2773 = vmatmul.bf16.gmra.mxu0 %v2573
        %v2774 = vpop.f32.mrf.mxu0
        %v2775 = vadd.f32 0.0, %v2774
        %v2776 = vpop.f32.mrf.mxu0
        %v2777 = vadd.f32 0.0, %v2776
        %2778 = vmatmul.bf16.gmra.mxu0 %v2576
        %v2779 = vpop.f32.mrf.mxu0
        %v2780 = vadd.f32 0.0, %v2779
        %v2781 = vpop.f32.mrf.mxu0
        %v2782 = vadd.f32 0.0, %v2781
        %2783 = vmatmul.bf16.gmra.mxu0 %v2579
        %v2784 = vpop.f32.mrf.mxu0
        %v2785 = vadd.f32 0.0, %v2784
        %v2786 = vpop.f32.mrf.mxu0
        %v2787 = vadd.f32 0.0, %v2786
        %2788 = vmatmul.bf16.gmra.mxu0 %v2582
        %v2789 = vpop.f32.mrf.mxu0
        %v2790 = vadd.f32 0.0, %v2789
        %v2791 = vpop.f32.mrf.mxu0
        %v2792 = vadd.f32 0.0, %v2791
        %2793 = vmatmul.bf16.gmra.mxu0 %v2585
        %v2794 = vpop.f32.mrf.mxu0
        %v2795 = vadd.f32 0.0, %v2794
        %v2796 = vpop.f32.mrf.mxu0
        %v2797 = vadd.f32 0.0, %v2796
        %2798 = vmatmul.bf16.gmra.mxu0 %v2588
        %v2799 = vpop.f32.mrf.mxu0
        %v2800 = vadd.f32 0.0, %v2799
        %v2801 = vpop.f32.mrf.mxu0
        %v2802 = vadd.f32 0.0, %v2801
        %2803 = vmatmul.bf16.gmra.mxu0 %v2591
        %v2804 = vpop.f32.mrf.mxu0
        %v2805 = vadd.f32 0.0, %v2804
        %v2806 = vpop.f32.mrf.mxu0
        %v2807 = vadd.f32 0.0, %v2806
        %2808 = vmatmul.bf16.gmra.mxu0 %v2594
        %v2809 = vpop.f32.mrf.mxu0
        %v2810 = vadd.f32 0.0, %v2809
        %v2811 = vpop.f32.mrf.mxu0
        %v2812 = vadd.f32 0.0, %v2811
        %2813 = vmatmul.bf16.gmra.mxu0 %v2597
        %v2814 = vpop.f32.mrf.mxu0
        %v2815 = vadd.f32 0.0, %v2814
        %v2816 = vpop.f32.mrf.mxu0
        %v2817 = vadd.f32 0.0, %v2816
        %2818 = vmatmul.bf16.gmra.mxu0 %v2600
        %v2819 = vpop.f32.mrf.mxu0
        %v2820 = vadd.f32 0.0, %v2819
        %v2821 = vpop.f32.mrf.mxu0
        %v2822 = vadd.f32 0.0, %v2821
        %2823 = vmatmul.bf16.gmra.mxu0 %v2603
        %v2824 = vpop.f32.mrf.mxu0
        %v2825 = vadd.f32 0.0, %v2824
        %v2826 = vpop.f32.mrf.mxu0
        %v2827 = vadd.f32 0.0, %v2826
        %2828 = vmatmul.bf16.gmra.mxu0 %v2606
        %v2829 = vpop.f32.mrf.mxu0
        %v2830 = vadd.f32 0.0, %v2829
        %v2831 = vpop.f32.mrf.mxu0
        %v2832 = vadd.f32 0.0, %v2831
        %2833 = vmatmul.bf16.gmra.mxu0 %v2609
        %v2834 = vpop.f32.mrf.mxu0
        %v2835 = vadd.f32 0.0, %v2834
        %v2836 = vpop.f32.mrf.mxu0
        %v2837 = vadd.f32 0.0, %v2836
        %2838 = vmatmul.bf16.gmra.mxu0 %v2612
        %v2839 = vpop.f32.mrf.mxu0
        %v2840 = vadd.f32 0.0, %v2839
        %v2841 = vpop.f32.mrf.mxu0
        %v2842 = vadd.f32 0.0, %v2841
        %2843 = vmatmul.bf16.gmra.mxu0 %v2615
        %v2844 = vpop.f32.mrf.mxu0
        %v2845 = vadd.f32 0.0, %v2844
        %v2846 = vpop.f32.mrf.mxu0
        %v2847 = vadd.f32 0.0, %v2846
        %2848 = vmatmul.bf16.gmra.mxu0 %v2618
        %v2849 = vpop.f32.mrf.mxu0
        %v2850 = vadd.f32 0.0, %v2849
        %v2851 = vpop.f32.mrf.mxu0
        %v2852 = vadd.f32 0.0, %v2851
        %2853 = vdwg.mxu0
        %2854 = vmatpush.bf16.msra.mxu0 0
        %2855 = vmatpush.bf16.msra.mxu0 0
        %2856 = vmatpush.bf16.msra.mxu0 0
        %2857 = vmatpush.bf16.msra.mxu0 0
        %2858 = vmatpush.bf16.msra.mxu0 %v2704
        %2859 = vmatpush.bf16.msra.mxu0 %v2703
        %2860 = vmatpush.bf16.msra.mxu0 %v2702
        %2861 = vmatpush.bf16.msra.mxu0 %v2701
        %2862 = vmatmul.bf16.gmra.mxu0 %v2718
        %v2863 = vpop.f32.mrf.mxu0
        %v2864 = vadd.f32 %v2775, %v2863
        %v2865 = vpop.f32.mrf.mxu0
        %v2866 = vadd.f32 %v2777, %v2865
        %2867 = vmatmul.bf16.gmra.mxu0 %v2721
        %v2868 = vpop.f32.mrf.mxu0
        %v2869 = vadd.f32 %v2780, %v2868
        %v2870 = vpop.f32.mrf.mxu0
        %v2871 = vadd.f32 %v2782, %v2870
        %2872 = vmatmul.bf16.gmra.mxu0 %v2724
        %v2873 = vpop.f32.mrf.mxu0
        %v2874 = vadd.f32 %v2785, %v2873
        %v2875 = vpop.f32.mrf.mxu0
        %v2876 = vadd.f32 %v2787, %v2875
        %2877 = vmatmul.bf16.gmra.mxu0 %v2727
        %v2878 = vpop.f32.mrf.mxu0
        %v2879 = vadd.f32 %v2790, %v2878
        %v2880 = vpop.f32.mrf.mxu0
        %v2881 = vadd.f32 %v2792, %v2880
        %2882 = vmatmul.bf16.gmra.mxu0 %v2730
        %v2883 = vpop.f32.mrf.mxu0
        %v2884 = vadd.f32 %v2795, %v2883
        %v2885 = vpop.f32.mrf.mxu0
        %v2886 = vadd.f32 %v2797, %v2885
        %2887 = vmatmul.bf16.gmra.mxu0 %v2733
        %v2888 = vpop.f32.mrf.mxu0
        %v2889 = vadd.f32 %v2800, %v2888
        %v2890 = vpop.f32.mrf.mxu0
        %v2891 = vadd.f32 %v2802, %v2890
        %2892 = vmatmul.bf16.gmra.mxu0 %v2736
        %v2893 = vpop.f32.mrf.mxu0
        %v2894 = vadd.f32 %v2805, %v2893
        %v2895 = vpop.f32.mrf.mxu0
        %v2896 = vadd.f32 %v2807, %v2895
        %2897 = vmatmul.bf16.gmra.mxu0 %v2739
        %v2898 = vpop.f32.mrf.mxu0
        %v2899 = vadd.f32 %v2810, %v2898
        %v2900 = vpop.f32.mrf.mxu0
        %v2901 = vadd.f32 %v2812, %v2900
        %2902 = vmatmul.bf16.gmra.mxu0 %v2742
        %v2903 = vpop.f32.mrf.mxu0
        %v2904 = vadd.f32 %v2815, %v2903
        %v2905 = vpop.f32.mrf.mxu0
        %v2906 = vadd.f32 %v2817, %v2905
        %2907 = vmatmul.bf16.gmra.mxu0 %v2745
        %v2908 = vpop.f32.mrf.mxu0
        %v2909 = vadd.f32 %v2820, %v2908
        %v2910 = vpop.f32.mrf.mxu0
        %v2911 = vadd.f32 %v2822, %v2910
        %2912 = vmatmul.bf16.gmra.mxu0 %v2748
        %v2913 = vpop.f32.mrf.mxu0
        %v2914 = vadd.f32 %v2825, %v2913
        %v2915 = vpop.f32.mrf.mxu0
        %v2916 = vadd.f32 %v2827, %v2915
        %2917 = vmatmul.bf16.gmra.mxu0 %v2751
        %v2918 = vpop.f32.mrf.mxu0
        %v2919 = vadd.f32 %v2830, %v2918
        %v2920 = vpop.f32.mrf.mxu0
        %v2921 = vadd.f32 %v2832, %v2920
        %2922 = vmatmul.bf16.gmra.mxu0 %v2754
        %v2923 = vpop.f32.mrf.mxu0
        %v2924 = vadd.f32 %v2835, %v2923
        %v2925 = vpop.f32.mrf.mxu0
        %v2926 = vadd.f32 %v2837, %v2925
        %2927 = vmatmul.bf16.gmra.mxu0 %v2757
        %v2928 = vpop.f32.mrf.mxu0
        %v2929 = vadd.f32 %v2840, %v2928
        %v2930 = vpop.f32.mrf.mxu0
        %v2931 = vadd.f32 %v2842, %v2930
        %2932 = vmatmul.bf16.gmra.mxu0 %v2760
        %v2933 = vpop.f32.mrf.mxu0
        %v2934 = vadd.f32 %v2845, %v2933
        %v2935 = vpop.f32.mrf.mxu0
        %v2936 = vadd.f32 %v2847, %v2935
        %2937 = vmatmul.bf16.gmra.mxu0 %v2763
        %v2938 = vpop.f32.mrf.mxu0
        %v2939 = vadd.f32 %v2850, %v2938
        %v2940 = vpop.f32.mrf.mxu0
        %v2941 = vadd.f32 %v2852, %v2940
        %2942 = vdwg.mxu0
        %v2943 = vadd.f32 %v1980, %v2864
        %v2944 = vadd.f32 %v1982, %v2866
        %v2945 = vadd.f32 %v1985, %v2869
        %v2946 = vadd.f32 %v1987, %v2871
        %v2947 = vadd.f32 %v1990, %v2874
        %v2948 = vadd.f32 %v1992, %v2876
        %v2949 = vadd.f32 %v1995, %v2879
        %v2950 = vadd.f32 %v1997, %v2881
        %v2951 = vadd.f32 %v2000, %v2884
        %v2952 = vadd.f32 %v2002, %v2886
        %v2953 = vadd.f32 %v2005, %v2889
        %v2954 = vadd.f32 %v2007, %v2891
        %v2955 = vadd.f32 %v2010, %v2894
        %v2956 = vadd.f32 %v2012, %v2896
        %v2957 = vadd.f32 %v2015, %v2899
        %v2958 = vadd.f32 %v2017, %v2901
        %v2959 = vadd.f32 %v2020, %v2904
        %v2960 = vadd.f32 %v2022, %v2906
        %v2961 = vadd.f32 %v2025, %v2909
        %v2962 = vadd.f32 %v2027, %v2911
        %v2963 = vadd.f32 %v2030, %v2914
        %v2964 = vadd.f32 %v2032, %v2916
        %v2965 = vadd.f32 %v2035, %v2919
        %v2966 = vadd.f32 %v2037, %v2921
        %v2967 = vadd.f32 %v2040, %v2924
        %v2968 = vadd.f32 %v2042, %v2926
        %v2969 = vadd.f32 %v2045, %v2929
        %v2970 = vadd.f32 %v2047, %v2931
        %v2971 = vadd.f32 %v2050, %v2934
        %v2972 = vadd.f32 %v2052, %v2936
        %v2973 = vadd.f32 %v2055, %v2939
        %v2974 = vadd.f32 %v2057, %v2941
        %v2976 = vperm.slane %v278, 0
        %v2978 = vmul.f32 %v2943, %v2976
        %v2979 = vmul.f32 %v2944, %v2976
        %v2980 = vmul.f32 %v2945, %v2976
        %v2981 = vmul.f32 %v2946, %v2976
        %v2982 = vmul.f32 %v2947, %v2976
        %v2983 = vmul.f32 %v2948, %v2976
        %v2984 = vmul.f32 %v2949, %v2976
        %v2985 = vmul.f32 %v2950, %v2976
        %v2986 = vmul.f32 %v2951, %v2976
        %v2987 = vmul.f32 %v2952, %v2976
        %v2988 = vmul.f32 %v2953, %v2976
        %v2989 = vmul.f32 %v2954, %v2976
        %v2990 = vmul.f32 %v2955, %v2976
        %v2991 = vmul.f32 %v2956, %v2976
        %v2992 = vmul.f32 %v2957, %v2976
        %v2993 = vmul.f32 %v2958, %v2976
        %v2994 = vmul.f32 %v2959, %v2976
        %v2995 = vmul.f32 %v2960, %v2976
        %v2996 = vmul.f32 %v2961, %v2976
        %v2997 = vmul.f32 %v2962, %v2976
        %v2998 = vmul.f32 %v2963, %v2976
        %v2999 = vmul.f32 %v2964, %v2976
        %v3000 = vmul.f32 %v2965, %v2976
        %v3001 = vmul.f32 %v2966, %v2976
        %v3002 = vmul.f32 %v2967, %v2976
        %v3003 = vmul.f32 %v2968, %v2976
        %v3004 = vmul.f32 %v2969, %v2976
        %v3005 = vmul.f32 %v2970, %v2976
        %v3006 = vmul.f32 %v2971, %v2976
        %v3007 = vmul.f32 %v2972, %v2976
        %v3008 = vmul.f32 %v2973, %v2976
        %v3009 = vmul.f32 %v2974, %v2976
        %v3011 = vperm.slane %v279, 0
        %v3013 = vadd.f32 %v2978, %v3011
        %v3014 = vadd.f32 %v2979, %v3011
        %v3015 = vadd.f32 %v2980, %v3011
        %v3016 = vadd.f32 %v2981, %v3011
        %v3017 = vadd.f32 %v2982, %v3011
        %v3018 = vadd.f32 %v2983, %v3011
        %v3019 = vadd.f32 %v2984, %v3011
        %v3020 = vadd.f32 %v2985, %v3011
        %v3021 = vadd.f32 %v2986, %v3011
        %v3022 = vadd.f32 %v2987, %v3011
        %v3023 = vadd.f32 %v2988, %v3011
        %v3024 = vadd.f32 %v2989, %v3011
        %v3025 = vadd.f32 %v2990, %v3011
        %v3026 = vadd.f32 %v2991, %v3011
        %v3027 = vadd.f32 %v2992, %v3011
        %v3028 = vadd.f32 %v2993, %v3011
        %v3029 = vadd.f32 %v2994, %v3011
        %v3030 = vadd.f32 %v2995, %v3011
        %v3031 = vadd.f32 %v2996, %v3011
        %v3032 = vadd.f32 %v2997, %v3011
        %v3033 = vadd.f32 %v2998, %v3011
        %v3034 = vadd.f32 %v2999, %v3011
        %v3035 = vadd.f32 %v3000, %v3011
        %v3036 = vadd.f32 %v3001, %v3011
        %v3037 = vadd.f32 %v3002, %v3011
        %v3038 = vadd.f32 %v3003, %v3011
        %v3039 = vadd.f32 %v3004, %v3011
        %v3040 = vadd.f32 %v3005, %v3011
        %v3041 = vadd.f32 %v3006, %v3011
        %v3042 = vadd.f32 %v3007, %v3011
        %v3043 = vadd.f32 %v3008, %v3011
        %v3044 = vadd.f32 %v3009, %v3011
        %v3045 = vmax.f32 %v3013, 0.0
        %v3046 = vmax.f32 %v3014, 0.0
        %v3047 = vmax.f32 %v3015, 0.0
        %v3048 = vmax.f32 %v3016, 0.0
        %v3049 = vmax.f32 %v3017, 0.0
        %v3050 = vmax.f32 %v3018, 0.0
        %v3051 = vmax.f32 %v3019, 0.0
        %v3052 = vmax.f32 %v3020, 0.0
        %v3053 = vmax.f32 %v3021, 0.0
        %v3054 = vmax.f32 %v3022, 0.0
        %v3055 = vmax.f32 %v3023, 0.0
        %v3056 = vmax.f32 %v3024, 0.0
        %v3057 = vmax.f32 %v3025, 0.0
        %v3058 = vmax.f32 %v3026, 0.0
        %v3059 = vmax.f32 %v3027, 0.0
        %v3060 = vmax.f32 %v3028, 0.0
        %v3061 = vmax.f32 %v3029, 0.0
        %v3062 = vmax.f32 %v3030, 0.0
        %v3063 = vmax.f32 %v3031, 0.0
        %v3064 = vmax.f32 %v3032, 0.0
        %v3065 = vmax.f32 %v3033, 0.0
        %v3066 = vmax.f32 %v3034, 0.0
        %v3067 = vmax.f32 %v3035, 0.0
        %v3068 = vmax.f32 %v3036, 0.0
        %v3069 = vmax.f32 %v3037, 0.0
        %v3070 = vmax.f32 %v3038, 0.0
        %v3071 = vmax.f32 %v3039, 0.0
        %v3072 = vmax.f32 %v3040, 0.0
        %v3073 = vmax.f32 %v3041, 0.0
        %v3074 = vmax.f32 %v3042, 0.0
        %v3075 = vmax.f32 %v3043, 0.0
        %v3076 = vmax.f32 %v3044, 0.0
        %v3077 = vpack.c.bf16 %v3045, %v3045
        %v3078 = vpack.c.bf16 %v3046, %v3046
        %v3079 = vpack.c.bf16 %v3047, %v3047
        %v3080 = vpack.c.bf16 %v3048, %v3048
        %v3081 = vpack.c.bf16 %v3049, %v3049
        %v3082 = vpack.c.bf16 %v3050, %v3050
        %v3083 = vpack.c.bf16 %v3051, %v3051
        %v3084 = vpack.c.bf16 %v3052, %v3052
        %v3085 = vpack.c.bf16 %v3053, %v3053
        %v3086 = vpack.c.bf16 %v3054, %v3054
        %v3087 = vpack.c.bf16 %v3055, %v3055
        %v3088 = vpack.c.bf16 %v3056, %v3056
        %v3089 = vpack.c.bf16 %v3057, %v3057
        %v3090 = vpack.c.bf16 %v3058, %v3058
        %v3091 = vpack.c.bf16 %v3059, %v3059
        %v3092 = vpack.c.bf16 %v3060, %v3060
        %v3093 = vpack.c.bf16 %v3061, %v3061
        %v3094 = vpack.c.bf16 %v3062, %v3062
        %v3095 = vpack.c.bf16 %v3063, %v3063
        %v3096 = vpack.c.bf16 %v3064, %v3064
        %v3097 = vpack.c.bf16 %v3065, %v3065
        %v3098 = vpack.c.bf16 %v3066, %v3066
        %v3099 = vpack.c.bf16 %v3067, %v3067
        %v3100 = vpack.c.bf16 %v3068, %v3068
        %v3101 = vpack.c.bf16 %v3069, %v3069
        %v3102 = vpack.c.bf16 %v3070, %v3070
        %v3103 = vpack.c.bf16 %v3071, %v3071
        %v3104 = vpack.c.bf16 %v3072, %v3072
        %v3105 = vpack.c.bf16 %v3073, %v3073
        %v3106 = vpack.c.bf16 %v3074, %v3074
        %v3107 = vpack.c.bf16 %v3075, %v3075
        %v3108 = vpack.c.bf16 %v3076, %v3076
        %v3141 = vunpack.c.l.b16 %v3077
        %v3142 = vunpack.c.l.b16 %v3078
        %v3143 = vunpack.c.l.b16 %v3079
        %v3144 = vunpack.c.l.b16 %v3080
        %v3145 = vunpack.c.l.b16 %v3081
        %v3146 = vunpack.c.l.b16 %v3082
        %v3147 = vunpack.c.l.b16 %v3083
        %v3148 = vunpack.c.l.b16 %v3084
        %v3149 = vunpack.c.l.b16 %v3085
        %v3150 = vunpack.c.l.b16 %v3086
        %v3151 = vunpack.c.l.b16 %v3087
        %v3152 = vunpack.c.l.b16 %v3088
        %v3153 = vunpack.c.l.b16 %v3089
        %v3154 = vunpack.c.l.b16 %v3090
        %v3155 = vunpack.c.l.b16 %v3091
        %v3156 = vunpack.c.l.b16 %v3092
        %v3157 = vunpack.c.l.b16 %v3093
        %v3158 = vunpack.c.l.b16 %v3094
        %v3159 = vunpack.c.l.b16 %v3095
        %v3160 = vunpack.c.l.b16 %v3096
        %v3161 = vunpack.c.l.b16 %v3097
        %v3162 = vunpack.c.l.b16 %v3098
        %v3163 = vunpack.c.l.b16 %v3099
        %v3164 = vunpack.c.l.b16 %v3100
        %v3165 = vunpack.c.l.b16 %v3101
        %v3166 = vunpack.c.l.b16 %v3102
        %v3167 = vunpack.c.l.b16 %v3103
        %v3168 = vunpack.c.l.b16 %v3104
        %v3169 = vunpack.c.l.b16 %v3105
        %v3170 = vunpack.c.l.b16 %v3106
        %v3171 = vunpack.c.l.b16 %v3107
        %v3172 = vunpack.c.l.b16 %v3108
        %v3173 = vpack.c.b16 %v3142, %v3141
        %v3174 = vpack.c.b16 %v3144, %v3143
        %v3175 = vpack.c.b16 %v3146, %v3145
        %v3176 = vpack.c.b16 %v3148, %v3147
        %v3177 = vpack.c.b16 %v3150, %v3149
        %v3178 = vpack.c.b16 %v3152, %v3151
        %v3179 = vpack.c.b16 %v3154, %v3153
        %v3180 = vpack.c.b16 %v3156, %v3155
        %v3181 = vpack.c.b16 %v3158, %v3157
        %v3182 = vpack.c.b16 %v3160, %v3159
        %v3183 = vpack.c.b16 %v3162, %v3161
        %v3184 = vpack.c.b16 %v3164, %v3163
        %v3185 = vpack.c.b16 %v3166, %v3165
        %v3186 = vpack.c.b16 %v3168, %v3167
        %v3187 = vpack.c.b16 %v3170, %v3169
        %v3188 = vpack.c.b16 %v3172, %v3171
        %v3190 = vshrl.u32 %v3173, 16
        %v3192 = vrot.slane %v3190, 7
        %v3193 = vshll.u32 %v3173, 16
        %v3195 = vor.u32 %v3192, %v3193
        %v3197 = vshrl.u32 %v3174, 16
        %v3199 = vrot.slane %v3197, 7
        %v3200 = vshll.u32 %v3174, 16
        %v3202 = vor.u32 %v3199, %v3200
        %v3204 = vshrl.u32 %v3175, 16
        %v3206 = vrot.slane %v3204, 7
        %v3207 = vshll.u32 %v3175, 16
        %v3209 = vor.u32 %v3206, %v3207
        %v3211 = vshrl.u32 %v3176, 16
        %v3213 = vrot.slane %v3211, 7
        %v3214 = vshll.u32 %v3176, 16
        %v3216 = vor.u32 %v3213, %v3214
        %v3218 = vshrl.u32 %v3177, 16
        %v3220 = vrot.slane %v3218, 7
        %v3221 = vshll.u32 %v3177, 16
        %v3223 = vor.u32 %v3220, %v3221
        %v3225 = vshrl.u32 %v3178, 16
        %v3227 = vrot.slane %v3225, 7
        %v3228 = vshll.u32 %v3178, 16
        %v3230 = vor.u32 %v3227, %v3228
        %v3232 = vshrl.u32 %v3179, 16
        %v3234 = vrot.slane %v3232, 7
        %v3235 = vshll.u32 %v3179, 16
        %v3237 = vor.u32 %v3234, %v3235
        %v3239 = vshrl.u32 %v3180, 16
        %v3241 = vrot.slane %v3239, 7
        %v3242 = vshll.u32 %v3180, 16
        %v3244 = vor.u32 %v3241, %v3242
        %v3246 = vshrl.u32 %v3181, 16
        %v3248 = vrot.slane %v3246, 7
        %v3249 = vshll.u32 %v3181, 16
        %v3251 = vor.u32 %v3248, %v3249
        %v3253 = vshrl.u32 %v3182, 16
        %v3255 = vrot.slane %v3253, 7
        %v3256 = vshll.u32 %v3182, 16
        %v3258 = vor.u32 %v3255, %v3256
        %v3260 = vshrl.u32 %v3183, 16
        %v3262 = vrot.slane %v3260, 7
        %v3263 = vshll.u32 %v3183, 16
        %v3265 = vor.u32 %v3262, %v3263
        %v3267 = vshrl.u32 %v3184, 16
        %v3269 = vrot.slane %v3267, 7
        %v3270 = vshll.u32 %v3184, 16
        %v3272 = vor.u32 %v3269, %v3270
        %v3274 = vshrl.u32 %v3185, 16
        %v3276 = vrot.slane %v3274, 7
        %v3277 = vshll.u32 %v3185, 16
        %v3279 = vor.u32 %v3276, %v3277
        %v3281 = vshrl.u32 %v3186, 16
        %v3283 = vrot.slane %v3281, 7
        %v3284 = vshll.u32 %v3186, 16
        %v3286 = vor.u32 %v3283, %v3284
        %v3288 = vshrl.u32 %v3187, 16
        %v3290 = vrot.slane %v3288, 7
        %v3291 = vshll.u32 %v3187, 16
        %v3293 = vor.u32 %v3290, %v3291
        %v3295 = vshrl.u32 %v3188, 16
        %v3297 = vrot.slane %v3295, 7
        %v3298 = vshll.u32 %v3188, 16
        %v3300 = vor.u32 %v3297, %v3298
        %vm3333 = vcmask 1040384
        %vm3334 = vsmask.f32 256
        %vm3335 = vmand %vm3333, %vm3334
        %v3336 = vsel %vm3335, 0, %v3195
        %v3337 = vsel %vm3335, 0, %v3202
        %v3338 = vsel %vm3335, 0, %v3209
        %v3339 = vsel %vm3335, 0, %v3216
        %v3340 = vsel %vm3335, 0, %v3223
        %v3341 = vsel %vm3335, 0, %v3230
        %v3342 = vsel %vm3335, 0, %v3237
        %v3343 = vsel %vm3335, 0, %v3244
        %v3344 = vsel %vm3335, 0, %v3251
        %v3345 = vsel %vm3335, 0, %v3258
        %v3346 = vsel %vm3335, 0, %v3265
        %v3347 = vsel %vm3335, 0, %v3272
        %v3348 = vsel %vm3335, 0, %v3279
        %v3349 = vsel %vm3335, 0, %v3286
        %v3350 = vsel %vm3335, 0, %v3293
        %v3351 = vsel %vm3335, 0, %v3300
        %v3352 = vsel %vm3335, %v3192, 0
        %v3353 = vsel %vm3335, %v3199, 0
        %v3354 = vsel %vm3335, %v3206, 0
        %v3355 = vsel %vm3335, %v3213, 0
        %v3356 = vsel %vm3335, %v3220, 0
        %v3357 = vsel %vm3335, %v3227, 0
        %v3358 = vsel %vm3335, %v3234, 0
        %v3359 = vsel %vm3335, %v3241, 0
        %v3360 = vsel %vm3335, %v3248, 0
        %v3361 = vsel %vm3335, %v3255, 0
        %v3362 = vsel %vm3335, %v3262, 0
        %v3363 = vsel %vm3335, %v3269, 0
        %v3364 = vsel %vm3335, %v3276, 0
        %v3365 = vsel %vm3335, %v3283, 0
        %v3366 = vsel %vm3335, %v3290, 0
        %v3367 = vsel %vm3335, %v3297, 0
        %v3400 = vunpack.c.l.b16 %v3336
        %v3401 = vunpack.c.h.b16 %v3336
        %v3402 = vunpack.c.l.b16 %v3352
        %v3403 = vunpack.c.l.b16 %v3337
        %v3404 = vunpack.c.h.b16 %v3337
        %v3405 = vunpack.c.l.b16 %v3353
        %v3406 = vunpack.c.l.b16 %v3338
        %v3407 = vunpack.c.h.b16 %v3338
        %v3408 = vunpack.c.l.b16 %v3354
        %v3409 = vunpack.c.l.b16 %v3339
        %v3410 = vunpack.c.h.b16 %v3339
        %v3411 = vunpack.c.l.b16 %v3355
        %v3412 = vunpack.c.l.b16 %v3340
        %v3413 = vunpack.c.h.b16 %v3340
        %v3414 = vunpack.c.l.b16 %v3356
        %v3415 = vunpack.c.l.b16 %v3341
        %v3416 = vunpack.c.h.b16 %v3341
        %v3417 = vunpack.c.l.b16 %v3357
        %v3418 = vunpack.c.l.b16 %v3342
        %v3419 = vunpack.c.h.b16 %v3342
        %v3420 = vunpack.c.l.b16 %v3358
        %v3421 = vunpack.c.l.b16 %v3343
        %v3422 = vunpack.c.h.b16 %v3343
        %v3423 = vunpack.c.l.b16 %v3359
        %v3424 = vunpack.c.l.b16 %v3344
        %v3425 = vunpack.c.h.b16 %v3344
        %v3426 = vunpack.c.l.b16 %v3360
        %v3427 = vunpack.c.l.b16 %v3345
        %v3428 = vunpack.c.h.b16 %v3345
        %v3429 = vunpack.c.l.b16 %v3361
        %v3430 = vunpack.c.l.b16 %v3346
        %v3431 = vunpack.c.h.b16 %v3346
        %v3432 = vunpack.c.l.b16 %v3362
        %v3433 = vunpack.c.l.b16 %v3347
        %v3434 = vunpack.c.h.b16 %v3347
        %v3435 = vunpack.c.l.b16 %v3363
        %v3436 = vunpack.c.l.b16 %v3348
        %v3437 = vunpack.c.h.b16 %v3348
        %v3438 = vunpack.c.l.b16 %v3364
        %v3439 = vunpack.c.l.b16 %v3349
        %v3440 = vunpack.c.h.b16 %v3349
        %v3441 = vunpack.c.l.b16 %v3365
        %v3442 = vunpack.c.l.b16 %v3350
        %v3443 = vunpack.c.h.b16 %v3350
        %v3444 = vunpack.c.l.b16 %v3366
        %v3445 = vunpack.c.l.b16 %v3351
        %v3446 = vunpack.c.h.b16 %v3351
        %v3447 = vunpack.c.l.b16 %v3367
        %v3448 = vpack.c.b16 %v3400, %v3400
        %v3449 = vpack.c.b16 %v3401, %v3401
        %v3450 = vpack.c.b16 %v3402, %v3402
        %v3451 = vpack.c.b16 %v3403, %v3403
        %v3452 = vpack.c.b16 %v3404, %v3404
        %v3453 = vpack.c.b16 %v3405, %v3405
        %v3454 = vpack.c.b16 %v3406, %v3406
        %v3455 = vpack.c.b16 %v3407, %v3407
        %v3456 = vpack.c.b16 %v3408, %v3408
        %v3457 = vpack.c.b16 %v3409, %v3409
        %v3458 = vpack.c.b16 %v3410, %v3410
        %v3459 = vpack.c.b16 %v3411, %v3411
        %v3460 = vpack.c.b16 %v3412, %v3412
        %v3461 = vpack.c.b16 %v3413, %v3413
        %v3462 = vpack.c.b16 %v3414, %v3414
        %v3463 = vpack.c.b16 %v3415, %v3415
        %v3464 = vpack.c.b16 %v3416, %v3416
        %v3465 = vpack.c.b16 %v3417, %v3417
        %v3466 = vpack.c.b16 %v3418, %v3418
        %v3467 = vpack.c.b16 %v3419, %v3419
        %v3468 = vpack.c.b16 %v3420, %v3420
        %v3469 = vpack.c.b16 %v3421, %v3421
        %v3470 = vpack.c.b16 %v3422, %v3422
        %v3471 = vpack.c.b16 %v3423, %v3423
        %v3472 = vpack.c.b16 %v3424, %v3424
        %v3473 = vpack.c.b16 %v3425, %v3425
        %v3474 = vpack.c.b16 %v3426, %v3426
        %v3475 = vpack.c.b16 %v3427, %v3427
        %v3476 = vpack.c.b16 %v3428, %v3428
        %v3477 = vpack.c.b16 %v3429, %v3429
        %v3478 = vpack.c.b16 %v3430, %v3430
        %v3479 = vpack.c.b16 %v3431, %v3431
        %v3480 = vpack.c.b16 %v3432, %v3432
        %v3481 = vpack.c.b16 %v3433, %v3433
        %v3482 = vpack.c.b16 %v3434, %v3434
        %v3483 = vpack.c.b16 %v3435, %v3435
        %v3484 = vpack.c.b16 %v3436, %v3436
        %v3485 = vpack.c.b16 %v3437, %v3437
        %v3486 = vpack.c.b16 %v3438, %v3438
        %v3487 = vpack.c.b16 %v3439, %v3439
        %v3488 = vpack.c.b16 %v3440, %v3440
        %v3489 = vpack.c.b16 %v3441, %v3441
        %v3490 = vpack.c.b16 %v3442, %v3442
        %v3491 = vpack.c.b16 %v3443, %v3443
        %v3492 = vpack.c.b16 %v3444, %v3444
        %v3493 = vpack.c.b16 %v3445, %v3445
        %v3494 = vpack.c.b16 %v3446, %v3446
        %v3495 = vpack.c.b16 %v3447, %v3447
        %s3544 = scalar_lea.vmem [#allocation2], 12
        %3545 = vst.msk [vmem:[%s3544] sm:$0xf] %vm282, %v3448
        %3546 = vst.msk [vmem:[%s3544 + $0x4] sm:$0xf] %vm282, %v3449
        %3547 = vst.msk [vmem:[%s3544 + $0x8] sm:$0xf] %vm282, %v3450
        %3548 = vst.msk [vmem:[%s3544 + $0xc] sm:$0xf] %vm282, %v3451
        %3549 = vst.msk [vmem:[%s3544 + $0x10] sm:$0xf] %vm282, %v3452
        %3550 = vst.msk [vmem:[%s3544 + $0x14] sm:$0xf] %vm282, %v3453
        %3551 = vst.msk [vmem:[%s3544 + $0x18] sm:$0xf] %vm282, %v3454
        %3552 = vst.msk [vmem:[%s3544 + $0x1c] sm:$0xf] %vm282, %v3455
        %3553 = vst.msk [vmem:[%s3544 + $0x20] sm:$0xf] %vm282, %v3456
        %3554 = vst.msk [vmem:[%s3544 + $0x24] sm:$0xf] %vm282, %v3457
        %3555 = vst.msk [vmem:[%s3544 + $0x28] sm:$0xf] %vm282, %v3458
        %3556 = vst.msk [vmem:[%s3544 + $0x2c] sm:$0xf] %vm282, %v3459
        %3557 = vst.msk [vmem:[%s3544 + $0x30] sm:$0xf] %vm282, %v3460
        %3558 = vst.msk [vmem:[%s3544 + $0x34] sm:$0xf] %vm282, %v3461
        %3559 = vst.msk [vmem:[%s3544 + $0x38] sm:$0xf] %vm282, %v3462
        %3560 = vst.msk [vmem:[%s3544 + $0x3c] sm:$0xf] %vm282, %v3463
        %3561 = vst.msk [vmem:[%s3544 + $0x40] sm:$0xf] %vm282, %v3464
        %3562 = vst.msk [vmem:[%s3544 + $0x44] sm:$0xf] %vm282, %v3465
        %3563 = vst.msk [vmem:[%s3544 + $0x48] sm:$0xf] %vm282, %v3466
        %3564 = vst.msk [vmem:[%s3544 + $0x4c] sm:$0xf] %vm282, %v3467
        %3565 = vst.msk [vmem:[%s3544 + $0x50] sm:$0xf] %vm282, %v3468
        %3566 = vst.msk [vmem:[%s3544 + $0x54] sm:$0xf] %vm282, %v3469
        %3567 = vst.msk [vmem:[%s3544 + $0x58] sm:$0xf] %vm282, %v3470
        %3568 = vst.msk [vmem:[%s3544 + $0x5c] sm:$0xf] %vm282, %v3471
        %3569 = vst.msk [vmem:[%s3544 + $0x60] sm:$0xf] %vm282, %v3472
        %3570 = vst.msk [vmem:[%s3544 + $0x64] sm:$0xf] %vm282, %v3473
        %3571 = vst.msk [vmem:[%s3544 + $0x68] sm:$0xf] %vm282, %v3474
        %3572 = vst.msk [vmem:[%s3544 + $0x6c] sm:$0xf] %vm282, %v3475
        %3573 = vst.msk [vmem:[%s3544 + $0x70] sm:$0xf] %vm282, %v3476
        %3574 = vst.msk [vmem:[%s3544 + $0x74] sm:$0xf] %vm282, %v3477
        %3575 = vst.msk [vmem:[%s3544 + $0x78] sm:$0xf] %vm282, %v3478
        %3576 = vst.msk [vmem:[%s3544 + $0x7c] sm:$0xf] %vm282, %v3479
        %3577 = vst.msk [vmem:[%s3544 + $0x80] sm:$0xf] %vm282, %v3480
        %3578 = vst.msk [vmem:[%s3544 + $0x84] sm:$0xf] %vm282, %v3481
        %3579 = vst.msk [vmem:[%s3544 + $0x88] sm:$0xf] %vm282, %v3482
        %3580 = vst.msk [vmem:[%s3544 + $0x8c] sm:$0xf] %vm282, %v3483
        %3581 = vst.msk [vmem:[%s3544 + $0x90] sm:$0xf] %vm282, %v3484
        %3582 = vst.msk [vmem:[%s3544 + $0x94] sm:$0xf] %vm282, %v3485
        %3583 = vst.msk [vmem:[%s3544 + $0x98] sm:$0xf] %vm282, %v3486
        %3584 = vst.msk [vmem:[%s3544 + $0x9c] sm:$0xf] %vm282, %v3487
        %3585 = vst.msk [vmem:[%s3544 + $0xa0] sm:$0xf] %vm282, %v3488
        %3586 = vst.msk [vmem:[%s3544 + $0xa4] sm:$0xf] %vm282, %v3489
        %3587 = vst.msk [vmem:[%s3544 + $0xa8] sm:$0xf] %vm282, %v3490
        %3588 = vst.msk [vmem:[%s3544 + $0xac] sm:$0xf] %vm282, %v3491
        %3589 = vst.msk [vmem:[%s3544 + $0xb0] sm:$0xf] %vm282, %v3492
        %3590 = vst.msk [vmem:[%s3544 + $0xb4] sm:$0xf] %vm282, %v3493
        %3591 = vst.msk [vmem:[%s3544 + $0xb8] sm:$0xf] %vm282, %v3494
        %3592 = vst.msk [vmem:[%s3544 + $0xbc] sm:$0xf] %vm282, %v3495
        %v3593 = vld [vmem:[#allocation2] sm:$0xf]
        %v3594 = vld [vmem:[#allocation2 + $0x4] sm:$0xf]
        %v3595 = vld [vmem:[#allocation2 + $0xc] sm:$0xf]
        %v3596 = vld [vmem:[#allocation2 + $0x10] sm:$0xf]
        %v3597 = vld [vmem:[#allocation2 + $0x18] sm:$0xf]
        %v3598 = vld [vmem:[#allocation2 + $0x1c] sm:$0xf]
        %v3599 = vld [vmem:[#allocation2 + $0x24] sm:$0xf]
        %v3600 = vld [vmem:[#allocation2 + $0x28] sm:$0xf]
        %v3601 = vld [vmem:[#allocation2 + $0x30] sm:$0xf]
        %v3602 = vld [vmem:[#allocation2 + $0x34] sm:$0xf]
        %v3603 = vld [vmem:[#allocation2 + $0x3c] sm:$0xf]
        %v3604 = vld [vmem:[#allocation2 + $0x40] sm:$0xf]
        %v3605 = vld [vmem:[#allocation2 + $0x48] sm:$0xf]
        %v3606 = vld [vmem:[#allocation2 + $0x4c] sm:$0xf]
        %v3607 = vld [vmem:[#allocation2 + $0x54] sm:$0xf]
        %v3608 = vld [vmem:[#allocation2 + $0x58] sm:$0xf]
        %v3609 = vld [vmem:[#allocation2 + $0x60] sm:$0xf]
        %v3610 = vld [vmem:[#allocation2 + $0x64] sm:$0xf]
        %v3611 = vld [vmem:[#allocation2 + $0x6c] sm:$0xf]
        %v3612 = vld [vmem:[#allocation2 + $0x70] sm:$0xf]
        %v3613 = vld [vmem:[#allocation2 + $0x78] sm:$0xf]
        %v3614 = vld [vmem:[#allocation2 + $0x7c] sm:$0xf]
        %v3615 = vld [vmem:[#allocation2 + $0x84] sm:$0xf]
        %v3616 = vld [vmem:[#allocation2 + $0x88] sm:$0xf]
        %v3617 = vld [vmem:[#allocation2 + $0x90] sm:$0xf]
        %v3618 = vld [vmem:[#allocation2 + $0x94] sm:$0xf]
        %v3619 = vld [vmem:[#allocation2 + $0x9c] sm:$0xf]
        %v3620 = vld [vmem:[#allocation2 + $0xa0] sm:$0xf]
        %v3621 = vld [vmem:[#allocation2 + $0xa8] sm:$0xf]
        %v3622 = vld [vmem:[#allocation2 + $0xac] sm:$0xf]
        %v3623 = vld [vmem:[#allocation2 + $0xb4] sm:$0xf]
        %v3624 = vld [vmem:[#allocation2 + $0xb8] sm:$0xf]
        %v3625 = vld [vmem:[#allocation2 + $0x8] sm:$0x1]
        %v3626 = vld [vmem:[#allocation2 + $0x14] sm:$0x1]
        %v3627 = vld [vmem:[#allocation2 + $0x20] sm:$0x1]
        %v3628 = vld [vmem:[#allocation2 + $0x2c] sm:$0x1]
        %v3629 = vld [vmem:[#allocation2 + $0x38] sm:$0x1]
        %v3630 = vld [vmem:[#allocation2 + $0x44] sm:$0x1]
        %v3631 = vld [vmem:[#allocation2 + $0x50] sm:$0x1]
        %v3632 = vld [vmem:[#allocation2 + $0x5c] sm:$0x1]
        %v3633 = vld [vmem:[#allocation2 + $0x68] sm:$0x1]
        %v3634 = vld [vmem:[#allocation2 + $0x74] sm:$0x1]
        %v3635 = vld [vmem:[#allocation2 + $0x80] sm:$0x1]
        %v3636 = vld [vmem:[#allocation2 + $0x8c] sm:$0x1]
        %v3637 = vld [vmem:[#allocation2 + $0x98] sm:$0x1]
        %v3638 = vld [vmem:[#allocation2 + $0xa4] sm:$0x1]
        %v3639 = vld [vmem:[#allocation2 + $0xb0] sm:$0x1]
        %v3640 = vld [vmem:[#allocation2 + $0xbc] sm:$0x1]
        %v3641 = vld [vmem:[#allocation2] sm:$0xe]
        %v3642 = vld [vmem:[#allocation2 + $0xc] sm:$0xe]
        %v3643 = vld [vmem:[#allocation2 + $0x18] sm:$0xe]
        %v3644 = vld [vmem:[#allocation2 + $0x24] sm:$0xe]
        %v3645 = vld [vmem:[#allocation2 + $0x30] sm:$0xe]
        %v3646 = vld [vmem:[#allocation2 + $0x3c] sm:$0xe]
        %v3647 = vld [vmem:[#allocation2 + $0x48] sm:$0xe]
        %v3648 = vld [vmem:[#allocation2 + $0x54] sm:$0xe]
        %v3649 = vld [vmem:[#allocation2 + $0x60] sm:$0xe]
        %v3650 = vld [vmem:[#allocation2 + $0x6c] sm:$0xe]
        %v3651 = vld [vmem:[#allocation2 + $0x78] sm:$0xe]
        %v3652 = vld [vmem:[#allocation2 + $0x84] sm:$0xe]
        %v3653 = vld [vmem:[#allocation2 + $0x90] sm:$0xe]
        %v3654 = vld [vmem:[#allocation2 + $0x9c] sm:$0xe]
        %v3655 = vld [vmem:[#allocation2 + $0xa8] sm:$0xe]
        %v3656 = vld [vmem:[#allocation2 + $0xb4] sm:$0xe]
        %v3689 = vunpack.c.l.b16 %v3593
        %v3690 = vunpack.c.l.b16 %v3594
        %v3691 = vunpack.c.l.b16 %v3595
        %v3692 = vunpack.c.l.b16 %v3596
        %v3693 = vunpack.c.l.b16 %v3597
        %v3694 = vunpack.c.l.b16 %v3598
        %v3695 = vunpack.c.l.b16 %v3599
        %v3696 = vunpack.c.l.b16 %v3600
        %v3697 = vunpack.c.l.b16 %v3601
        %v3698 = vunpack.c.l.b16 %v3602
        %v3699 = vunpack.c.l.b16 %v3603
        %v3700 = vunpack.c.l.b16 %v3604
        %v3701 = vunpack.c.l.b16 %v3605
        %v3702 = vunpack.c.l.b16 %v3606
        %v3703 = vunpack.c.l.b16 %v3607
        %v3704 = vunpack.c.l.b16 %v3608
        %v3705 = vunpack.c.l.b16 %v3609
        %v3706 = vunpack.c.l.b16 %v3610
        %v3707 = vunpack.c.l.b16 %v3611
        %v3708 = vunpack.c.l.b16 %v3612
        %v3709 = vunpack.c.l.b16 %v3613
        %v3710 = vunpack.c.l.b16 %v3614
        %v3711 = vunpack.c.l.b16 %v3615
        %v3712 = vunpack.c.l.b16 %v3616
        %v3713 = vunpack.c.l.b16 %v3617
        %v3714 = vunpack.c.l.b16 %v3618
        %v3715 = vunpack.c.l.b16 %v3619
        %v3716 = vunpack.c.l.b16 %v3620
        %v3717 = vunpack.c.l.b16 %v3621
        %v3718 = vunpack.c.l.b16 %v3622
        %v3719 = vunpack.c.l.b16 %v3623
        %v3720 = vunpack.c.l.b16 %v3624
        %v3721 = vpack.c.b16 %v3690, %v3689
        %v3722 = vpack.c.b16 %v3692, %v3691
        %v3723 = vpack.c.b16 %v3694, %v3693
        %v3724 = vpack.c.b16 %v3696, %v3695
        %v3725 = vpack.c.b16 %v3698, %v3697
        %v3726 = vpack.c.b16 %v3700, %v3699
        %v3727 = vpack.c.b16 %v3702, %v3701
        %v3728 = vpack.c.b16 %v3704, %v3703
        %v3729 = vpack.c.b16 %v3706, %v3705
        %v3730 = vpack.c.b16 %v3708, %v3707
        %v3731 = vpack.c.b16 %v3710, %v3709
        %v3732 = vpack.c.b16 %v3712, %v3711
        %v3733 = vpack.c.b16 %v3714, %v3713
        %v3734 = vpack.c.b16 %v3716, %v3715
        %v3735 = vpack.c.b16 %v3718, %v3717
        %v3736 = vpack.c.b16 %v3720, %v3719
        %v3753 = vunpack.c.l.b16 %v3625
        %v3754 = vunpack.c.l.b16 %v3626
        %v3755 = vunpack.c.l.b16 %v3627
        %v3756 = vunpack.c.l.b16 %v3628
        %v3757 = vunpack.c.l.b16 %v3629
        %v3758 = vunpack.c.l.b16 %v3630
        %v3759 = vunpack.c.l.b16 %v3631
        %v3760 = vunpack.c.l.b16 %v3632
        %v3761 = vunpack.c.l.b16 %v3633
        %v3762 = vunpack.c.l.b16 %v3634
        %v3763 = vunpack.c.l.b16 %v3635
        %v3764 = vunpack.c.l.b16 %v3636
        %v3765 = vunpack.c.l.b16 %v3637
        %v3766 = vunpack.c.l.b16 %v3638
        %v3767 = vunpack.c.l.b16 %v3639
        %v3768 = vunpack.c.l.b16 %v3640
        %v3769 = vpack.c.b16 %v3753, %v3753
        %v3770 = vpack.c.b16 %v3754, %v3754
        %v3771 = vpack.c.b16 %v3755, %v3755
        %v3772 = vpack.c.b16 %v3756, %v3756
        %v3773 = vpack.c.b16 %v3757, %v3757
        %v3774 = vpack.c.b16 %v3758, %v3758
        %v3775 = vpack.c.b16 %v3759, %v3759
        %v3776 = vpack.c.b16 %v3760, %v3760
        %v3777 = vpack.c.b16 %v3761, %v3761
        %v3778 = vpack.c.b16 %v3762, %v3762
        %v3779 = vpack.c.b16 %v3763, %v3763
        %v3780 = vpack.c.b16 %v3764, %v3764
        %v3781 = vpack.c.b16 %v3765, %v3765
        %v3782 = vpack.c.b16 %v3766, %v3766
        %v3783 = vpack.c.b16 %v3767, %v3767
        %v3784 = vpack.c.b16 %v3768, %v3768
        %v3786 = vshrl.u32 %v3721, 16
        %v3788 = vshll.u32 %v3721, 16
        %v3790 = vrot.slane %v3788, 1
        %v3791 = vor.u32 %v3786, %v3790
        %v3793 = vshll.u32 %v3769, 16
        %v3795 = vrot.slane %v3793, 1
        %v3796 = vsel %vm482, %v3791, %v3795
        %v3798 = vshrl.u32 %v3722, 16
        %v3800 = vshll.u32 %v3722, 16
        %v3802 = vrot.slane %v3800, 1
        %v3803 = vor.u32 %v3798, %v3802
        %v3805 = vshll.u32 %v3770, 16
        %v3807 = vrot.slane %v3805, 1
        %v3808 = vsel %vm482, %v3803, %v3807
        %v3810 = vshrl.u32 %v3723, 16
        %v3812 = vshll.u32 %v3723, 16
        %v3814 = vrot.slane %v3812, 1
        %v3815 = vor.u32 %v3810, %v3814
        %v3817 = vshll.u32 %v3771, 16
        %v3819 = vrot.slane %v3817, 1
        %v3820 = vsel %vm482, %v3815, %v3819
        %v3822 = vshrl.u32 %v3724, 16
        %v3824 = vshll.u32 %v3724, 16
        %v3826 = vrot.slane %v3824, 1
        %v3827 = vor.u32 %v3822, %v3826
        %v3829 = vshll.u32 %v3772, 16
        %v3831 = vrot.slane %v3829, 1
        %v3832 = vsel %vm482, %v3827, %v3831
        %v3834 = vshrl.u32 %v3725, 16
        %v3836 = vshll.u32 %v3725, 16
        %v3838 = vrot.slane %v3836, 1
        %v3839 = vor.u32 %v3834, %v3838
        %v3841 = vshll.u32 %v3773, 16
        %v3843 = vrot.slane %v3841, 1
        %v3844 = vsel %vm482, %v3839, %v3843
        %v3846 = vshrl.u32 %v3726, 16
        %v3848 = vshll.u32 %v3726, 16
        %v3850 = vrot.slane %v3848, 1
        %v3851 = vor.u32 %v3846, %v3850
        %v3853 = vshll.u32 %v3774, 16
        %v3855 = vrot.slane %v3853, 1
        %v3856 = vsel %vm482, %v3851, %v3855
        %v3858 = vshrl.u32 %v3727, 16
        %v3860 = vshll.u32 %v3727, 16
        %v3862 = vrot.slane %v3860, 1
        %v3863 = vor.u32 %v3858, %v3862
        %v3865 = vshll.u32 %v3775, 16
        %v3867 = vrot.slane %v3865, 1
        %v3868 = vsel %vm482, %v3863, %v3867
        %v3870 = vshrl.u32 %v3728, 16
        %v3872 = vshll.u32 %v3728, 16
        %v3874 = vrot.slane %v3872, 1
        %v3875 = vor.u32 %v3870, %v3874
        %v3877 = vshll.u32 %v3776, 16
        %v3879 = vrot.slane %v3877, 1
        %v3880 = vsel %vm482, %v3875, %v3879
        %v3882 = vshrl.u32 %v3729, 16
        %v3884 = vshll.u32 %v3729, 16
        %v3886 = vrot.slane %v3884, 1
        %v3887 = vor.u32 %v3882, %v3886
        %v3889 = vshll.u32 %v3777, 16
        %v3891 = vrot.slane %v3889, 1
        %v3892 = vsel %vm482, %v3887, %v3891
        %v3894 = vshrl.u32 %v3730, 16
        %v3896 = vshll.u32 %v3730, 16
        %v3898 = vrot.slane %v3896, 1
        %v3899 = vor.u32 %v3894, %v3898
        %v3901 = vshll.u32 %v3778, 16
        %v3903 = vrot.slane %v3901, 1
        %v3904 = vsel %vm482, %v3899, %v3903
        %v3906 = vshrl.u32 %v3731, 16
        %v3908 = vshll.u32 %v3731, 16
        %v3910 = vrot.slane %v3908, 1
        %v3911 = vor.u32 %v3906, %v3910
        %v3913 = vshll.u32 %v3779, 16
        %v3915 = vrot.slane %v3913, 1
        %v3916 = vsel %vm482, %v3911, %v3915
        %v3918 = vshrl.u32 %v3732, 16
        %v3920 = vshll.u32 %v3732, 16
        %v3922 = vrot.slane %v3920, 1
        %v3923 = vor.u32 %v3918, %v3922
        %v3925 = vshll.u32 %v3780, 16
        %v3927 = vrot.slane %v3925, 1
        %v3928 = vsel %vm482, %v3923, %v3927
        %v3930 = vshrl.u32 %v3733, 16
        %v3932 = vshll.u32 %v3733, 16
        %v3934 = vrot.slane %v3932, 1
        %v3935 = vor.u32 %v3930, %v3934
        %v3937 = vshll.u32 %v3781, 16
        %v3939 = vrot.slane %v3937, 1
        %v3940 = vsel %vm482, %v3935, %v3939
        %v3942 = vshrl.u32 %v3734, 16
        %v3944 = vshll.u32 %v3734, 16
        %v3946 = vrot.slane %v3944, 1
        %v3947 = vor.u32 %v3942, %v3946
        %v3949 = vshll.u32 %v3782, 16
        %v3951 = vrot.slane %v3949, 1
        %v3952 = vsel %vm482, %v3947, %v3951
        %v3954 = vshrl.u32 %v3735, 16
        %v3956 = vshll.u32 %v3735, 16
        %v3958 = vrot.slane %v3956, 1
        %v3959 = vor.u32 %v3954, %v3958
        %v3961 = vshll.u32 %v3783, 16
        %v3963 = vrot.slane %v3961, 1
        %v3964 = vsel %vm482, %v3959, %v3963
        %v3966 = vshrl.u32 %v3736, 16
        %v3968 = vshll.u32 %v3736, 16
        %v3970 = vrot.slane %v3968, 1
        %v3971 = vor.u32 %v3966, %v3970
        %v3973 = vshll.u32 %v3784, 16
        %v3975 = vrot.slane %v3973, 1
        %v3976 = vsel %vm482, %v3971, %v3975
        %3977 = vrot.lane.b32.xlu0 %v3796, 64
        %v3978 = vpop.permute.xlu0 %3977
        %3979 = vrot.lane.b32.xlu0 %v3808, 64
        %v3980 = vpop.permute.xlu0 %3979
        %3981 = vrot.lane.b32.xlu0 %v3820, 64
        %v3982 = vpop.permute.xlu0 %3981
        %3983 = vrot.lane.b32.xlu0 %v3832, 64
        %v3984 = vpop.permute.xlu0 %3983
        %3985 = vrot.lane.b32.xlu0 %v3844, 64
        %v3986 = vpop.permute.xlu0 %3985
        %3987 = vrot.lane.b32.xlu0 %v3856, 64
        %v3988 = vpop.permute.xlu0 %3987
        %3989 = vrot.lane.b32.xlu0 %v3868, 64
        %v3990 = vpop.permute.xlu0 %3989
        %3991 = vrot.lane.b32.xlu0 %v3880, 64
        %v3992 = vpop.permute.xlu0 %3991
        %3993 = vrot.lane.b32.xlu0 %v3892, 64
        %v3994 = vpop.permute.xlu0 %3993
        %3995 = vrot.lane.b32.xlu0 %v3904, 64
        %v3996 = vpop.permute.xlu0 %3995
        %3997 = vrot.lane.b32.xlu0 %v3916, 64
        %v3998 = vpop.permute.xlu0 %3997
        %3999 = vrot.lane.b32.xlu0 %v3928, 64
        %v4000 = vpop.permute.xlu0 %3999
        %4001 = vrot.lane.b32.xlu0 %v3940, 64
        %v4002 = vpop.permute.xlu0 %4001
        %4003 = vrot.lane.b32.xlu0 %v3952, 64
        %v4004 = vpop.permute.xlu0 %4003
        %4005 = vrot.lane.b32.xlu0 %v3964, 64
        %v4006 = vpop.permute.xlu0 %4005
        %4007 = vrot.lane.b32.xlu0 %v3976, 64
        %v4008 = vpop.permute.xlu0 %4007
        %v4025 = vunpack.c.l.b16 %v3641
        %v4026 = vunpack.c.l.b16 %v3642
        %v4027 = vunpack.c.l.b16 %v3643
        %v4028 = vunpack.c.l.b16 %v3644
        %v4029 = vunpack.c.l.b16 %v3645
        %v4030 = vunpack.c.l.b16 %v3646
        %v4031 = vunpack.c.l.b16 %v3647
        %v4032 = vunpack.c.l.b16 %v3648
        %v4033 = vunpack.c.l.b16 %v3649
        %v4034 = vunpack.c.l.b16 %v3650
        %v4035 = vunpack.c.l.b16 %v3651
        %v4036 = vunpack.c.l.b16 %v3652
        %v4037 = vunpack.c.l.b16 %v3653
        %v4038 = vunpack.c.l.b16 %v3654
        %v4039 = vunpack.c.l.b16 %v3655
        %v4040 = vunpack.c.l.b16 %v3656
        %v4041 = vpack.c.b16 %v3690, %v4025
        %v4042 = vpack.c.b16 %v3692, %v4026
        %v4043 = vpack.c.b16 %v3694, %v4027
        %v4044 = vpack.c.b16 %v3696, %v4028
        %v4045 = vpack.c.b16 %v3698, %v4029
        %v4046 = vpack.c.b16 %v3700, %v4030
        %v4047 = vpack.c.b16 %v3702, %v4031
        %v4048 = vpack.c.b16 %v3704, %v4032
        %v4049 = vpack.c.b16 %v3706, %v4033
        %v4050 = vpack.c.b16 %v3708, %v4034
        %v4051 = vpack.c.b16 %v3710, %v4035
        %v4052 = vpack.c.b16 %v3712, %v4036
        %v4053 = vpack.c.b16 %v3714, %v4037
        %v4054 = vpack.c.b16 %v3716, %v4038
        %v4055 = vpack.c.b16 %v3718, %v4039
        %v4056 = vpack.c.b16 %v3720, %v4040
        %v4057 = vrot.slane %v4041, 1
        %v4058 = vrot.slane %v3769, 1
        %v4059 = vsel %vm755, %v4057, %v4058
        %v4060 = vrot.slane %v4042, 1
        %v4061 = vrot.slane %v3770, 1
        %v4062 = vsel %vm755, %v4060, %v4061
        %v4063 = vrot.slane %v4043, 1
        %v4064 = vrot.slane %v3771, 1
        %v4065 = vsel %vm755, %v4063, %v4064
        %v4066 = vrot.slane %v4044, 1
        %v4067 = vrot.slane %v3772, 1
        %v4068 = vsel %vm755, %v4066, %v4067
        %v4069 = vrot.slane %v4045, 1
        %v4070 = vrot.slane %v3773, 1
        %v4071 = vsel %vm755, %v4069, %v4070
        %v4072 = vrot.slane %v4046, 1
        %v4073 = vrot.slane %v3774, 1
        %v4074 = vsel %vm755, %v4072, %v4073
        %v4075 = vrot.slane %v4047, 1
        %v4076 = vrot.slane %v3775, 1
        %v4077 = vsel %vm755, %v4075, %v4076
        %v4078 = vrot.slane %v4048, 1
        %v4079 = vrot.slane %v3776, 1
        %v4080 = vsel %vm755, %v4078, %v4079
        %v4081 = vrot.slane %v4049, 1
        %v4082 = vrot.slane %v3777, 1
        %v4083 = vsel %vm755, %v4081, %v4082
        %v4084 = vrot.slane %v4050, 1
        %v4085 = vrot.slane %v3778, 1
        %v4086 = vsel %vm755, %v4084, %v4085
        %v4087 = vrot.slane %v4051, 1
        %v4088 = vrot.slane %v3779, 1
        %v4089 = vsel %vm755, %v4087, %v4088
        %v4090 = vrot.slane %v4052, 1
        %v4091 = vrot.slane %v3780, 1
        %v4092 = vsel %vm755, %v4090, %v4091
        %v4093 = vrot.slane %v4053, 1
        %v4094 = vrot.slane %v3781, 1
        %v4095 = vsel %vm755, %v4093, %v4094
        %v4096 = vrot.slane %v4054, 1
        %v4097 = vrot.slane %v3782, 1
        %v4098 = vsel %vm755, %v4096, %v4097
        %v4099 = vrot.slane %v4055, 1
        %v4100 = vrot.slane %v3783, 1
        %v4101 = vsel %vm755, %v4099, %v4100
        %v4102 = vrot.slane %v4056, 1
        %v4103 = vrot.slane %v3784, 1
        %v4104 = vsel %vm755, %v4102, %v4103
        %v4106 = vsel %vm804, %v3721, %v3978
        %v4109 = vsel %vm804, %v3722, %v3980
        %v4112 = vsel %vm804, %v3723, %v3982
        %v4115 = vsel %vm804, %v3724, %v3984
        %v4118 = vsel %vm804, %v3725, %v3986
        %v4121 = vsel %vm804, %v3726, %v3988
        %v4124 = vsel %vm804, %v3727, %v3990
        %v4127 = vsel %vm804, %v3728, %v3992
        %v4130 = vsel %vm804, %v3729, %v3994
        %v4133 = vsel %vm804, %v3730, %v3996
        %v4136 = vsel %vm804, %v3731, %v3998
        %v4139 = vsel %vm804, %v3732, %v4000
        %v4142 = vsel %vm804, %v3733, %v4002
        %v4145 = vsel %vm804, %v3734, %v4004
        %v4148 = vsel %vm804, %v3735, %v4006
        %v4151 = vsel %vm804, %v3736, %v4008
        %v4153 = vld [vmem:[%s4] sm:$0xf]
        %v4154 = vld [vmem:[%s4 + $0x4] sm:$0xf]
        %v4155 = vld [vmem:[%s4 + $0x8] sm:$0xf]
        %v4156 = vld [vmem:[%s4 + $0xc] sm:$0xf]
        %v4157 = vld [vmem:[%s4 + $0x10] sm:$0xf]
        %v4158 = vld [vmem:[%s4 + $0x14] sm:$0xf]
        %v4159 = vld [vmem:[%s4 + $0x18] sm:$0xf]
        %v4160 = vld [vmem:[%s4 + $0x1c] sm:$0xf]
        %v4161 = vld [vmem:[%s4 + $0x20] sm:$0xf]
        %v4162 = vld [vmem:[%s4 + $0x24] sm:$0xf]
        %v4163 = vld [vmem:[%s4 + $0x28] sm:$0xf]
        %v4164 = vld [vmem:[%s4 + $0x2c] sm:$0xf]
        %v4165 = vld [vmem:[%s4 + $0x30] sm:$0xf]
        %v4166 = vld [vmem:[%s4 + $0x34] sm:$0xf]
        %v4167 = vld [vmem:[%s4 + $0x38] sm:$0xf]
        %v4168 = vld [vmem:[%s4 + $0x3c] sm:$0xf]
        %v4169 = vld [vmem:[%s4 + $0x40] sm:$0xf]
        %v4170 = vld [vmem:[%s4 + $0x44] sm:$0xf]
        %v4171 = vld [vmem:[%s4 + $0x48] sm:$0xf]
        %v4172 = vld [vmem:[%s4 + $0x4c] sm:$0xf]
        %v4173 = vld [vmem:[%s4 + $0x50] sm:$0xf]
        %v4174 = vld [vmem:[%s4 + $0x54] sm:$0xf]
        %v4175 = vld [vmem:[%s4 + $0x58] sm:$0xf]
        %v4176 = vld [vmem:[%s4 + $0x5c] sm:$0xf]
        %v4177 = vld [vmem:[%s3544] sm:$0xf]
        %v4178 = vld [vmem:[%s3544 + $0x4] sm:$0xf]
        %v4179 = vld [vmem:[%s3544 + $0xc] sm:$0xf]
        %v4180 = vld [vmem:[%s3544 + $0x10] sm:$0xf]
        %v4181 = vld [vmem:[%s3544 + $0x18] sm:$0xf]
        %v4182 = vld [vmem:[%s3544 + $0x1c] sm:$0xf]
        %v4183 = vld [vmem:[%s3544 + $0x24] sm:$0xf]
        %v4184 = vld [vmem:[%s3544 + $0x28] sm:$0xf]
        %v4185 = vld [vmem:[%s3544 + $0x30] sm:$0xf]
        %v4186 = vld [vmem:[%s3544 + $0x34] sm:$0xf]
        %v4187 = vld [vmem:[%s3544 + $0x3c] sm:$0xf]
        %v4188 = vld [vmem:[%s3544 + $0x40] sm:$0xf]
        %v4189 = vld [vmem:[%s3544 + $0x48] sm:$0xf]
        %v4190 = vld [vmem:[%s3544 + $0x4c] sm:$0xf]
        %v4191 = vld [vmem:[%s3544 + $0x54] sm:$0xf]
        %v4192 = vld [vmem:[%s3544 + $0x58] sm:$0xf]
        %v4193 = vld [vmem:[%s3544 + $0x60] sm:$0xf]
        %v4194 = vld [vmem:[%s3544 + $0x64] sm:$0xf]
        %v4195 = vld [vmem:[%s3544 + $0x6c] sm:$0xf]
        %v4196 = vld [vmem:[%s3544 + $0x70] sm:$0xf]
        %v4197 = vld [vmem:[%s3544 + $0x78] sm:$0xf]
        %v4198 = vld [vmem:[%s3544 + $0x7c] sm:$0xf]
        %v4199 = vld [vmem:[%s3544 + $0x84] sm:$0xf]
        %v4200 = vld [vmem:[%s3544 + $0x88] sm:$0xf]
        %v4201 = vld [vmem:[%s3544 + $0x90] sm:$0xf]
        %v4202 = vld [vmem:[%s3544 + $0x94] sm:$0xf]
        %v4203 = vld [vmem:[%s3544 + $0x9c] sm:$0xf]
        %v4204 = vld [vmem:[%s3544 + $0xa0] sm:$0xf]
        %v4205 = vld [vmem:[%s3544 + $0xa8] sm:$0xf]
        %v4206 = vld [vmem:[%s3544 + $0xac] sm:$0xf]
        %v4207 = vld [vmem:[%s3544 + $0xb4] sm:$0xf]
        %v4208 = vld [vmem:[%s3544 + $0xb8] sm:$0xf]
        %v4209 = vld [vmem:[%s3544 + $0x8] sm:$0x1]
        %v4210 = vld [vmem:[%s3544 + $0x14] sm:$0x1]
        %v4211 = vld [vmem:[%s3544 + $0x20] sm:$0x1]
        %v4212 = vld [vmem:[%s3544 + $0x2c] sm:$0x1]
        %v4213 = vld [vmem:[%s3544 + $0x38] sm:$0x1]
        %v4214 = vld [vmem:[%s3544 + $0x44] sm:$0x1]
        %v4215 = vld [vmem:[%s3544 + $0x50] sm:$0x1]
        %v4216 = vld [vmem:[%s3544 + $0x5c] sm:$0x1]
        %v4217 = vld [vmem:[%s3544 + $0x68] sm:$0x1]
        %v4218 = vld [vmem:[%s3544 + $0x74] sm:$0x1]
        %v4219 = vld [vmem:[%s3544 + $0x80] sm:$0x1]
        %v4220 = vld [vmem:[%s3544 + $0x8c] sm:$0x1]
        %v4221 = vld [vmem:[%s3544 + $0x98] sm:$0x1]
        %v4222 = vld [vmem:[%s3544 + $0xa4] sm:$0x1]
        %v4223 = vld [vmem:[%s3544 + $0xb0] sm:$0x1]
        %v4224 = vld [vmem:[%s3544 + $0xbc] sm:$0x1]
        %v4225 = vld [vmem:[%s3544] sm:$0xe]
        %v4226 = vld [vmem:[%s3544 + $0xc] sm:$0xe]
        %v4227 = vld [vmem:[%s3544 + $0x18] sm:$0xe]
        %v4228 = vld [vmem:[%s3544 + $0x24] sm:$0xe]
        %v4229 = vld [vmem:[%s3544 + $0x30] sm:$0xe]
        %v4230 = vld [vmem:[%s3544 + $0x3c] sm:$0xe]
        %v4231 = vld [vmem:[%s3544 + $0x48] sm:$0xe]
        %v4232 = vld [vmem:[%s3544 + $0x54] sm:$0xe]
        %v4233 = vld [vmem:[%s3544 + $0x60] sm:$0xe]
        %v4234 = vld [vmem:[%s3544 + $0x6c] sm:$0xe]
        %v4235 = vld [vmem:[%s3544 + $0x78] sm:$0xe]
        %v4236 = vld [vmem:[%s3544 + $0x84] sm:$0xe]
        %v4237 = vld [vmem:[%s3544 + $0x90] sm:$0xe]
        %v4238 = vld [vmem:[%s3544 + $0x9c] sm:$0xe]
        %v4239 = vld [vmem:[%s3544 + $0xa8] sm:$0xe]
        %v4240 = vld [vmem:[%s3544 + $0xb4] sm:$0xe]
        %v4273 = vunpack.c.l.b16 %v4177
        %v4274 = vunpack.c.l.b16 %v4178
        %v4275 = vunpack.c.l.b16 %v4179
        %v4276 = vunpack.c.l.b16 %v4180
        %v4277 = vunpack.c.l.b16 %v4181
        %v4278 = vunpack.c.l.b16 %v4182
        %v4279 = vunpack.c.l.b16 %v4183
        %v4280 = vunpack.c.l.b16 %v4184
        %v4281 = vunpack.c.l.b16 %v4185
        %v4282 = vunpack.c.l.b16 %v4186
        %v4283 = vunpack.c.l.b16 %v4187
        %v4284 = vunpack.c.l.b16 %v4188
        %v4285 = vunpack.c.l.b16 %v4189
        %v4286 = vunpack.c.l.b16 %v4190
        %v4287 = vunpack.c.l.b16 %v4191
        %v4288 = vunpack.c.l.b16 %v4192
        %v4289 = vunpack.c.l.b16 %v4193
        %v4290 = vunpack.c.l.b16 %v4194
        %v4291 = vunpack.c.l.b16 %v4195
        %v4292 = vunpack.c.l.b16 %v4196
        %v4293 = vunpack.c.l.b16 %v4197
        %v4294 = vunpack.c.l.b16 %v4198
        %v4295 = vunpack.c.l.b16 %v4199
        %v4296 = vunpack.c.l.b16 %v4200
        %v4297 = vunpack.c.l.b16 %v4201
        %v4298 = vunpack.c.l.b16 %v4202
        %v4299 = vunpack.c.l.b16 %v4203
        %v4300 = vunpack.c.l.b16 %v4204
        %v4301 = vunpack.c.l.b16 %v4205
        %v4302 = vunpack.c.l.b16 %v4206
        %v4303 = vunpack.c.l.b16 %v4207
        %v4304 = vunpack.c.l.b16 %v4208
        %v4305 = vpack.c.b16 %v4274, %v4273
        %v4306 = vpack.c.b16 %v4276, %v4275
        %v4307 = vpack.c.b16 %v4278, %v4277
        %v4308 = vpack.c.b16 %v4280, %v4279
        %v4309 = vpack.c.b16 %v4282, %v4281
        %v4310 = vpack.c.b16 %v4284, %v4283
        %v4311 = vpack.c.b16 %v4286, %v4285
        %v4312 = vpack.c.b16 %v4288, %v4287
        %v4313 = vpack.c.b16 %v4290, %v4289
        %v4314 = vpack.c.b16 %v4292, %v4291
        %v4315 = vpack.c.b16 %v4294, %v4293
        %v4316 = vpack.c.b16 %v4296, %v4295
        %v4317 = vpack.c.b16 %v4298, %v4297
        %v4318 = vpack.c.b16 %v4300, %v4299
        %v4319 = vpack.c.b16 %v4302, %v4301
        %v4320 = vpack.c.b16 %v4304, %v4303
        %v4337 = vunpack.c.l.b16 %v4209
        %v4338 = vunpack.c.l.b16 %v4210
        %v4339 = vunpack.c.l.b16 %v4211
        %v4340 = vunpack.c.l.b16 %v4212
        %v4341 = vunpack.c.l.b16 %v4213
        %v4342 = vunpack.c.l.b16 %v4214
        %v4343 = vunpack.c.l.b16 %v4215
        %v4344 = vunpack.c.l.b16 %v4216
        %v4345 = vunpack.c.l.b16 %v4217
        %v4346 = vunpack.c.l.b16 %v4218
        %v4347 = vunpack.c.l.b16 %v4219
        %v4348 = vunpack.c.l.b16 %v4220
        %v4349 = vunpack.c.l.b16 %v4221
        %v4350 = vunpack.c.l.b16 %v4222
        %v4351 = vunpack.c.l.b16 %v4223
        %v4352 = vunpack.c.l.b16 %v4224
        %v4353 = vpack.c.b16 %v4337, %v4337
        %v4354 = vpack.c.b16 %v4338, %v4338
        %v4355 = vpack.c.b16 %v4339, %v4339
        %v4356 = vpack.c.b16 %v4340, %v4340
        %v4357 = vpack.c.b16 %v4341, %v4341
        %v4358 = vpack.c.b16 %v4342, %v4342
        %v4359 = vpack.c.b16 %v4343, %v4343
        %v4360 = vpack.c.b16 %v4344, %v4344
        %v4361 = vpack.c.b16 %v4345, %v4345
        %v4362 = vpack.c.b16 %v4346, %v4346
        %v4363 = vpack.c.b16 %v4347, %v4347
        %v4364 = vpack.c.b16 %v4348, %v4348
        %v4365 = vpack.c.b16 %v4349, %v4349
        %v4366 = vpack.c.b16 %v4350, %v4350
        %v4367 = vpack.c.b16 %v4351, %v4351
        %v4368 = vpack.c.b16 %v4352, %v4352
        %v4370 = vshrl.u32 %v4305, 16
        %v4372 = vshll.u32 %v4305, 16
        %v4374 = vrot.slane %v4372, 1
        %v4375 = vor.u32 %v4370, %v4374
        %v4377 = vshll.u32 %v4353, 16
        %v4379 = vrot.slane %v4377, 1
        %v4380 = vsel %vm482, %v4375, %v4379
        %v4382 = vshrl.u32 %v4306, 16
        %v4384 = vshll.u32 %v4306, 16
        %v4386 = vrot.slane %v4384, 1
        %v4387 = vor.u32 %v4382, %v4386
        %v4389 = vshll.u32 %v4354, 16
        %v4391 = vrot.slane %v4389, 1
        %v4392 = vsel %vm482, %v4387, %v4391
        %v4394 = vshrl.u32 %v4307, 16
        %v4396 = vshll.u32 %v4307, 16
        %v4398 = vrot.slane %v4396, 1
        %v4399 = vor.u32 %v4394, %v4398
        %v4401 = vshll.u32 %v4355, 16
        %v4403 = vrot.slane %v4401, 1
        %v4404 = vsel %vm482, %v4399, %v4403
        %v4406 = vshrl.u32 %v4308, 16
        %v4408 = vshll.u32 %v4308, 16
        %v4410 = vrot.slane %v4408, 1
        %v4411 = vor.u32 %v4406, %v4410
        %v4413 = vshll.u32 %v4356, 16
        %v4415 = vrot.slane %v4413, 1
        %v4416 = vsel %vm482, %v4411, %v4415
        %v4418 = vshrl.u32 %v4309, 16
        %v4420 = vshll.u32 %v4309, 16
        %v4422 = vrot.slane %v4420, 1
        %v4423 = vor.u32 %v4418, %v4422
        %v4425 = vshll.u32 %v4357, 16
        %v4427 = vrot.slane %v4425, 1
        %v4428 = vsel %vm482, %v4423, %v4427
        %v4430 = vshrl.u32 %v4310, 16
        %v4432 = vshll.u32 %v4310, 16
        %v4434 = vrot.slane %v4432, 1
        %v4435 = vor.u32 %v4430, %v4434
        %v4437 = vshll.u32 %v4358, 16
        %v4439 = vrot.slane %v4437, 1
        %v4440 = vsel %vm482, %v4435, %v4439
        %v4442 = vshrl.u32 %v4311, 16
        %v4444 = vshll.u32 %v4311, 16
        %v4446 = vrot.slane %v4444, 1
        %v4447 = vor.u32 %v4442, %v4446
        %v4449 = vshll.u32 %v4359, 16
        %v4451 = vrot.slane %v4449, 1
        %v4452 = vsel %vm482, %v4447, %v4451
        %v4454 = vshrl.u32 %v4312, 16
        %v4456 = vshll.u32 %v4312, 16
        %v4458 = vrot.slane %v4456, 1
        %v4459 = vor.u32 %v4454, %v4458
        %v4461 = vshll.u32 %v4360, 16
        %v4463 = vrot.slane %v4461, 1
        %v4464 = vsel %vm482, %v4459, %v4463
        %v4466 = vshrl.u32 %v4313, 16
        %v4468 = vshll.u32 %v4313, 16
        %v4470 = vrot.slane %v4468, 1
        %v4471 = vor.u32 %v4466, %v4470
        %v4473 = vshll.u32 %v4361, 16
        %v4475 = vrot.slane %v4473, 1
        %v4476 = vsel %vm482, %v4471, %v4475
        %v4478 = vshrl.u32 %v4314, 16
        %v4480 = vshll.u32 %v4314, 16
        %v4482 = vrot.slane %v4480, 1
        %v4483 = vor.u32 %v4478, %v4482
        %v4485 = vshll.u32 %v4362, 16
        %v4487 = vrot.slane %v4485, 1
        %v4488 = vsel %vm482, %v4483, %v4487
        %v4490 = vshrl.u32 %v4315, 16
        %v4492 = vshll.u32 %v4315, 16
        %v4494 = vrot.slane %v4492, 1
        %v4495 = vor.u32 %v4490, %v4494
        %v4497 = vshll.u32 %v4363, 16
        %v4499 = vrot.slane %v4497, 1
        %v4500 = vsel %vm482, %v4495, %v4499
        %v4502 = vshrl.u32 %v4316, 16
        %v4504 = vshll.u32 %v4316, 16
        %v4506 = vrot.slane %v4504, 1
        %v4507 = vor.u32 %v4502, %v4506
        %v4509 = vshll.u32 %v4364, 16
        %v4511 = vrot.slane %v4509, 1
        %v4512 = vsel %vm482, %v4507, %v4511
        %v4514 = vshrl.u32 %v4317, 16
        %v4516 = vshll.u32 %v4317, 16
        %v4518 = vrot.slane %v4516, 1
        %v4519 = vor.u32 %v4514, %v4518
        %v4521 = vshll.u32 %v4365, 16
        %v4523 = vrot.slane %v4521, 1
        %v4524 = vsel %vm482, %v4519, %v4523
        %v4526 = vshrl.u32 %v4318, 16
        %v4528 = vshll.u32 %v4318, 16
        %v4530 = vrot.slane %v4528, 1
        %v4531 = vor.u32 %v4526, %v4530
        %v4533 = vshll.u32 %v4366, 16
        %v4535 = vrot.slane %v4533, 1
        %v4536 = vsel %vm482, %v4531, %v4535
        %v4538 = vshrl.u32 %v4319, 16
        %v4540 = vshll.u32 %v4319, 16
        %v4542 = vrot.slane %v4540, 1
        %v4543 = vor.u32 %v4538, %v4542
        %v4545 = vshll.u32 %v4367, 16
        %v4547 = vrot.slane %v4545, 1
        %v4548 = vsel %vm482, %v4543, %v4547
        %v4550 = vshrl.u32 %v4320, 16
        %v4552 = vshll.u32 %v4320, 16
        %v4554 = vrot.slane %v4552, 1
        %v4555 = vor.u32 %v4550, %v4554
        %v4557 = vshll.u32 %v4368, 16
        %v4559 = vrot.slane %v4557, 1
        %v4560 = vsel %vm482, %v4555, %v4559
        %4561 = vrot.lane.b32.xlu0 %v4380, 64
        %v4562 = vpop.permute.xlu0 %4561
        %4563 = vrot.lane.b32.xlu0 %v4392, 64
        %v4564 = vpop.permute.xlu0 %4563
        %4565 = vrot.lane.b32.xlu0 %v4404, 64
        %v4566 = vpop.permute.xlu0 %4565
        %4567 = vrot.lane.b32.xlu0 %v4416, 64
        %v4568 = vpop.permute.xlu0 %4567
        %4569 = vrot.lane.b32.xlu0 %v4428, 64
        %v4570 = vpop.permute.xlu0 %4569
        %4571 = vrot.lane.b32.xlu0 %v4440, 64
        %v4572 = vpop.permute.xlu0 %4571
        %4573 = vrot.lane.b32.xlu0 %v4452, 64
        %v4574 = vpop.permute.xlu0 %4573
        %4575 = vrot.lane.b32.xlu0 %v4464, 64
        %v4576 = vpop.permute.xlu0 %4575
        %4577 = vrot.lane.b32.xlu0 %v4476, 64
        %v4578 = vpop.permute.xlu0 %4577
        %4579 = vrot.lane.b32.xlu0 %v4488, 64
        %v4580 = vpop.permute.xlu0 %4579
        %4581 = vrot.lane.b32.xlu0 %v4500, 64
        %v4582 = vpop.permute.xlu0 %4581
        %4583 = vrot.lane.b32.xlu0 %v4512, 64
        %v4584 = vpop.permute.xlu0 %4583
        %4585 = vrot.lane.b32.xlu0 %v4524, 64
        %v4586 = vpop.permute.xlu0 %4585
        %4587 = vrot.lane.b32.xlu0 %v4536, 64
        %v4588 = vpop.permute.xlu0 %4587
        %4589 = vrot.lane.b32.xlu0 %v4548, 64
        %v4590 = vpop.permute.xlu0 %4589
        %4591 = vrot.lane.b32.xlu0 %v4560, 64
        %v4592 = vpop.permute.xlu0 %4591
        %v4609 = vunpack.c.l.b16 %v4225
        %v4610 = vunpack.c.l.b16 %v4226
        %v4611 = vunpack.c.l.b16 %v4227
        %v4612 = vunpack.c.l.b16 %v4228
        %v4613 = vunpack.c.l.b16 %v4229
        %v4614 = vunpack.c.l.b16 %v4230
        %v4615 = vunpack.c.l.b16 %v4231
        %v4616 = vunpack.c.l.b16 %v4232
        %v4617 = vunpack.c.l.b16 %v4233
        %v4618 = vunpack.c.l.b16 %v4234
        %v4619 = vunpack.c.l.b16 %v4235
        %v4620 = vunpack.c.l.b16 %v4236
        %v4621 = vunpack.c.l.b16 %v4237
        %v4622 = vunpack.c.l.b16 %v4238
        %v4623 = vunpack.c.l.b16 %v4239
        %v4624 = vunpack.c.l.b16 %v4240
        %v4625 = vpack.c.b16 %v4274, %v4609
        %v4626 = vpack.c.b16 %v4276, %v4610
        %v4627 = vpack.c.b16 %v4278, %v4611
        %v4628 = vpack.c.b16 %v4280, %v4612
        %v4629 = vpack.c.b16 %v4282, %v4613
        %v4630 = vpack.c.b16 %v4284, %v4614
        %v4631 = vpack.c.b16 %v4286, %v4615
        %v4632 = vpack.c.b16 %v4288, %v4616
        %v4633 = vpack.c.b16 %v4290, %v4617
        %v4634 = vpack.c.b16 %v4292, %v4618
        %v4635 = vpack.c.b16 %v4294, %v4619
        %v4636 = vpack.c.b16 %v4296, %v4620
        %v4637 = vpack.c.b16 %v4298, %v4621
        %v4638 = vpack.c.b16 %v4300, %v4622
        %v4639 = vpack.c.b16 %v4302, %v4623
        %v4640 = vpack.c.b16 %v4304, %v4624
        %v4641 = vrot.slane %v4625, 1
        %v4642 = vrot.slane %v4353, 1
        %v4643 = vsel %vm755, %v4641, %v4642
        %v4644 = vrot.slane %v4626, 1
        %v4645 = vrot.slane %v4354, 1
        %v4646 = vsel %vm755, %v4644, %v4645
        %v4647 = vrot.slane %v4627, 1
        %v4648 = vrot.slane %v4355, 1
        %v4649 = vsel %vm755, %v4647, %v4648
        %v4650 = vrot.slane %v4628, 1
        %v4651 = vrot.slane %v4356, 1
        %v4652 = vsel %vm755, %v4650, %v4651
        %v4653 = vrot.slane %v4629, 1
        %v4654 = vrot.slane %v4357, 1
        %v4655 = vsel %vm755, %v4653, %v4654
        %v4656 = vrot.slane %v4630, 1
        %v4657 = vrot.slane %v4358, 1
        %v4658 = vsel %vm755, %v4656, %v4657
        %v4659 = vrot.slane %v4631, 1
        %v4660 = vrot.slane %v4359, 1
        %v4661 = vsel %vm755, %v4659, %v4660
        %v4662 = vrot.slane %v4632, 1
        %v4663 = vrot.slane %v4360, 1
        %v4664 = vsel %vm755, %v4662, %v4663
        %v4665 = vrot.slane %v4633, 1
        %v4666 = vrot.slane %v4361, 1
        %v4667 = vsel %vm755, %v4665, %v4666
        %v4668 = vrot.slane %v4634, 1
        %v4669 = vrot.slane %v4362, 1
        %v4670 = vsel %vm755, %v4668, %v4669
        %v4671 = vrot.slane %v4635, 1
        %v4672 = vrot.slane %v4363, 1
        %v4673 = vsel %vm755, %v4671, %v4672
        %v4674 = vrot.slane %v4636, 1
        %v4675 = vrot.slane %v4364, 1
        %v4676 = vsel %vm755, %v4674, %v4675
        %v4677 = vrot.slane %v4637, 1
        %v4678 = vrot.slane %v4365, 1
        %v4679 = vsel %vm755, %v4677, %v4678
        %v4680 = vrot.slane %v4638, 1
        %v4681 = vrot.slane %v4366, 1
        %v4682 = vsel %vm755, %v4680, %v4681
        %v4683 = vrot.slane %v4639, 1
        %v4684 = vrot.slane %v4367, 1
        %v4685 = vsel %vm755, %v4683, %v4684
        %v4686 = vrot.slane %v4640, 1
        %v4687 = vrot.slane %v4368, 1
        %v4688 = vsel %vm755, %v4686, %v4687
        %v4690 = vsel %vm804, %v4305, %v4562
        %v4693 = vsel %vm804, %v4306, %v4564
        %v4696 = vsel %vm804, %v4307, %v4566
        %v4699 = vsel %vm804, %v4308, %v4568
        %v4702 = vsel %vm804, %v4309, %v4570
        %v4705 = vsel %vm804, %v4310, %v4572
        %v4708 = vsel %vm804, %v4311, %v4574
        %v4711 = vsel %vm804, %v4312, %v4576
        %v4714 = vsel %vm804, %v4313, %v4578
        %v4717 = vsel %vm804, %v4314, %v4580
        %v4720 = vsel %vm804, %v4315, %v4582
        %v4723 = vsel %vm804, %v4316, %v4584
        %v4726 = vsel %vm804, %v4317, %v4586
        %v4729 = vsel %vm804, %v4318, %v4588
        %v4732 = vsel %vm804, %v4319, %v4590
        %v4735 = vsel %vm804, %v4320, %v4592
        %s4737 = scalar_lea.vmem %s4, 96
        %v4738 = vld [vmem:[%s4737] sm:$0xf]
        %v4739 = vld [vmem:[%s4737 + $0x4] sm:$0xf]
        %v4740 = vld [vmem:[%s4737 + $0x8] sm:$0xf]
        %v4741 = vld [vmem:[%s4737 + $0xc] sm:$0xf]
        %v4742 = vld [vmem:[%s4737 + $0x10] sm:$0xf]
        %v4743 = vld [vmem:[%s4737 + $0x14] sm:$0xf]
        %v4744 = vld [vmem:[%s4737 + $0x18] sm:$0xf]
        %v4745 = vld [vmem:[%s4737 + $0x1c] sm:$0xf]
        %v4746 = vld [vmem:[%s4737 + $0x20] sm:$0xf]
        %v4747 = vld [vmem:[%s4737 + $0x24] sm:$0xf]
        %v4748 = vld [vmem:[%s4737 + $0x28] sm:$0xf]
        %v4749 = vld [vmem:[%s4737 + $0x2c] sm:$0xf]
        %v4750 = vld [vmem:[%s4737 + $0x30] sm:$0xf]
        %v4751 = vld [vmem:[%s4737 + $0x34] sm:$0xf]
        %v4752 = vld [vmem:[%s4737 + $0x38] sm:$0xf]
        %v4753 = vld [vmem:[%s4737 + $0x3c] sm:$0xf]
        %v4754 = vld [vmem:[%s4737 + $0x40] sm:$0xf]
        %v4755 = vld [vmem:[%s4737 + $0x44] sm:$0xf]
        %v4756 = vld [vmem:[%s4737 + $0x48] sm:$0xf]
        %v4757 = vld [vmem:[%s4737 + $0x4c] sm:$0xf]
        %v4758 = vld [vmem:[%s4737 + $0x50] sm:$0xf]
        %v4759 = vld [vmem:[%s4737 + $0x54] sm:$0xf]
        %v4760 = vld [vmem:[%s4737 + $0x58] sm:$0xf]
        %v4761 = vld [vmem:[%s4737 + $0x5c] sm:$0xf]
        %v4786 = vunpack.c.l.b16 %v4738
        %v4787 = vunpack.c.l.b16 %v4739
        %v4788 = vunpack.c.l.b16 %v4740
        %v4789 = vunpack.c.l.b16 %v4741
        %v4790 = vunpack.c.l.b16 %v4742
        %v4791 = vunpack.c.l.b16 %v4743
        %v4792 = vunpack.c.l.b16 %v4744
        %v4793 = vunpack.c.l.b16 %v4745
        %v4794 = vunpack.c.l.b16 %v4746
        %v4795 = vunpack.c.l.b16 %v4747
        %v4796 = vunpack.c.l.b16 %v4748
        %v4797 = vunpack.c.l.b16 %v4749
        %v4798 = vunpack.c.l.b16 %v4750
        %v4799 = vunpack.c.l.b16 %v4751
        %v4800 = vunpack.c.l.b16 %v4752
        %v4801 = vunpack.c.l.b16 %v4753
        %v4802 = vunpack.c.l.b16 %v4754
        %v4803 = vunpack.c.l.b16 %v4755
        %v4804 = vunpack.c.l.b16 %v4756
        %v4805 = vunpack.c.l.b16 %v4757
        %v4806 = vunpack.c.l.b16 %v4758
        %v4807 = vunpack.c.l.b16 %v4759
        %v4808 = vunpack.c.l.b16 %v4760
        %v4809 = vunpack.c.l.b16 %v4761
        %v4810 = vpack.c.b16 %v4787, %v4786
        %v4811 = vpack.c.b16 %v4789, %v4788
        %v4812 = vpack.c.b16 %v4791, %v4790
        %v4813 = vpack.c.b16 %v4793, %v4792
        %v4814 = vpack.c.b16 %v4795, %v4794
        %v4815 = vpack.c.b16 %v4797, %v4796
        %v4816 = vpack.c.b16 %v4799, %v4798
        %v4817 = vpack.c.b16 %v4801, %v4800
        %v4818 = vpack.c.b16 %v4803, %v4802
        %v4819 = vpack.c.b16 %v4805, %v4804
        %v4820 = vpack.c.b16 %v4807, %v4806
        %v4821 = vpack.c.b16 %v4809, %v4808
        %v4835 = vsel %vm804, %v4643, 0
        %v4838 = vsel %vm804, %v4646, 0
        %v4841 = vsel %vm804, %v4649, 0
        %v4844 = vsel %vm804, %v4652, 0
        %v4847 = vsel %vm804, %v4655, 0
        %v4850 = vsel %vm804, %v4658, 0
        %v4853 = vsel %vm804, %v4661, 0
        %v4856 = vsel %vm804, %v4664, 0
        %v4859 = vsel %vm804, %v4667, 0
        %v4862 = vsel %vm804, %v4670, 0
        %v4865 = vsel %vm804, %v4673, 0
        %v4868 = vsel %vm804, %v4676, 0
        %v4871 = vsel %vm804, %v4679, 0
        %v4874 = vsel %vm804, %v4682, 0
        %v4877 = vsel %vm804, %v4685, 0
        %v4880 = vsel %vm804, %v4688, 0
        %4882 = vmatpush.bf16.msra.mxu0 %v4817
        %4883 = vmatpush.bf16.msra.mxu0 %v4816
        %4884 = vmatpush.bf16.msra.mxu0 %v4815
        %4885 = vmatpush.bf16.msra.mxu0 %v4814
        %4886 = vmatpush.bf16.msra.mxu0 %v4813
        %4887 = vmatpush.bf16.msra.mxu0 %v4812
        %4888 = vmatpush.bf16.msra.mxu0 %v4811
        %4889 = vmatpush.bf16.msra.mxu0 %v4810
        %4890 = vmatmul.bf16.gmra.mxu0 %v4690
        %v4891 = vpop.f32.mrf.mxu0
        %v4892 = vadd.f32 0.0, %v4891
        %v4893 = vpop.f32.mrf.mxu0
        %v4894 = vadd.f32 0.0, %v4893
        %4895 = vmatmul.bf16.gmra.mxu0 %v4693
        %v4896 = vpop.f32.mrf.mxu0
        %v4897 = vadd.f32 0.0, %v4896
        %v4898 = vpop.f32.mrf.mxu0
        %v4899 = vadd.f32 0.0, %v4898
        %4900 = vmatmul.bf16.gmra.mxu0 %v4696
        %v4901 = vpop.f32.mrf.mxu0
        %v4902 = vadd.f32 0.0, %v4901
        %v4903 = vpop.f32.mrf.mxu0
        %v4904 = vadd.f32 0.0, %v4903
        %4905 = vmatmul.bf16.gmra.mxu0 %v4699
        %v4906 = vpop.f32.mrf.mxu0
        %v4907 = vadd.f32 0.0, %v4906
        %v4908 = vpop.f32.mrf.mxu0
        %v4909 = vadd.f32 0.0, %v4908
        %4910 = vmatmul.bf16.gmra.mxu0 %v4702
        %v4911 = vpop.f32.mrf.mxu0
        %v4912 = vadd.f32 0.0, %v4911
        %v4913 = vpop.f32.mrf.mxu0
        %v4914 = vadd.f32 0.0, %v4913
        %4915 = vmatmul.bf16.gmra.mxu0 %v4705
        %v4916 = vpop.f32.mrf.mxu0
        %v4917 = vadd.f32 0.0, %v4916
        %v4918 = vpop.f32.mrf.mxu0
        %v4919 = vadd.f32 0.0, %v4918
        %4920 = vmatmul.bf16.gmra.mxu0 %v4708
        %v4921 = vpop.f32.mrf.mxu0
        %v4922 = vadd.f32 0.0, %v4921
        %v4923 = vpop.f32.mrf.mxu0
        %v4924 = vadd.f32 0.0, %v4923
        %4925 = vmatmul.bf16.gmra.mxu0 %v4711
        %v4926 = vpop.f32.mrf.mxu0
        %v4927 = vadd.f32 0.0, %v4926
        %v4928 = vpop.f32.mrf.mxu0
        %v4929 = vadd.f32 0.0, %v4928
        %4930 = vmatmul.bf16.gmra.mxu0 %v4714
        %v4931 = vpop.f32.mrf.mxu0
        %v4932 = vadd.f32 0.0, %v4931
        %v4933 = vpop.f32.mrf.mxu0
        %v4934 = vadd.f32 0.0, %v4933
        %4935 = vmatmul.bf16.gmra.mxu0 %v4717
        %v4936 = vpop.f32.mrf.mxu0
        %v4937 = vadd.f32 0.0, %v4936
        %v4938 = vpop.f32.mrf.mxu0
        %v4939 = vadd.f32 0.0, %v4938
        %4940 = vmatmul.bf16.gmra.mxu0 %v4720
        %v4941 = vpop.f32.mrf.mxu0
        %v4942 = vadd.f32 0.0, %v4941
        %v4943 = vpop.f32.mrf.mxu0
        %v4944 = vadd.f32 0.0, %v4943
        %4945 = vmatmul.bf16.gmra.mxu0 %v4723
        %v4946 = vpop.f32.mrf.mxu0
        %v4947 = vadd.f32 0.0, %v4946
        %v4948 = vpop.f32.mrf.mxu0
        %v4949 = vadd.f32 0.0, %v4948
        %4950 = vmatmul.bf16.gmra.mxu0 %v4726
        %v4951 = vpop.f32.mrf.mxu0
        %v4952 = vadd.f32 0.0, %v4951
        %v4953 = vpop.f32.mrf.mxu0
        %v4954 = vadd.f32 0.0, %v4953
        %4955 = vmatmul.bf16.gmra.mxu0 %v4729
        %v4956 = vpop.f32.mrf.mxu0
        %v4957 = vadd.f32 0.0, %v4956
        %v4958 = vpop.f32.mrf.mxu0
        %v4959 = vadd.f32 0.0, %v4958
        %4960 = vmatmul.bf16.gmra.mxu0 %v4732
        %v4961 = vpop.f32.mrf.mxu0
        %v4962 = vadd.f32 0.0, %v4961
        %v4963 = vpop.f32.mrf.mxu0
        %v4964 = vadd.f32 0.0, %v4963
        %4965 = vmatmul.bf16.gmra.mxu0 %v4735
        %v4966 = vpop.f32.mrf.mxu0
        %v4967 = vadd.f32 0.0, %v4966
        %v4968 = vpop.f32.mrf.mxu0
        %v4969 = vadd.f32 0.0, %v4968
        %4970 = vdwg.mxu0
        %4971 = vmatpush.bf16.msra.mxu0 0
        %4972 = vmatpush.bf16.msra.mxu0 0
        %4973 = vmatpush.bf16.msra.mxu0 0
        %4974 = vmatpush.bf16.msra.mxu0 0
        %4975 = vmatpush.bf16.msra.mxu0 %v4821
        %4976 = vmatpush.bf16.msra.mxu0 %v4820
        %4977 = vmatpush.bf16.msra.mxu0 %v4819
        %4978 = vmatpush.bf16.msra.mxu0 %v4818
        %4979 = vmatmul.bf16.gmra.mxu0 %v4835
        %v4980 = vpop.f32.mrf.mxu0
        %v4981 = vadd.f32 %v4892, %v4980
        %v4982 = vpop.f32.mrf.mxu0
        %v4983 = vadd.f32 %v4894, %v4982
        %4984 = vmatmul.bf16.gmra.mxu0 %v4838
        %v4985 = vpop.f32.mrf.mxu0
        %v4986 = vadd.f32 %v4897, %v4985
        %v4987 = vpop.f32.mrf.mxu0
        %v4988 = vadd.f32 %v4899, %v4987
        %4989 = vmatmul.bf16.gmra.mxu0 %v4841
        %v4990 = vpop.f32.mrf.mxu0
        %v4991 = vadd.f32 %v4902, %v4990
        %v4992 = vpop.f32.mrf.mxu0
        %v4993 = vadd.f32 %v4904, %v4992
        %4994 = vmatmul.bf16.gmra.mxu0 %v4844
        %v4995 = vpop.f32.mrf.mxu0
        %v4996 = vadd.f32 %v4907, %v4995
        %v4997 = vpop.f32.mrf.mxu0
        %v4998 = vadd.f32 %v4909, %v4997
        %4999 = vmatmul.bf16.gmra.mxu0 %v4847
        %v5000 = vpop.f32.mrf.mxu0
        %v5001 = vadd.f32 %v4912, %v5000
        %v5002 = vpop.f32.mrf.mxu0
        %v5003 = vadd.f32 %v4914, %v5002
        %5004 = vmatmul.bf16.gmra.mxu0 %v4850
        %v5005 = vpop.f32.mrf.mxu0
        %v5006 = vadd.f32 %v4917, %v5005
        %v5007 = vpop.f32.mrf.mxu0
        %v5008 = vadd.f32 %v4919, %v5007
        %5009 = vmatmul.bf16.gmra.mxu0 %v4853
        %v5010 = vpop.f32.mrf.mxu0
        %v5011 = vadd.f32 %v4922, %v5010
        %v5012 = vpop.f32.mrf.mxu0
        %v5013 = vadd.f32 %v4924, %v5012
        %5014 = vmatmul.bf16.gmra.mxu0 %v4856
        %v5015 = vpop.f32.mrf.mxu0
        %v5016 = vadd.f32 %v4927, %v5015
        %v5017 = vpop.f32.mrf.mxu0
        %v5018 = vadd.f32 %v4929, %v5017
        %5019 = vmatmul.bf16.gmra.mxu0 %v4859
        %v5020 = vpop.f32.mrf.mxu0
        %v5021 = vadd.f32 %v4932, %v5020
        %v5022 = vpop.f32.mrf.mxu0
        %v5023 = vadd.f32 %v4934, %v5022
        %5024 = vmatmul.bf16.gmra.mxu0 %v4862
        %v5025 = vpop.f32.mrf.mxu0
        %v5026 = vadd.f32 %v4937, %v5025
        %v5027 = vpop.f32.mrf.mxu0
        %v5028 = vadd.f32 %v4939, %v5027
        %5029 = vmatmul.bf16.gmra.mxu0 %v4865
        %v5030 = vpop.f32.mrf.mxu0
        %v5031 = vadd.f32 %v4942, %v5030
        %v5032 = vpop.f32.mrf.mxu0
        %v5033 = vadd.f32 %v4944, %v5032
        %5034 = vmatmul.bf16.gmra.mxu0 %v4868
        %v5035 = vpop.f32.mrf.mxu0
        %v5036 = vadd.f32 %v4947, %v5035
        %v5037 = vpop.f32.mrf.mxu0
        %v5038 = vadd.f32 %v4949, %v5037
        %5039 = vmatmul.bf16.gmra.mxu0 %v4871
        %v5040 = vpop.f32.mrf.mxu0
        %v5041 = vadd.f32 %v4952, %v5040
        %v5042 = vpop.f32.mrf.mxu0
        %v5043 = vadd.f32 %v4954, %v5042
        %5044 = vmatmul.bf16.gmra.mxu0 %v4874
        %v5045 = vpop.f32.mrf.mxu0
        %v5046 = vadd.f32 %v4957, %v5045
        %v5047 = vpop.f32.mrf.mxu0
        %v5048 = vadd.f32 %v4959, %v5047
        %5049 = vmatmul.bf16.gmra.mxu0 %v4877
        %v5050 = vpop.f32.mrf.mxu0
        %v5051 = vadd.f32 %v4962, %v5050
        %v5052 = vpop.f32.mrf.mxu0
        %v5053 = vadd.f32 %v4964, %v5052
        %5054 = vmatmul.bf16.gmra.mxu0 %v4880
        %v5055 = vpop.f32.mrf.mxu0
        %v5056 = vadd.f32 %v4967, %v5055
        %v5057 = vpop.f32.mrf.mxu0
        %v5058 = vadd.f32 %v4969, %v5057
        %5059 = vdwg.mxu0
        %v5084 = vunpack.c.l.b16 %v4153
        %v5085 = vunpack.c.l.b16 %v4154
        %v5086 = vunpack.c.l.b16 %v4155
        %v5087 = vunpack.c.l.b16 %v4156
        %v5088 = vunpack.c.l.b16 %v4157
        %v5089 = vunpack.c.l.b16 %v4158
        %v5090 = vunpack.c.l.b16 %v4159
        %v5091 = vunpack.c.l.b16 %v4160
        %v5092 = vunpack.c.l.b16 %v4161
        %v5093 = vunpack.c.l.b16 %v4162
        %v5094 = vunpack.c.l.b16 %v4163
        %v5095 = vunpack.c.l.b16 %v4164
        %v5096 = vunpack.c.l.b16 %v4165
        %v5097 = vunpack.c.l.b16 %v4166
        %v5098 = vunpack.c.l.b16 %v4167
        %v5099 = vunpack.c.l.b16 %v4168
        %v5100 = vunpack.c.l.b16 %v4169
        %v5101 = vunpack.c.l.b16 %v4170
        %v5102 = vunpack.c.l.b16 %v4171
        %v5103 = vunpack.c.l.b16 %v4172
        %v5104 = vunpack.c.l.b16 %v4173
        %v5105 = vunpack.c.l.b16 %v4174
        %v5106 = vunpack.c.l.b16 %v4175
        %v5107 = vunpack.c.l.b16 %v4176
        %v5108 = vpack.c.b16 %v5085, %v5084
        %v5109 = vpack.c.b16 %v5087, %v5086
        %v5110 = vpack.c.b16 %v5089, %v5088
        %v5111 = vpack.c.b16 %v5091, %v5090
        %v5112 = vpack.c.b16 %v5093, %v5092
        %v5113 = vpack.c.b16 %v5095, %v5094
        %v5114 = vpack.c.b16 %v5097, %v5096
        %v5115 = vpack.c.b16 %v5099, %v5098
        %v5116 = vpack.c.b16 %v5101, %v5100
        %v5117 = vpack.c.b16 %v5103, %v5102
        %v5118 = vpack.c.b16 %v5105, %v5104
        %v5119 = vpack.c.b16 %v5107, %v5106
        %v5133 = vsel %vm804, %v4059, 0
        %v5136 = vsel %vm804, %v4062, 0
        %v5139 = vsel %vm804, %v4065, 0
        %v5142 = vsel %vm804, %v4068, 0
        %v5145 = vsel %vm804, %v4071, 0
        %v5148 = vsel %vm804, %v4074, 0
        %v5151 = vsel %vm804, %v4077, 0
        %v5154 = vsel %vm804, %v4080, 0
        %v5157 = vsel %vm804, %v4083, 0
        %v5160 = vsel %vm804, %v4086, 0
        %v5163 = vsel %vm804, %v4089, 0
        %v5166 = vsel %vm804, %v4092, 0
        %v5169 = vsel %vm804, %v4095, 0
        %v5172 = vsel %vm804, %v4098, 0
        %v5175 = vsel %vm804, %v4101, 0
        %v5178 = vsel %vm804, %v4104, 0
        %5180 = vmatpush.bf16.msra.mxu0 %v5115
        %5181 = vmatpush.bf16.msra.mxu0 %v5114
        %5182 = vmatpush.bf16.msra.mxu0 %v5113
        %5183 = vmatpush.bf16.msra.mxu0 %v5112
        %5184 = vmatpush.bf16.msra.mxu0 %v5111
        %5185 = vmatpush.bf16.msra.mxu0 %v5110
        %5186 = vmatpush.bf16.msra.mxu0 %v5109
        %5187 = vmatpush.bf16.msra.mxu0 %v5108
        %5188 = vmatmul.bf16.gmra.mxu0 %v4106
        %v5189 = vpop.f32.mrf.mxu0
        %v5190 = vadd.f32 %v4981, %v5189
        %v5191 = vpop.f32.mrf.mxu0
        %v5192 = vadd.f32 %v4983, %v5191
        %5193 = vmatmul.bf16.gmra.mxu0 %v4109
        %v5194 = vpop.f32.mrf.mxu0
        %v5195 = vadd.f32 %v4986, %v5194
        %v5196 = vpop.f32.mrf.mxu0
        %v5197 = vadd.f32 %v4988, %v5196
        %5198 = vmatmul.bf16.gmra.mxu0 %v4112
        %v5199 = vpop.f32.mrf.mxu0
        %v5200 = vadd.f32 %v4991, %v5199
        %v5201 = vpop.f32.mrf.mxu0
        %v5202 = vadd.f32 %v4993, %v5201
        %5203 = vmatmul.bf16.gmra.mxu0 %v4115
        %v5204 = vpop.f32.mrf.mxu0
        %v5205 = vadd.f32 %v4996, %v5204
        %v5206 = vpop.f32.mrf.mxu0
        %v5207 = vadd.f32 %v4998, %v5206
        %5208 = vmatmul.bf16.gmra.mxu0 %v4118
        %v5209 = vpop.f32.mrf.mxu0
        %v5210 = vadd.f32 %v5001, %v5209
        %v5211 = vpop.f32.mrf.mxu0
        %v5212 = vadd.f32 %v5003, %v5211
        %5213 = vmatmul.bf16.gmra.mxu0 %v4121
        %v5214 = vpop.f32.mrf.mxu0
        %v5215 = vadd.f32 %v5006, %v5214
        %v5216 = vpop.f32.mrf.mxu0
        %v5217 = vadd.f32 %v5008, %v5216
        %5218 = vmatmul.bf16.gmra.mxu0 %v4124
        %v5219 = vpop.f32.mrf.mxu0
        %v5220 = vadd.f32 %v5011, %v5219
        %v5221 = vpop.f32.mrf.mxu0
        %v5222 = vadd.f32 %v5013, %v5221
        %5223 = vmatmul.bf16.gmra.mxu0 %v4127
        %v5224 = vpop.f32.mrf.mxu0
        %v5225 = vadd.f32 %v5016, %v5224
        %v5226 = vpop.f32.mrf.mxu0
        %v5227 = vadd.f32 %v5018, %v5226
        %5228 = vmatmul.bf16.gmra.mxu0 %v4130
        %v5229 = vpop.f32.mrf.mxu0
        %v5230 = vadd.f32 %v5021, %v5229
        %v5231 = vpop.f32.mrf.mxu0
        %v5232 = vadd.f32 %v5023, %v5231
        %5233 = vmatmul.bf16.gmra.mxu0 %v4133
        %v5234 = vpop.f32.mrf.mxu0
        %v5235 = vadd.f32 %v5026, %v5234
        %v5236 = vpop.f32.mrf.mxu0
        %v5237 = vadd.f32 %v5028, %v5236
        %5238 = vmatmul.bf16.gmra.mxu0 %v4136
        %v5239 = vpop.f32.mrf.mxu0
        %v5240 = vadd.f32 %v5031, %v5239
        %v5241 = vpop.f32.mrf.mxu0
        %v5242 = vadd.f32 %v5033, %v5241
        %5243 = vmatmul.bf16.gmra.mxu0 %v4139
        %v5244 = vpop.f32.mrf.mxu0
        %v5245 = vadd.f32 %v5036, %v5244
        %v5246 = vpop.f32.mrf.mxu0
        %v5247 = vadd.f32 %v5038, %v5246
        %5248 = vmatmul.bf16.gmra.mxu0 %v4142
        %v5249 = vpop.f32.mrf.mxu0
        %v5250 = vadd.f32 %v5041, %v5249
        %v5251 = vpop.f32.mrf.mxu0
        %v5252 = vadd.f32 %v5043, %v5251
        %5253 = vmatmul.bf16.gmra.mxu0 %v4145
        %v5254 = vpop.f32.mrf.mxu0
        %v5255 = vadd.f32 %v5046, %v5254
        %v5256 = vpop.f32.mrf.mxu0
        %v5257 = vadd.f32 %v5048, %v5256
        %5258 = vmatmul.bf16.gmra.mxu0 %v4148
        %v5259 = vpop.f32.mrf.mxu0
        %v5260 = vadd.f32 %v5051, %v5259
        %v5261 = vpop.f32.mrf.mxu0
        %v5262 = vadd.f32 %v5053, %v5261
        %5263 = vmatmul.bf16.gmra.mxu0 %v4151
        %v5264 = vpop.f32.mrf.mxu0
        %v5265 = vadd.f32 %v5056, %v5264
        %v5266 = vpop.f32.mrf.mxu0
        %v5267 = vadd.f32 %v5058, %v5266
        %5268 = vdwg.mxu0
        %5269 = vmatpush.bf16.msra.mxu0 0
        %5270 = vmatpush.bf16.msra.mxu0 0
        %5271 = vmatpush.bf16.msra.mxu0 0
        %5272 = vmatpush.bf16.msra.mxu0 0
        %5273 = vmatpush.bf16.msra.mxu0 %v5119
        %5274 = vmatpush.bf16.msra.mxu0 %v5118
        %5275 = vmatpush.bf16.msra.mxu0 %v5117
        %5276 = vmatpush.bf16.msra.mxu0 %v5116
        %5277 = vmatmul.bf16.gmra.mxu0 %v5133
        %v5278 = vpop.f32.mrf.mxu0
        %v5279 = vadd.f32 %v5190, %v5278
        %v5280 = vpop.f32.mrf.mxu0
        %v5281 = vadd.f32 %v5192, %v5280
        %5282 = vmatmul.bf16.gmra.mxu0 %v5136
        %v5283 = vpop.f32.mrf.mxu0
        %v5284 = vadd.f32 %v5195, %v5283
        %v5285 = vpop.f32.mrf.mxu0
        %v5286 = vadd.f32 %v5197, %v5285
        %5287 = vmatmul.bf16.gmra.mxu0 %v5139
        %v5288 = vpop.f32.mrf.mxu0
        %v5289 = vadd.f32 %v5200, %v5288
        %v5290 = vpop.f32.mrf.mxu0
        %v5291 = vadd.f32 %v5202, %v5290
        %5292 = vmatmul.bf16.gmra.mxu0 %v5142
        %v5293 = vpop.f32.mrf.mxu0
        %v5294 = vadd.f32 %v5205, %v5293
        %v5295 = vpop.f32.mrf.mxu0
        %v5296 = vadd.f32 %v5207, %v5295
        %5297 = vmatmul.bf16.gmra.mxu0 %v5145
        %v5298 = vpop.f32.mrf.mxu0
        %v5299 = vadd.f32 %v5210, %v5298
        %v5300 = vpop.f32.mrf.mxu0
        %v5301 = vadd.f32 %v5212, %v5300
        %5302 = vmatmul.bf16.gmra.mxu0 %v5148
        %v5303 = vpop.f32.mrf.mxu0
        %v5304 = vadd.f32 %v5215, %v5303
        %v5305 = vpop.f32.mrf.mxu0
        %v5306 = vadd.f32 %v5217, %v5305
        %5307 = vmatmul.bf16.gmra.mxu0 %v5151
        %v5308 = vpop.f32.mrf.mxu0
        %v5309 = vadd.f32 %v5220, %v5308
        %v5310 = vpop.f32.mrf.mxu0
        %v5311 = vadd.f32 %v5222, %v5310
        %5312 = vmatmul.bf16.gmra.mxu0 %v5154
        %v5313 = vpop.f32.mrf.mxu0
        %v5314 = vadd.f32 %v5225, %v5313
        %v5315 = vpop.f32.mrf.mxu0
        %v5316 = vadd.f32 %v5227, %v5315
        %5317 = vmatmul.bf16.gmra.mxu0 %v5157
        %v5318 = vpop.f32.mrf.mxu0
        %v5319 = vadd.f32 %v5230, %v5318
        %v5320 = vpop.f32.mrf.mxu0
        %v5321 = vadd.f32 %v5232, %v5320
        %5322 = vmatmul.bf16.gmra.mxu0 %v5160
        %v5323 = vpop.f32.mrf.mxu0
        %v5324 = vadd.f32 %v5235, %v5323
        %v5325 = vpop.f32.mrf.mxu0
        %v5326 = vadd.f32 %v5237, %v5325
        %5327 = vmatmul.bf16.gmra.mxu0 %v5163
        %v5328 = vpop.f32.mrf.mxu0
        %v5329 = vadd.f32 %v5240, %v5328
        %v5330 = vpop.f32.mrf.mxu0
        %v5331 = vadd.f32 %v5242, %v5330
        %5332 = vmatmul.bf16.gmra.mxu0 %v5166
        %v5333 = vpop.f32.mrf.mxu0
        %v5334 = vadd.f32 %v5245, %v5333
        %v5335 = vpop.f32.mrf.mxu0
        %v5336 = vadd.f32 %v5247, %v5335
        %5337 = vmatmul.bf16.gmra.mxu0 %v5169
        %v5338 = vpop.f32.mrf.mxu0
        %v5339 = vadd.f32 %v5250, %v5338
        %v5340 = vpop.f32.mrf.mxu0
        %v5341 = vadd.f32 %v5252, %v5340
        %5342 = vmatmul.bf16.gmra.mxu0 %v5172
        %v5343 = vpop.f32.mrf.mxu0
        %v5344 = vadd.f32 %v5255, %v5343
        %v5345 = vpop.f32.mrf.mxu0
        %v5346 = vadd.f32 %v5257, %v5345
        %5347 = vmatmul.bf16.gmra.mxu0 %v5175
        %v5348 = vpop.f32.mrf.mxu0
        %v5349 = vadd.f32 %v5260, %v5348
        %v5350 = vpop.f32.mrf.mxu0
        %v5351 = vadd.f32 %v5262, %v5350
        %5352 = vmatmul.bf16.gmra.mxu0 %v5178
        %v5353 = vpop.f32.mrf.mxu0
        %v5354 = vadd.f32 %v5265, %v5353
        %v5355 = vpop.f32.mrf.mxu0
        %v5356 = vadd.f32 %v5267, %v5355
        %5357 = vdwg.mxu0
        %s5358 = scalar_lea.vmem [#allocation2], 24
        %v5359 = vld [vmem:[%s5358] sm:$0xf]
        %v5360 = vld [vmem:[%s5358 + $0x4] sm:$0xf]
        %v5361 = vld [vmem:[%s5358 + $0xc] sm:$0xf]
        %v5362 = vld [vmem:[%s5358 + $0x10] sm:$0xf]
        %v5363 = vld [vmem:[%s5358 + $0x18] sm:$0xf]
        %v5364 = vld [vmem:[%s5358 + $0x1c] sm:$0xf]
        %v5365 = vld [vmem:[%s5358 + $0x24] sm:$0xf]
        %v5366 = vld [vmem:[%s5358 + $0x28] sm:$0xf]
        %v5367 = vld [vmem:[%s5358 + $0x30] sm:$0xf]
        %v5368 = vld [vmem:[%s5358 + $0x34] sm:$0xf]
        %v5369 = vld [vmem:[%s5358 + $0x3c] sm:$0xf]
        %v5370 = vld [vmem:[%s5358 + $0x40] sm:$0xf]
        %v5371 = vld [vmem:[%s5358 + $0x48] sm:$0xf]
        %v5372 = vld [vmem:[%s5358 + $0x4c] sm:$0xf]
        %v5373 = vld [vmem:[%s5358 + $0x54] sm:$0xf]
        %v5374 = vld [vmem:[%s5358 + $0x58] sm:$0xf]
        %v5375 = vld [vmem:[%s5358 + $0x60] sm:$0xf]
        %v5376 = vld [vmem:[%s5358 + $0x64] sm:$0xf]
        %v5377 = vld [vmem:[%s5358 + $0x6c] sm:$0xf]
        %v5378 = vld [vmem:[%s5358 + $0x70] sm:$0xf]
        %v5379 = vld [vmem:[%s5358 + $0x78] sm:$0xf]
        %v5380 = vld [vmem:[%s5358 + $0x7c] sm:$0xf]
        %v5381 = vld [vmem:[%s5358 + $0x84] sm:$0xf]
        %v5382 = vld [vmem:[%s5358 + $0x88] sm:$0xf]
        %v5383 = vld [vmem:[%s5358 + $0x90] sm:$0xf]
        %v5384 = vld [vmem:[%s5358 + $0x94] sm:$0xf]
        %v5385 = vld [vmem:[%s5358 + $0x9c] sm:$0xf]
        %v5386 = vld [vmem:[%s5358 + $0xa0] sm:$0xf]
        %v5387 = vld [vmem:[%s5358 + $0xa8] sm:$0xf]
        %v5388 = vld [vmem:[%s5358 + $0xac] sm:$0xf]
        %v5389 = vld [vmem:[%s5358 + $0xb4] sm:$0xf]
        %v5390 = vld [vmem:[%s5358 + $0xb8] sm:$0xf]
        %v5391 = vld [vmem:[%s5358 + $0x8] sm:$0x1]
        %v5392 = vld [vmem:[%s5358 + $0x14] sm:$0x1]
        %v5393 = vld [vmem:[%s5358 + $0x20] sm:$0x1]
        %v5394 = vld [vmem:[%s5358 + $0x2c] sm:$0x1]
        %v5395 = vld [vmem:[%s5358 + $0x38] sm:$0x1]
        %v5396 = vld [vmem:[%s5358 + $0x44] sm:$0x1]
        %v5397 = vld [vmem:[%s5358 + $0x50] sm:$0x1]
        %v5398 = vld [vmem:[%s5358 + $0x5c] sm:$0x1]
        %v5399 = vld [vmem:[%s5358 + $0x68] sm:$0x1]
        %v5400 = vld [vmem:[%s5358 + $0x74] sm:$0x1]
        %v5401 = vld [vmem:[%s5358 + $0x80] sm:$0x1]
        %v5402 = vld [vmem:[%s5358 + $0x8c] sm:$0x1]
        %v5403 = vld [vmem:[%s5358 + $0x98] sm:$0x1]
        %v5404 = vld [vmem:[%s5358 + $0xa4] sm:$0x1]
        %v5405 = vld [vmem:[%s5358 + $0xb0] sm:$0x1]
        %v5406 = vld [vmem:[%s5358 + $0xbc] sm:$0x1]
        %v5407 = vld [vmem:[%s5358] sm:$0xe]
        %v5408 = vld [vmem:[%s5358 + $0xc] sm:$0xe]
        %v5409 = vld [vmem:[%s5358 + $0x18] sm:$0xe]
        %v5410 = vld [vmem:[%s5358 + $0x24] sm:$0xe]
        %v5411 = vld [vmem:[%s5358 + $0x30] sm:$0xe]
        %v5412 = vld [vmem:[%s5358 + $0x3c] sm:$0xe]
        %v5413 = vld [vmem:[%s5358 + $0x48] sm:$0xe]
        %v5414 = vld [vmem:[%s5358 + $0x54] sm:$0xe]
        %v5415 = vld [vmem:[%s5358 + $0x60] sm:$0xe]
        %v5416 = vld [vmem:[%s5358 + $0x6c] sm:$0xe]
        %v5417 = vld [vmem:[%s5358 + $0x78] sm:$0xe]
        %v5418 = vld [vmem:[%s5358 + $0x84] sm:$0xe]
        %v5419 = vld [vmem:[%s5358 + $0x90] sm:$0xe]
        %v5420 = vld [vmem:[%s5358 + $0x9c] sm:$0xe]
        %v5421 = vld [vmem:[%s5358 + $0xa8] sm:$0xe]
        %v5422 = vld [vmem:[%s5358 + $0xb4] sm:$0xe]
        %v5455 = vunpack.c.l.b16 %v5359
        %v5456 = vunpack.c.l.b16 %v5360
        %v5457 = vunpack.c.l.b16 %v5361
        %v5458 = vunpack.c.l.b16 %v5362
        %v5459 = vunpack.c.l.b16 %v5363
        %v5460 = vunpack.c.l.b16 %v5364
        %v5461 = vunpack.c.l.b16 %v5365
        %v5462 = vunpack.c.l.b16 %v5366
        %v5463 = vunpack.c.l.b16 %v5367
        %v5464 = vunpack.c.l.b16 %v5368
        %v5465 = vunpack.c.l.b16 %v5369
        %v5466 = vunpack.c.l.b16 %v5370
        %v5467 = vunpack.c.l.b16 %v5371
        %v5468 = vunpack.c.l.b16 %v5372
        %v5469 = vunpack.c.l.b16 %v5373
        %v5470 = vunpack.c.l.b16 %v5374
        %v5471 = vunpack.c.l.b16 %v5375
        %v5472 = vunpack.c.l.b16 %v5376
        %v5473 = vunpack.c.l.b16 %v5377
        %v5474 = vunpack.c.l.b16 %v5378
        %v5475 = vunpack.c.l.b16 %v5379
        %v5476 = vunpack.c.l.b16 %v5380
        %v5477 = vunpack.c.l.b16 %v5381
        %v5478 = vunpack.c.l.b16 %v5382
        %v5479 = vunpack.c.l.b16 %v5383
        %v5480 = vunpack.c.l.b16 %v5384
        %v5481 = vunpack.c.l.b16 %v5385
        %v5482 = vunpack.c.l.b16 %v5386
        %v5483 = vunpack.c.l.b16 %v5387
        %v5484 = vunpack.c.l.b16 %v5388
        %v5485 = vunpack.c.l.b16 %v5389
        %v5486 = vunpack.c.l.b16 %v5390
        %v5487 = vpack.c.b16 %v5456, %v5455
        %v5488 = vpack.c.b16 %v5458, %v5457
        %v5489 = vpack.c.b16 %v5460, %v5459
        %v5490 = vpack.c.b16 %v5462, %v5461
        %v5491 = vpack.c.b16 %v5464, %v5463
        %v5492 = vpack.c.b16 %v5466, %v5465
        %v5493 = vpack.c.b16 %v5468, %v5467
        %v5494 = vpack.c.b16 %v5470, %v5469
        %v5495 = vpack.c.b16 %v5472, %v5471
        %v5496 = vpack.c.b16 %v5474, %v5473
        %v5497 = vpack.c.b16 %v5476, %v5475
        %v5498 = vpack.c.b16 %v5478, %v5477
        %v5499 = vpack.c.b16 %v5480, %v5479
        %v5500 = vpack.c.b16 %v5482, %v5481
        %v5501 = vpack.c.b16 %v5484, %v5483
        %v5502 = vpack.c.b16 %v5486, %v5485
        %v5519 = vunpack.c.l.b16 %v5391
        %v5520 = vunpack.c.l.b16 %v5392
        %v5521 = vunpack.c.l.b16 %v5393
        %v5522 = vunpack.c.l.b16 %v5394
        %v5523 = vunpack.c.l.b16 %v5395
        %v5524 = vunpack.c.l.b16 %v5396
        %v5525 = vunpack.c.l.b16 %v5397
        %v5526 = vunpack.c.l.b16 %v5398
        %v5527 = vunpack.c.l.b16 %v5399
        %v5528 = vunpack.c.l.b16 %v5400
        %v5529 = vunpack.c.l.b16 %v5401
        %v5530 = vunpack.c.l.b16 %v5402
        %v5531 = vunpack.c.l.b16 %v5403
        %v5532 = vunpack.c.l.b16 %v5404
        %v5533 = vunpack.c.l.b16 %v5405
        %v5534 = vunpack.c.l.b16 %v5406
        %v5535 = vpack.c.b16 %v5519, %v5519
        %v5536 = vpack.c.b16 %v5520, %v5520
        %v5537 = vpack.c.b16 %v5521, %v5521
        %v5538 = vpack.c.b16 %v5522, %v5522
        %v5539 = vpack.c.b16 %v5523, %v5523
        %v5540 = vpack.c.b16 %v5524, %v5524
        %v5541 = vpack.c.b16 %v5525, %v5525
        %v5542 = vpack.c.b16 %v5526, %v5526
        %v5543 = vpack.c.b16 %v5527, %v5527
        %v5544 = vpack.c.b16 %v5528, %v5528
        %v5545 = vpack.c.b16 %v5529, %v5529
        %v5546 = vpack.c.b16 %v5530, %v5530
        %v5547 = vpack.c.b16 %v5531, %v5531
        %v5548 = vpack.c.b16 %v5532, %v5532
        %v5549 = vpack.c.b16 %v5533, %v5533
        %v5550 = vpack.c.b16 %v5534, %v5534
        %v5552 = vshrl.u32 %v5487, 16
        %v5554 = vshll.u32 %v5487, 16
        %v5556 = vrot.slane %v5554, 1
        %v5557 = vor.u32 %v5552, %v5556
        %v5559 = vshll.u32 %v5535, 16
        %v5561 = vrot.slane %v5559, 1
        %v5562 = vsel %vm482, %v5557, %v5561
        %v5564 = vshrl.u32 %v5488, 16
        %v5566 = vshll.u32 %v5488, 16
        %v5568 = vrot.slane %v5566, 1
        %v5569 = vor.u32 %v5564, %v5568
        %v5571 = vshll.u32 %v5536, 16
        %v5573 = vrot.slane %v5571, 1
        %v5574 = vsel %vm482, %v5569, %v5573
        %v5576 = vshrl.u32 %v5489, 16
        %v5578 = vshll.u32 %v5489, 16
        %v5580 = vrot.slane %v5578, 1
        %v5581 = vor.u32 %v5576, %v5580
        %v5583 = vshll.u32 %v5537, 16
        %v5585 = vrot.slane %v5583, 1
        %v5586 = vsel %vm482, %v5581, %v5585
        %v5588 = vshrl.u32 %v5490, 16
        %v5590 = vshll.u32 %v5490, 16
        %v5592 = vrot.slane %v5590, 1
        %v5593 = vor.u32 %v5588, %v5592
        %v5595 = vshll.u32 %v5538, 16
        %v5597 = vrot.slane %v5595, 1
        %v5598 = vsel %vm482, %v5593, %v5597
        %v5600 = vshrl.u32 %v5491, 16
        %v5602 = vshll.u32 %v5491, 16
        %v5604 = vrot.slane %v5602, 1
        %v5605 = vor.u32 %v5600, %v5604
        %v5607 = vshll.u32 %v5539, 16
        %v5609 = vrot.slane %v5607, 1
        %v5610 = vsel %vm482, %v5605, %v5609
        %v5612 = vshrl.u32 %v5492, 16
        %v5614 = vshll.u32 %v5492, 16
        %v5616 = vrot.slane %v5614, 1
        %v5617 = vor.u32 %v5612, %v5616
        %v5619 = vshll.u32 %v5540, 16
        %v5621 = vrot.slane %v5619, 1
        %v5622 = vsel %vm482, %v5617, %v5621
        %v5624 = vshrl.u32 %v5493, 16
        %v5626 = vshll.u32 %v5493, 16
        %v5628 = vrot.slane %v5626, 1
        %v5629 = vor.u32 %v5624, %v5628
        %v5631 = vshll.u32 %v5541, 16
        %v5633 = vrot.slane %v5631, 1
        %v5634 = vsel %vm482, %v5629, %v5633
        %v5636 = vshrl.u32 %v5494, 16
        %v5638 = vshll.u32 %v5494, 16
        %v5640 = vrot.slane %v5638, 1
        %v5641 = vor.u32 %v5636, %v5640
        %v5643 = vshll.u32 %v5542, 16
        %v5645 = vrot.slane %v5643, 1
        %v5646 = vsel %vm482, %v5641, %v5645
        %v5648 = vshrl.u32 %v5495, 16
        %v5650 = vshll.u32 %v5495, 16
        %v5652 = vrot.slane %v5650, 1
        %v5653 = vor.u32 %v5648, %v5652
        %v5655 = vshll.u32 %v5543, 16
        %v5657 = vrot.slane %v5655, 1
        %v5658 = vsel %vm482, %v5653, %v5657
        %v5660 = vshrl.u32 %v5496, 16
        %v5662 = vshll.u32 %v5496, 16
        %v5664 = vrot.slane %v5662, 1
        %v5665 = vor.u32 %v5660, %v5664
        %v5667 = vshll.u32 %v5544, 16
        %v5669 = vrot.slane %v5667, 1
        %v5670 = vsel %vm482, %v5665, %v5669
        %v5672 = vshrl.u32 %v5497, 16
        %v5674 = vshll.u32 %v5497, 16
        %v5676 = vrot.slane %v5674, 1
        %v5677 = vor.u32 %v5672, %v5676
        %v5679 = vshll.u32 %v5545, 16
        %v5681 = vrot.slane %v5679, 1
        %v5682 = vsel %vm482, %v5677, %v5681
        %v5684 = vshrl.u32 %v5498, 16
        %v5686 = vshll.u32 %v5498, 16
        %v5688 = vrot.slane %v5686, 1
        %v5689 = vor.u32 %v5684, %v5688
        %v5691 = vshll.u32 %v5546, 16
        %v5693 = vrot.slane %v5691, 1
        %v5694 = vsel %vm482, %v5689, %v5693
        %v5696 = vshrl.u32 %v5499, 16
        %v5698 = vshll.u32 %v5499, 16
        %v5700 = vrot.slane %v5698, 1
        %v5701 = vor.u32 %v5696, %v5700
        %v5703 = vshll.u32 %v5547, 16
        %v5705 = vrot.slane %v5703, 1
        %v5706 = vsel %vm482, %v5701, %v5705
        %v5708 = vshrl.u32 %v5500, 16
        %v5710 = vshll.u32 %v5500, 16
        %v5712 = vrot.slane %v5710, 1
        %v5713 = vor.u32 %v5708, %v5712
        %v5715 = vshll.u32 %v5548, 16
        %v5717 = vrot.slane %v5715, 1
        %v5718 = vsel %vm482, %v5713, %v5717
        %v5720 = vshrl.u32 %v5501, 16
        %v5722 = vshll.u32 %v5501, 16
        %v5724 = vrot.slane %v5722, 1
        %v5725 = vor.u32 %v5720, %v5724
        %v5727 = vshll.u32 %v5549, 16
        %v5729 = vrot.slane %v5727, 1
        %v5730 = vsel %vm482, %v5725, %v5729
        %v5732 = vshrl.u32 %v5502, 16
        %v5734 = vshll.u32 %v5502, 16
        %v5736 = vrot.slane %v5734, 1
        %v5737 = vor.u32 %v5732, %v5736
        %v5739 = vshll.u32 %v5550, 16
        %v5741 = vrot.slane %v5739, 1
        %v5742 = vsel %vm482, %v5737, %v5741
        %5743 = vrot.lane.b32.xlu0 %v5562, 64
        %v5744 = vpop.permute.xlu0 %5743
        %5745 = vrot.lane.b32.xlu0 %v5574, 64
        %v5746 = vpop.permute.xlu0 %5745
        %5747 = vrot.lane.b32.xlu0 %v5586, 64
        %v5748 = vpop.permute.xlu0 %5747
        %5749 = vrot.lane.b32.xlu0 %v5598, 64
        %v5750 = vpop.permute.xlu0 %5749
        %5751 = vrot.lane.b32.xlu0 %v5610, 64
        %v5752 = vpop.permute.xlu0 %5751
        %5753 = vrot.lane.b32.xlu0 %v5622, 64
        %v5754 = vpop.permute.xlu0 %5753
        %5755 = vrot.lane.b32.xlu0 %v5634, 64
        %v5756 = vpop.permute.xlu0 %5755
        %5757 = vrot.lane.b32.xlu0 %v5646, 64
        %v5758 = vpop.permute.xlu0 %5757
        %5759 = vrot.lane.b32.xlu0 %v5658, 64
        %v5760 = vpop.permute.xlu0 %5759
        %5761 = vrot.lane.b32.xlu0 %v5670, 64
        %v5762 = vpop.permute.xlu0 %5761
        %5763 = vrot.lane.b32.xlu0 %v5682, 64
        %v5764 = vpop.permute.xlu0 %5763
        %5765 = vrot.lane.b32.xlu0 %v5694, 64
        %v5766 = vpop.permute.xlu0 %5765
        %5767 = vrot.lane.b32.xlu0 %v5706, 64
        %v5768 = vpop.permute.xlu0 %5767
        %5769 = vrot.lane.b32.xlu0 %v5718, 64
        %v5770 = vpop.permute.xlu0 %5769
        %5771 = vrot.lane.b32.xlu0 %v5730, 64
        %v5772 = vpop.permute.xlu0 %5771
        %5773 = vrot.lane.b32.xlu0 %v5742, 64
        %v5774 = vpop.permute.xlu0 %5773
        %v5791 = vunpack.c.l.b16 %v5407
        %v5792 = vunpack.c.l.b16 %v5408
        %v5793 = vunpack.c.l.b16 %v5409
        %v5794 = vunpack.c.l.b16 %v5410
        %v5795 = vunpack.c.l.b16 %v5411
        %v5796 = vunpack.c.l.b16 %v5412
        %v5797 = vunpack.c.l.b16 %v5413
        %v5798 = vunpack.c.l.b16 %v5414
        %v5799 = vunpack.c.l.b16 %v5415
        %v5800 = vunpack.c.l.b16 %v5416
        %v5801 = vunpack.c.l.b16 %v5417
        %v5802 = vunpack.c.l.b16 %v5418
        %v5803 = vunpack.c.l.b16 %v5419
        %v5804 = vunpack.c.l.b16 %v5420
        %v5805 = vunpack.c.l.b16 %v5421
        %v5806 = vunpack.c.l.b16 %v5422
        %v5807 = vpack.c.b16 %v5456, %v5791
        %v5808 = vpack.c.b16 %v5458, %v5792
        %v5809 = vpack.c.b16 %v5460, %v5793
        %v5810 = vpack.c.b16 %v5462, %v5794
        %v5811 = vpack.c.b16 %v5464, %v5795
        %v5812 = vpack.c.b16 %v5466, %v5796
        %v5813 = vpack.c.b16 %v5468, %v5797
        %v5814 = vpack.c.b16 %v5470, %v5798
        %v5815 = vpack.c.b16 %v5472, %v5799
        %v5816 = vpack.c.b16 %v5474, %v5800
        %v5817 = vpack.c.b16 %v5476, %v5801
        %v5818 = vpack.c.b16 %v5478, %v5802
        %v5819 = vpack.c.b16 %v5480, %v5803
        %v5820 = vpack.c.b16 %v5482, %v5804
        %v5821 = vpack.c.b16 %v5484, %v5805
        %v5822 = vpack.c.b16 %v5486, %v5806
        %v5823 = vrot.slane %v5807, 1
        %v5824 = vrot.slane %v5535, 1
        %v5825 = vsel %vm755, %v5823, %v5824
        %v5826 = vrot.slane %v5808, 1
        %v5827 = vrot.slane %v5536, 1
        %v5828 = vsel %vm755, %v5826, %v5827
        %v5829 = vrot.slane %v5809, 1
        %v5830 = vrot.slane %v5537, 1
        %v5831 = vsel %vm755, %v5829, %v5830
        %v5832 = vrot.slane %v5810, 1
        %v5833 = vrot.slane %v5538, 1
        %v5834 = vsel %vm755, %v5832, %v5833
        %v5835 = vrot.slane %v5811, 1
        %v5836 = vrot.slane %v5539, 1
        %v5837 = vsel %vm755, %v5835, %v5836
        %v5838 = vrot.slane %v5812, 1
        %v5839 = vrot.slane %v5540, 1
        %v5840 = vsel %vm755, %v5838, %v5839
        %v5841 = vrot.slane %v5813, 1
        %v5842 = vrot.slane %v5541, 1
        %v5843 = vsel %vm755, %v5841, %v5842
        %v5844 = vrot.slane %v5814, 1
        %v5845 = vrot.slane %v5542, 1
        %v5846 = vsel %vm755, %v5844, %v5845
        %v5847 = vrot.slane %v5815, 1
        %v5848 = vrot.slane %v5543, 1
        %v5849 = vsel %vm755, %v5847, %v5848
        %v5850 = vrot.slane %v5816, 1
        %v5851 = vrot.slane %v5544, 1
        %v5852 = vsel %vm755, %v5850, %v5851
        %v5853 = vrot.slane %v5817, 1
        %v5854 = vrot.slane %v5545, 1
        %v5855 = vsel %vm755, %v5853, %v5854
        %v5856 = vrot.slane %v5818, 1
        %v5857 = vrot.slane %v5546, 1
        %v5858 = vsel %vm755, %v5856, %v5857
        %v5859 = vrot.slane %v5819, 1
        %v5860 = vrot.slane %v5547, 1
        %v5861 = vsel %vm755, %v5859, %v5860
        %v5862 = vrot.slane %v5820, 1
        %v5863 = vrot.slane %v5548, 1
        %v5864 = vsel %vm755, %v5862, %v5863
        %v5865 = vrot.slane %v5821, 1
        %v5866 = vrot.slane %v5549, 1
        %v5867 = vsel %vm755, %v5865, %v5866
        %v5868 = vrot.slane %v5822, 1
        %v5869 = vrot.slane %v5550, 1
        %v5870 = vsel %vm755, %v5868, %v5869
        %v5872 = vsel %vm804, %v5487, %v5744
        %v5875 = vsel %vm804, %v5488, %v5746
        %v5878 = vsel %vm804, %v5489, %v5748
        %v5881 = vsel %vm804, %v5490, %v5750
        %v5884 = vsel %vm804, %v5491, %v5752
        %v5887 = vsel %vm804, %v5492, %v5754
        %v5890 = vsel %vm804, %v5493, %v5756
        %v5893 = vsel %vm804, %v5494, %v5758
        %v5896 = vsel %vm804, %v5495, %v5760
        %v5899 = vsel %vm804, %v5496, %v5762
        %v5902 = vsel %vm804, %v5497, %v5764
        %v5905 = vsel %vm804, %v5498, %v5766
        %v5908 = vsel %vm804, %v5499, %v5768
        %v5911 = vsel %vm804, %v5500, %v5770
        %v5914 = vsel %vm804, %v5501, %v5772
        %v5917 = vsel %vm804, %v5502, %v5774
        %s5919 = scalar_lea.vmem %s4, 192
        %v5920 = vld [vmem:[%s5919] sm:$0xf]
        %v5921 = vld [vmem:[%s5919 + $0x4] sm:$0xf]
        %v5922 = vld [vmem:[%s5919 + $0x8] sm:$0xf]
        %v5923 = vld [vmem:[%s5919 + $0xc] sm:$0xf]
        %v5924 = vld [vmem:[%s5919 + $0x10] sm:$0xf]
        %v5925 = vld [vmem:[%s5919 + $0x14] sm:$0xf]
        %v5926 = vld [vmem:[%s5919 + $0x18] sm:$0xf]
        %v5927 = vld [vmem:[%s5919 + $0x1c] sm:$0xf]
        %v5928 = vld [vmem:[%s5919 + $0x20] sm:$0xf]
        %v5929 = vld [vmem:[%s5919 + $0x24] sm:$0xf]
        %v5930 = vld [vmem:[%s5919 + $0x28] sm:$0xf]
        %v5931 = vld [vmem:[%s5919 + $0x2c] sm:$0xf]
        %v5932 = vld [vmem:[%s5919 + $0x30] sm:$0xf]
        %v5933 = vld [vmem:[%s5919 + $0x34] sm:$0xf]
        %v5934 = vld [vmem:[%s5919 + $0x38] sm:$0xf]
        %v5935 = vld [vmem:[%s5919 + $0x3c] sm:$0xf]
        %v5936 = vld [vmem:[%s5919 + $0x40] sm:$0xf]
        %v5937 = vld [vmem:[%s5919 + $0x44] sm:$0xf]
        %v5938 = vld [vmem:[%s5919 + $0x48] sm:$0xf]
        %v5939 = vld [vmem:[%s5919 + $0x4c] sm:$0xf]
        %v5940 = vld [vmem:[%s5919 + $0x50] sm:$0xf]
        %v5941 = vld [vmem:[%s5919 + $0x54] sm:$0xf]
        %v5942 = vld [vmem:[%s5919 + $0x58] sm:$0xf]
        %v5943 = vld [vmem:[%s5919 + $0x5c] sm:$0xf]
        %v5968 = vunpack.c.l.b16 %v5920
        %v5969 = vunpack.c.l.b16 %v5921
        %v5970 = vunpack.c.l.b16 %v5922
        %v5971 = vunpack.c.l.b16 %v5923
        %v5972 = vunpack.c.l.b16 %v5924
        %v5973 = vunpack.c.l.b16 %v5925
        %v5974 = vunpack.c.l.b16 %v5926
        %v5975 = vunpack.c.l.b16 %v5927
        %v5976 = vunpack.c.l.b16 %v5928
        %v5977 = vunpack.c.l.b16 %v5929
        %v5978 = vunpack.c.l.b16 %v5930
        %v5979 = vunpack.c.l.b16 %v5931
        %v5980 = vunpack.c.l.b16 %v5932
        %v5981 = vunpack.c.l.b16 %v5933
        %v5982 = vunpack.c.l.b16 %v5934
        %v5983 = vunpack.c.l.b16 %v5935
        %v5984 = vunpack.c.l.b16 %v5936
        %v5985 = vunpack.c.l.b16 %v5937
        %v5986 = vunpack.c.l.b16 %v5938
        %v5987 = vunpack.c.l.b16 %v5939
        %v5988 = vunpack.c.l.b16 %v5940
        %v5989 = vunpack.c.l.b16 %v5941
        %v5990 = vunpack.c.l.b16 %v5942
        %v5991 = vunpack.c.l.b16 %v5943
        %v5992 = vpack.c.b16 %v5969, %v5968
        %v5993 = vpack.c.b16 %v5971, %v5970
        %v5994 = vpack.c.b16 %v5973, %v5972
        %v5995 = vpack.c.b16 %v5975, %v5974
        %v5996 = vpack.c.b16 %v5977, %v5976
        %v5997 = vpack.c.b16 %v5979, %v5978
        %v5998 = vpack.c.b16 %v5981, %v5980
        %v5999 = vpack.c.b16 %v5983, %v5982
        %v6000 = vpack.c.b16 %v5985, %v5984
        %v6001 = vpack.c.b16 %v5987, %v5986
        %v6002 = vpack.c.b16 %v5989, %v5988
        %v6003 = vpack.c.b16 %v5991, %v5990
        %v6017 = vsel %vm804, %v5825, 0
        %v6020 = vsel %vm804, %v5828, 0
        %v6023 = vsel %vm804, %v5831, 0
        %v6026 = vsel %vm804, %v5834, 0
        %v6029 = vsel %vm804, %v5837, 0
        %v6032 = vsel %vm804, %v5840, 0
        %v6035 = vsel %vm804, %v5843, 0
        %v6038 = vsel %vm804, %v5846, 0
        %v6041 = vsel %vm804, %v5849, 0
        %v6044 = vsel %vm804, %v5852, 0
        %v6047 = vsel %vm804, %v5855, 0
        %v6050 = vsel %vm804, %v5858, 0
        %v6053 = vsel %vm804, %v5861, 0
        %v6056 = vsel %vm804, %v5864, 0
        %v6059 = vsel %vm804, %v5867, 0
        %v6062 = vsel %vm804, %v5870, 0
        %6064 = vmatpush.bf16.msra.mxu0 %v5999
        %6065 = vmatpush.bf16.msra.mxu0 %v5998
        %6066 = vmatpush.bf16.msra.mxu0 %v5997
        %6067 = vmatpush.bf16.msra.mxu0 %v5996
        %6068 = vmatpush.bf16.msra.mxu0 %v5995
        %6069 = vmatpush.bf16.msra.mxu0 %v5994
        %6070 = vmatpush.bf16.msra.mxu0 %v5993
        %6071 = vmatpush.bf16.msra.mxu0 %v5992
        %6072 = vmatmul.bf16.gmra.mxu0 %v5872
        %v6073 = vpop.f32.mrf.mxu0
        %v6074 = vadd.f32 0.0, %v6073
        %v6075 = vpop.f32.mrf.mxu0
        %v6076 = vadd.f32 0.0, %v6075
        %6077 = vmatmul.bf16.gmra.mxu0 %v5875
        %v6078 = vpop.f32.mrf.mxu0
        %v6079 = vadd.f32 0.0, %v6078
        %v6080 = vpop.f32.mrf.mxu0
        %v6081 = vadd.f32 0.0, %v6080
        %6082 = vmatmul.bf16.gmra.mxu0 %v5878
        %v6083 = vpop.f32.mrf.mxu0
        %v6084 = vadd.f32 0.0, %v6083
        %v6085 = vpop.f32.mrf.mxu0
        %v6086 = vadd.f32 0.0, %v6085
        %6087 = vmatmul.bf16.gmra.mxu0 %v5881
        %v6088 = vpop.f32.mrf.mxu0
        %v6089 = vadd.f32 0.0, %v6088
        %v6090 = vpop.f32.mrf.mxu0
        %v6091 = vadd.f32 0.0, %v6090
        %6092 = vmatmul.bf16.gmra.mxu0 %v5884
        %v6093 = vpop.f32.mrf.mxu0
        %v6094 = vadd.f32 0.0, %v6093
        %v6095 = vpop.f32.mrf.mxu0
        %v6096 = vadd.f32 0.0, %v6095
        %6097 = vmatmul.bf16.gmra.mxu0 %v5887
        %v6098 = vpop.f32.mrf.mxu0
        %v6099 = vadd.f32 0.0, %v6098
        %v6100 = vpop.f32.mrf.mxu0
        %v6101 = vadd.f32 0.0, %v6100
        %6102 = vmatmul.bf16.gmra.mxu0 %v5890
        %v6103 = vpop.f32.mrf.mxu0
        %v6104 = vadd.f32 0.0, %v6103
        %v6105 = vpop.f32.mrf.mxu0
        %v6106 = vadd.f32 0.0, %v6105
        %6107 = vmatmul.bf16.gmra.mxu0 %v5893
        %v6108 = vpop.f32.mrf.mxu0
        %v6109 = vadd.f32 0.0, %v6108
        %v6110 = vpop.f32.mrf.mxu0
        %v6111 = vadd.f32 0.0, %v6110
        %6112 = vmatmul.bf16.gmra.mxu0 %v5896
        %v6113 = vpop.f32.mrf.mxu0
        %v6114 = vadd.f32 0.0, %v6113
        %v6115 = vpop.f32.mrf.mxu0
        %v6116 = vadd.f32 0.0, %v6115
        %6117 = vmatmul.bf16.gmra.mxu0 %v5899
        %v6118 = vpop.f32.mrf.mxu0
        %v6119 = vadd.f32 0.0, %v6118
        %v6120 = vpop.f32.mrf.mxu0
        %v6121 = vadd.f32 0.0, %v6120
        %6122 = vmatmul.bf16.gmra.mxu0 %v5902
        %v6123 = vpop.f32.mrf.mxu0
        %v6124 = vadd.f32 0.0, %v6123
        %v6125 = vpop.f32.mrf.mxu0
        %v6126 = vadd.f32 0.0, %v6125
        %6127 = vmatmul.bf16.gmra.mxu0 %v5905
        %v6128 = vpop.f32.mrf.mxu0
        %v6129 = vadd.f32 0.0, %v6128
        %v6130 = vpop.f32.mrf.mxu0
        %v6131 = vadd.f32 0.0, %v6130
        %6132 = vmatmul.bf16.gmra.mxu0 %v5908
        %v6133 = vpop.f32.mrf.mxu0
        %v6134 = vadd.f32 0.0, %v6133
        %v6135 = vpop.f32.mrf.mxu0
        %v6136 = vadd.f32 0.0, %v6135
        %6137 = vmatmul.bf16.gmra.mxu0 %v5911
        %v6138 = vpop.f32.mrf.mxu0
        %v6139 = vadd.f32 0.0, %v6138
        %v6140 = vpop.f32.mrf.mxu0
        %v6141 = vadd.f32 0.0, %v6140
        %6142 = vmatmul.bf16.gmra.mxu0 %v5914
        %v6143 = vpop.f32.mrf.mxu0
        %v6144 = vadd.f32 0.0, %v6143
        %v6145 = vpop.f32.mrf.mxu0
        %v6146 = vadd.f32 0.0, %v6145
        %6147 = vmatmul.bf16.gmra.mxu0 %v5917
        %v6148 = vpop.f32.mrf.mxu0
        %v6149 = vadd.f32 0.0, %v6148
        %v6150 = vpop.f32.mrf.mxu0
        %v6151 = vadd.f32 0.0, %v6150
        %6152 = vdwg.mxu0
        %6153 = vmatpush.bf16.msra.mxu0 0
        %6154 = vmatpush.bf16.msra.mxu0 0
        %6155 = vmatpush.bf16.msra.mxu0 0
        %6156 = vmatpush.bf16.msra.mxu0 0
        %6157 = vmatpush.bf16.msra.mxu0 %v6003
        %6158 = vmatpush.bf16.msra.mxu0 %v6002
        %6159 = vmatpush.bf16.msra.mxu0 %v6001
        %6160 = vmatpush.bf16.msra.mxu0 %v6000
        %6161 = vmatmul.bf16.gmra.mxu0 %v6017
        %v6162 = vpop.f32.mrf.mxu0
        %v6163 = vadd.f32 %v6074, %v6162
        %v6164 = vpop.f32.mrf.mxu0
        %v6165 = vadd.f32 %v6076, %v6164
        %6166 = vmatmul.bf16.gmra.mxu0 %v6020
        %v6167 = vpop.f32.mrf.mxu0
        %v6168 = vadd.f32 %v6079, %v6167
        %v6169 = vpop.f32.mrf.mxu0
        %v6170 = vadd.f32 %v6081, %v6169
        %6171 = vmatmul.bf16.gmra.mxu0 %v6023
        %v6172 = vpop.f32.mrf.mxu0
        %v6173 = vadd.f32 %v6084, %v6172
        %v6174 = vpop.f32.mrf.mxu0
        %v6175 = vadd.f32 %v6086, %v6174
        %6176 = vmatmul.bf16.gmra.mxu0 %v6026
        %v6177 = vpop.f32.mrf.mxu0
        %v6178 = vadd.f32 %v6089, %v6177
        %v6179 = vpop.f32.mrf.mxu0
        %v6180 = vadd.f32 %v6091, %v6179
        %6181 = vmatmul.bf16.gmra.mxu0 %v6029
        %v6182 = vpop.f32.mrf.mxu0
        %v6183 = vadd.f32 %v6094, %v6182
        %v6184 = vpop.f32.mrf.mxu0
        %v6185 = vadd.f32 %v6096, %v6184
        %6186 = vmatmul.bf16.gmra.mxu0 %v6032
        %v6187 = vpop.f32.mrf.mxu0
        %v6188 = vadd.f32 %v6099, %v6187
        %v6189 = vpop.f32.mrf.mxu0
        %v6190 = vadd.f32 %v6101, %v6189
        %6191 = vmatmul.bf16.gmra.mxu0 %v6035
        %v6192 = vpop.f32.mrf.mxu0
        %v6193 = vadd.f32 %v6104, %v6192
        %v6194 = vpop.f32.mrf.mxu0
        %v6195 = vadd.f32 %v6106, %v6194
        %6196 = vmatmul.bf16.gmra.mxu0 %v6038
        %v6197 = vpop.f32.mrf.mxu0
        %v6198 = vadd.f32 %v6109, %v6197
        %v6199 = vpop.f32.mrf.mxu0
        %v6200 = vadd.f32 %v6111, %v6199
        %6201 = vmatmul.bf16.gmra.mxu0 %v6041
        %v6202 = vpop.f32.mrf.mxu0
        %v6203 = vadd.f32 %v6114, %v6202
        %v6204 = vpop.f32.mrf.mxu0
        %v6205 = vadd.f32 %v6116, %v6204
        %6206 = vmatmul.bf16.gmra.mxu0 %v6044
        %v6207 = vpop.f32.mrf.mxu0
        %v6208 = vadd.f32 %v6119, %v6207
        %v6209 = vpop.f32.mrf.mxu0
        %v6210 = vadd.f32 %v6121, %v6209
        %6211 = vmatmul.bf16.gmra.mxu0 %v6047
        %v6212 = vpop.f32.mrf.mxu0
        %v6213 = vadd.f32 %v6124, %v6212
        %v6214 = vpop.f32.mrf.mxu0
        %v6215 = vadd.f32 %v6126, %v6214
        %6216 = vmatmul.bf16.gmra.mxu0 %v6050
        %v6217 = vpop.f32.mrf.mxu0
        %v6218 = vadd.f32 %v6129, %v6217
        %v6219 = vpop.f32.mrf.mxu0
        %v6220 = vadd.f32 %v6131, %v6219
        %6221 = vmatmul.bf16.gmra.mxu0 %v6053
        %v6222 = vpop.f32.mrf.mxu0
        %v6223 = vadd.f32 %v6134, %v6222
        %v6224 = vpop.f32.mrf.mxu0
        %v6225 = vadd.f32 %v6136, %v6224
        %6226 = vmatmul.bf16.gmra.mxu0 %v6056
        %v6227 = vpop.f32.mrf.mxu0
        %v6228 = vadd.f32 %v6139, %v6227
        %v6229 = vpop.f32.mrf.mxu0
        %v6230 = vadd.f32 %v6141, %v6229
        %6231 = vmatmul.bf16.gmra.mxu0 %v6059
        %v6232 = vpop.f32.mrf.mxu0
        %v6233 = vadd.f32 %v6144, %v6232
        %v6234 = vpop.f32.mrf.mxu0
        %v6235 = vadd.f32 %v6146, %v6234
        %6236 = vmatmul.bf16.gmra.mxu0 %v6062
        %v6237 = vpop.f32.mrf.mxu0
        %v6238 = vadd.f32 %v6149, %v6237
        %v6239 = vpop.f32.mrf.mxu0
        %v6240 = vadd.f32 %v6151, %v6239
        %6241 = vdwg.mxu0
        %v6242 = vadd.f32 %v5279, %v6163
        %v6243 = vadd.f32 %v5281, %v6165
        %v6244 = vadd.f32 %v5284, %v6168
        %v6245 = vadd.f32 %v5286, %v6170
        %v6246 = vadd.f32 %v5289, %v6173
        %v6247 = vadd.f32 %v5291, %v6175
        %v6248 = vadd.f32 %v5294, %v6178
        %v6249 = vadd.f32 %v5296, %v6180
        %v6250 = vadd.f32 %v5299, %v6183
        %v6251 = vadd.f32 %v5301, %v6185
        %v6252 = vadd.f32 %v5304, %v6188
        %v6253 = vadd.f32 %v5306, %v6190
        %v6254 = vadd.f32 %v5309, %v6193
        %v6255 = vadd.f32 %v5311, %v6195
        %v6256 = vadd.f32 %v5314, %v6198
        %v6257 = vadd.f32 %v5316, %v6200
        %v6258 = vadd.f32 %v5319, %v6203
        %v6259 = vadd.f32 %v5321, %v6205
        %v6260 = vadd.f32 %v5324, %v6208
        %v6261 = vadd.f32 %v5326, %v6210
        %v6262 = vadd.f32 %v5329, %v6213
        %v6263 = vadd.f32 %v5331, %v6215
        %v6264 = vadd.f32 %v5334, %v6218
        %v6265 = vadd.f32 %v5336, %v6220
        %v6266 = vadd.f32 %v5339, %v6223
        %v6267 = vadd.f32 %v5341, %v6225
        %v6268 = vadd.f32 %v5344, %v6228
        %v6269 = vadd.f32 %v5346, %v6230
        %v6270 = vadd.f32 %v5349, %v6233
        %v6271 = vadd.f32 %v5351, %v6235
        %v6272 = vadd.f32 %v5354, %v6238
        %v6273 = vadd.f32 %v5356, %v6240
        %v6275 = vperm.slane %v280, 0
        %v6277 = vmul.f32 %v6242, %v6275
        %v6278 = vmul.f32 %v6243, %v6275
        %v6279 = vmul.f32 %v6244, %v6275
        %v6280 = vmul.f32 %v6245, %v6275
        %v6281 = vmul.f32 %v6246, %v6275
        %v6282 = vmul.f32 %v6247, %v6275
        %v6283 = vmul.f32 %v6248, %v6275
        %v6284 = vmul.f32 %v6249, %v6275
        %v6285 = vmul.f32 %v6250, %v6275
        %v6286 = vmul.f32 %v6251, %v6275
        %v6287 = vmul.f32 %v6252, %v6275
        %v6288 = vmul.f32 %v6253, %v6275
        %v6289 = vmul.f32 %v6254, %v6275
        %v6290 = vmul.f32 %v6255, %v6275
        %v6291 = vmul.f32 %v6256, %v6275
        %v6292 = vmul.f32 %v6257, %v6275
        %v6293 = vmul.f32 %v6258, %v6275
        %v6294 = vmul.f32 %v6259, %v6275
        %v6295 = vmul.f32 %v6260, %v6275
        %v6296 = vmul.f32 %v6261, %v6275
        %v6297 = vmul.f32 %v6262, %v6275
        %v6298 = vmul.f32 %v6263, %v6275
        %v6299 = vmul.f32 %v6264, %v6275
        %v6300 = vmul.f32 %v6265, %v6275
        %v6301 = vmul.f32 %v6266, %v6275
        %v6302 = vmul.f32 %v6267, %v6275
        %v6303 = vmul.f32 %v6268, %v6275
        %v6304 = vmul.f32 %v6269, %v6275
        %v6305 = vmul.f32 %v6270, %v6275
        %v6306 = vmul.f32 %v6271, %v6275
        %v6307 = vmul.f32 %v6272, %v6275
        %v6308 = vmul.f32 %v6273, %v6275
        %v6310 = vperm.slane %v281, 0
        %v6312 = vadd.f32 %v6277, %v6310
        %v6313 = vadd.f32 %v6278, %v6310
        %v6314 = vadd.f32 %v6279, %v6310
        %v6315 = vadd.f32 %v6280, %v6310
        %v6316 = vadd.f32 %v6281, %v6310
        %v6317 = vadd.f32 %v6282, %v6310
        %v6318 = vadd.f32 %v6283, %v6310
        %v6319 = vadd.f32 %v6284, %v6310
        %v6320 = vadd.f32 %v6285, %v6310
        %v6321 = vadd.f32 %v6286, %v6310
        %v6322 = vadd.f32 %v6287, %v6310
        %v6323 = vadd.f32 %v6288, %v6310
        %v6324 = vadd.f32 %v6289, %v6310
        %v6325 = vadd.f32 %v6290, %v6310
        %v6326 = vadd.f32 %v6291, %v6310
        %v6327 = vadd.f32 %v6292, %v6310
        %v6328 = vadd.f32 %v6293, %v6310
        %v6329 = vadd.f32 %v6294, %v6310
        %v6330 = vadd.f32 %v6295, %v6310
        %v6331 = vadd.f32 %v6296, %v6310
        %v6332 = vadd.f32 %v6297, %v6310
        %v6333 = vadd.f32 %v6298, %v6310
        %v6334 = vadd.f32 %v6299, %v6310
        %v6335 = vadd.f32 %v6300, %v6310
        %v6336 = vadd.f32 %v6301, %v6310
        %v6337 = vadd.f32 %v6302, %v6310
        %v6338 = vadd.f32 %v6303, %v6310
        %v6339 = vadd.f32 %v6304, %v6310
        %v6340 = vadd.f32 %v6305, %v6310
        %v6341 = vadd.f32 %v6306, %v6310
        %v6342 = vadd.f32 %v6307, %v6310
        %v6343 = vadd.f32 %v6308, %v6310
        %v6344 = vld [vmem:[%s877] sm:$0xf]
        %v6345 = vld [vmem:[%s877 + $0x4] sm:$0xf]
        %v6346 = vld [vmem:[%s877 + $0x8] sm:$0x1]
        %v6347 = vld [vmem:[%s877 + $0xc] sm:$0xf]
        %v6348 = vld [vmem:[%s877 + $0x10] sm:$0xf]
        %v6349 = vld [vmem:[%s877 + $0x14] sm:$0x1]
        %v6350 = vld [vmem:[%s877 + $0x18] sm:$0xf]
        %v6351 = vld [vmem:[%s877 + $0x1c] sm:$0xf]
        %v6352 = vld [vmem:[%s877 + $0x20] sm:$0x1]
        %v6353 = vld [vmem:[%s877 + $0x24] sm:$0xf]
        %v6354 = vld [vmem:[%s877 + $0x28] sm:$0xf]
        %v6355 = vld [vmem:[%s877 + $0x2c] sm:$0x1]
        %v6356 = vld [vmem:[%s877 + $0x30] sm:$0xf]
        %v6357 = vld [vmem:[%s877 + $0x34] sm:$0xf]
        %v6358 = vld [vmem:[%s877 + $0x38] sm:$0x1]
        %v6359 = vld [vmem:[%s877 + $0x3c] sm:$0xf]
        %v6360 = vld [vmem:[%s877 + $0x40] sm:$0xf]
        %v6361 = vld [vmem:[%s877 + $0x44] sm:$0x1]
        %v6362 = vld [vmem:[%s877 + $0x48] sm:$0xf]
        %v6363 = vld [vmem:[%s877 + $0x4c] sm:$0xf]
        %v6364 = vld [vmem:[%s877 + $0x50] sm:$0x1]
        %v6365 = vld [vmem:[%s877 + $0x54] sm:$0xf]
        %v6366 = vld [vmem:[%s877 + $0x58] sm:$0xf]
        %v6367 = vld [vmem:[%s877 + $0x5c] sm:$0x1]
        %v6368 = vld [vmem:[%s877 + $0x60] sm:$0xf]
        %v6369 = vld [vmem:[%s877 + $0x64] sm:$0xf]
        %v6370 = vld [vmem:[%s877 + $0x68] sm:$0x1]
        %v6371 = vld [vmem:[%s877 + $0x6c] sm:$0xf]
        %v6372 = vld [vmem:[%s877 + $0x70] sm:$0xf]
        %v6373 = vld [vmem:[%s877 + $0x74] sm:$0x1]
        %v6374 = vld [vmem:[%s877 + $0x78] sm:$0xf]
        %v6375 = vld [vmem:[%s877 + $0x7c] sm:$0xf]
        %v6376 = vld [vmem:[%s877 + $0x80] sm:$0x1]
        %v6377 = vld [vmem:[%s877 + $0x84] sm:$0xf]
        %v6378 = vld [vmem:[%s877 + $0x88] sm:$0xf]
        %v6379 = vld [vmem:[%s877 + $0x8c] sm:$0x1]
        %v6380 = vld [vmem:[%s877 + $0x90] sm:$0xf]
        %v6381 = vld [vmem:[%s877 + $0x94] sm:$0xf]
        %v6382 = vld [vmem:[%s877 + $0x98] sm:$0x1]
        %v6383 = vld [vmem:[%s877 + $0x9c] sm:$0xf]
        %v6384 = vld [vmem:[%s877 + $0xa0] sm:$0xf]
        %v6385 = vld [vmem:[%s877 + $0xa4] sm:$0x1]
        %v6386 = vld [vmem:[%s877 + $0xa8] sm:$0xf]
        %v6387 = vld [vmem:[%s877 + $0xac] sm:$0xf]
        %v6388 = vld [vmem:[%s877 + $0xb0] sm:$0x1]
        %v6389 = vld [vmem:[%s877 + $0xb4] sm:$0xf]
        %v6390 = vld [vmem:[%s877 + $0xb8] sm:$0xf]
        %v6391 = vld [vmem:[%s877 + $0xbc] sm:$0x1]
        %vm6392 = vsmask.f32 3328
        %vm6393 = vsmask.f32 7440
        %vm6394 = vmor %vm6392, %vm6393
        %v6396 = vshrl.u32 %v6344, 16
        %v6398 = vrot.slane %v6396, 4
        %v6399 = vshll.u32 %v6344, 16
        %v6401 = vrot.slane %v6399, 5
        %v6402 = vor.u32 %v6398, %v6401
        %v6403 = vrot.slane %v6402, 4
        %v6405 = vshll.u32 %v6345, 16
        %v6407 = vrot.slane %v6405, 5
        %v6408 = vsel %vm6394, %v6403, %v6407
        %v6409 = vshrl.u32 %v6345, 16
        %v6411 = vrot.slane %v6409, 4
        %v6412 = vor.u32 %v6411, %v6407
        %v6413 = vrot.slane %v6412, 4
        %v6415 = vshll.u32 %v6346, 16
        %v6417 = vrot.slane %v6415, 5
        %v6418 = vsel %vm6394, %v6413, %v6417
        %v6420 = vshrl.u32 %v6347, 16
        %v6422 = vrot.slane %v6420, 4
        %v6423 = vshll.u32 %v6347, 16
        %v6425 = vrot.slane %v6423, 5
        %v6426 = vor.u32 %v6422, %v6425
        %v6427 = vrot.slane %v6426, 4
        %v6429 = vshll.u32 %v6348, 16
        %v6431 = vrot.slane %v6429, 5
        %v6432 = vsel %vm6394, %v6427, %v6431
        %v6433 = vshrl.u32 %v6348, 16
        %v6435 = vrot.slane %v6433, 4
        %v6436 = vor.u32 %v6435, %v6431
        %v6437 = vrot.slane %v6436, 4
        %v6439 = vshll.u32 %v6349, 16
        %v6441 = vrot.slane %v6439, 5
        %v6442 = vsel %vm6394, %v6437, %v6441
        %v6444 = vshrl.u32 %v6350, 16
        %v6446 = vrot.slane %v6444, 4
        %v6447 = vshll.u32 %v6350, 16
        %v6449 = vrot.slane %v6447, 5
        %v6450 = vor.u32 %v6446, %v6449
        %v6451 = vrot.slane %v6450, 4
        %v6453 = vshll.u32 %v6351, 16
        %v6455 = vrot.slane %v6453, 5
        %v6456 = vsel %vm6394, %v6451, %v6455
        %v6457 = vshrl.u32 %v6351, 16
        %v6459 = vrot.slane %v6457, 4
        %v6460 = vor.u32 %v6459, %v6455
        %v6461 = vrot.slane %v6460, 4
        %v6463 = vshll.u32 %v6352, 16
        %v6465 = vrot.slane %v6463, 5
        %v6466 = vsel %vm6394, %v6461, %v6465
        %v6468 = vshrl.u32 %v6353, 16
        %v6470 = vrot.slane %v6468, 4
        %v6471 = vshll.u32 %v6353, 16
        %v6473 = vrot.slane %v6471, 5
        %v6474 = vor.u32 %v6470, %v6473
        %v6475 = vrot.slane %v6474, 4
        %v6477 = vshll.u32 %v6354, 16
        %v6479 = vrot.slane %v6477, 5
        %v6480 = vsel %vm6394, %v6475, %v6479
        %v6481 = vshrl.u32 %v6354, 16
        %v6483 = vrot.slane %v6481, 4
        %v6484 = vor.u32 %v6483, %v6479
        %v6485 = vrot.slane %v6484, 4
        %v6487 = vshll.u32 %v6355, 16
        %v6489 = vrot.slane %v6487, 5
        %v6490 = vsel %vm6394, %v6485, %v6489
        %v6492 = vshrl.u32 %v6356, 16
        %v6494 = vrot.slane %v6492, 4
        %v6495 = vshll.u32 %v6356, 16
        %v6497 = vrot.slane %v6495, 5
        %v6498 = vor.u32 %v6494, %v6497
        %v6499 = vrot.slane %v6498, 4
        %v6501 = vshll.u32 %v6357, 16
        %v6503 = vrot.slane %v6501, 5
        %v6504 = vsel %vm6394, %v6499, %v6503
        %v6505 = vshrl.u32 %v6357, 16
        %v6507 = vrot.slane %v6505, 4
        %v6508 = vor.u32 %v6507, %v6503
        %v6509 = vrot.slane %v6508, 4
        %v6511 = vshll.u32 %v6358, 16
        %v6513 = vrot.slane %v6511, 5
        %v6514 = vsel %vm6394, %v6509, %v6513
        %v6516 = vshrl.u32 %v6359, 16
        %v6518 = vrot.slane %v6516, 4
        %v6519 = vshll.u32 %v6359, 16
        %v6521 = vrot.slane %v6519, 5
        %v6522 = vor.u32 %v6518, %v6521
        %v6523 = vrot.slane %v6522, 4
        %v6525 = vshll.u32 %v6360, 16
        %v6527 = vrot.slane %v6525, 5
        %v6528 = vsel %vm6394, %v6523, %v6527
        %v6529 = vshrl.u32 %v6360, 16
        %v6531 = vrot.slane %v6529, 4
        %v6532 = vor.u32 %v6531, %v6527
        %v6533 = vrot.slane %v6532, 4
        %v6535 = vshll.u32 %v6361, 16
        %v6537 = vrot.slane %v6535, 5
        %v6538 = vsel %vm6394, %v6533, %v6537
        %v6540 = vshrl.u32 %v6362, 16
        %v6542 = vrot.slane %v6540, 4
        %v6543 = vshll.u32 %v6362, 16
        %v6545 = vrot.slane %v6543, 5
        %v6546 = vor.u32 %v6542, %v6545
        %v6547 = vrot.slane %v6546, 4
        %v6549 = vshll.u32 %v6363, 16
        %v6551 = vrot.slane %v6549, 5
        %v6552 = vsel %vm6394, %v6547, %v6551
        %v6553 = vshrl.u32 %v6363, 16
        %v6555 = vrot.slane %v6553, 4
        %v6556 = vor.u32 %v6555, %v6551
        %v6557 = vrot.slane %v6556, 4
        %v6559 = vshll.u32 %v6364, 16
        %v6561 = vrot.slane %v6559, 5
        %v6562 = vsel %vm6394, %v6557, %v6561
        %v6564 = vshrl.u32 %v6365, 16
        %v6566 = vrot.slane %v6564, 4
        %v6567 = vshll.u32 %v6365, 16
        %v6569 = vrot.slane %v6567, 5
        %v6570 = vor.u32 %v6566, %v6569
        %v6571 = vrot.slane %v6570, 4
        %v6573 = vshll.u32 %v6366, 16
        %v6575 = vrot.slane %v6573, 5
        %v6576 = vsel %vm6394, %v6571, %v6575
        %v6577 = vshrl.u32 %v6366, 16
        %v6579 = vrot.slane %v6577, 4
        %v6580 = vor.u32 %v6579, %v6575
        %v6581 = vrot.slane %v6580, 4
        %v6583 = vshll.u32 %v6367, 16
        %v6585 = vrot.slane %v6583, 5
        %v6586 = vsel %vm6394, %v6581, %v6585
        %v6588 = vshrl.u32 %v6368, 16
        %v6590 = vrot.slane %v6588, 4
        %v6591 = vshll.u32 %v6368, 16
        %v6593 = vrot.slane %v6591, 5
        %v6594 = vor.u32 %v6590, %v6593
        %v6595 = vrot.slane %v6594, 4
        %v6597 = vshll.u32 %v6369, 16
        %v6599 = vrot.slane %v6597, 5
        %v6600 = vsel %vm6394, %v6595, %v6599
        %v6601 = vshrl.u32 %v6369, 16
        %v6603 = vrot.slane %v6601, 4
        %v6604 = vor.u32 %v6603, %v6599
        %v6605 = vrot.slane %v6604, 4
        %v6607 = vshll.u32 %v6370, 16
        %v6609 = vrot.slane %v6607, 5
        %v6610 = vsel %vm6394, %v6605, %v6609
        %v6612 = vshrl.u32 %v6371, 16
        %v6614 = vrot.slane %v6612, 4
        %v6615 = vshll.u32 %v6371, 16
        %v6617 = vrot.slane %v6615, 5
        %v6618 = vor.u32 %v6614, %v6617
        %v6619 = vrot.slane %v6618, 4
        %v6621 = vshll.u32 %v6372, 16
        %v6623 = vrot.slane %v6621, 5
        %v6624 = vsel %vm6394, %v6619, %v6623
        %v6625 = vshrl.u32 %v6372, 16
        %v6627 = vrot.slane %v6625, 4
        %v6628 = vor.u32 %v6627, %v6623
        %v6629 = vrot.slane %v6628, 4
        %v6631 = vshll.u32 %v6373, 16
        %v6633 = vrot.slane %v6631, 5
        %v6634 = vsel %vm6394, %v6629, %v6633
        %v6636 = vshrl.u32 %v6374, 16
        %v6638 = vrot.slane %v6636, 4
        %v6639 = vshll.u32 %v6374, 16
        %v6641 = vrot.slane %v6639, 5
        %v6642 = vor.u32 %v6638, %v6641
        %v6643 = vrot.slane %v6642, 4
        %v6645 = vshll.u32 %v6375, 16
        %v6647 = vrot.slane %v6645, 5
        %v6648 = vsel %vm6394, %v6643, %v6647
        %v6649 = vshrl.u32 %v6375, 16
        %v6651 = vrot.slane %v6649, 4
        %v6652 = vor.u32 %v6651, %v6647
        %v6653 = vrot.slane %v6652, 4
        %v6655 = vshll.u32 %v6376, 16
        %v6657 = vrot.slane %v6655, 5
        %v6658 = vsel %vm6394, %v6653, %v6657
        %v6660 = vshrl.u32 %v6377, 16
        %v6662 = vrot.slane %v6660, 4
        %v6663 = vshll.u32 %v6377, 16
        %v6665 = vrot.slane %v6663, 5
        %v6666 = vor.u32 %v6662, %v6665
        %v6667 = vrot.slane %v6666, 4
        %v6669 = vshll.u32 %v6378, 16
        %v6671 = vrot.slane %v6669, 5
        %v6672 = vsel %vm6394, %v6667, %v6671
        %v6673 = vshrl.u32 %v6378, 16
        %v6675 = vrot.slane %v6673, 4
        %v6676 = vor.u32 %v6675, %v6671
        %v6677 = vrot.slane %v6676, 4
        %v6679 = vshll.u32 %v6379, 16
        %v6681 = vrot.slane %v6679, 5
        %v6682 = vsel %vm6394, %v6677, %v6681
        %v6684 = vshrl.u32 %v6380, 16
        %v6686 = vrot.slane %v6684, 4
        %v6687 = vshll.u32 %v6380, 16
        %v6689 = vrot.slane %v6687, 5
        %v6690 = vor.u32 %v6686, %v6689
        %v6691 = vrot.slane %v6690, 4
        %v6693 = vshll.u32 %v6381, 16
        %v6695 = vrot.slane %v6693, 5
        %v6696 = vsel %vm6394, %v6691, %v6695
        %v6697 = vshrl.u32 %v6381, 16
        %v6699 = vrot.slane %v6697, 4
        %v6700 = vor.u32 %v6699, %v6695
        %v6701 = vrot.slane %v6700, 4
        %v6703 = vshll.u32 %v6382, 16
        %v6705 = vrot.slane %v6703, 5
        %v6706 = vsel %vm6394, %v6701, %v6705
        %v6708 = vshrl.u32 %v6383, 16
        %v6710 = vrot.slane %v6708, 4
        %v6711 = vshll.u32 %v6383, 16
        %v6713 = vrot.slane %v6711, 5
        %v6714 = vor.u32 %v6710, %v6713
        %v6715 = vrot.slane %v6714, 4
        %v6717 = vshll.u32 %v6384, 16
        %v6719 = vrot.slane %v6717, 5
        %v6720 = vsel %vm6394, %v6715, %v6719
        %v6721 = vshrl.u32 %v6384, 16
        %v6723 = vrot.slane %v6721, 4
        %v6724 = vor.u32 %v6723, %v6719
        %v6725 = vrot.slane %v6724, 4
        %v6727 = vshll.u32 %v6385, 16
        %v6729 = vrot.slane %v6727, 5
        %v6730 = vsel %vm6394, %v6725, %v6729
        %v6732 = vshrl.u32 %v6386, 16
        %v6734 = vrot.slane %v6732, 4
        %v6735 = vshll.u32 %v6386, 16
        %v6737 = vrot.slane %v6735, 5
        %v6738 = vor.u32 %v6734, %v6737
        %v6739 = vrot.slane %v6738, 4
        %v6741 = vshll.u32 %v6387, 16
        %v6743 = vrot.slane %v6741, 5
        %v6744 = vsel %vm6394, %v6739, %v6743
        %v6745 = vshrl.u32 %v6387, 16
        %v6747 = vrot.slane %v6745, 4
        %v6748 = vor.u32 %v6747, %v6743
        %v6749 = vrot.slane %v6748, 4
        %v6751 = vshll.u32 %v6388, 16
        %v6753 = vrot.slane %v6751, 5
        %v6754 = vsel %vm6394, %v6749, %v6753
        %v6756 = vshrl.u32 %v6389, 16
        %v6758 = vrot.slane %v6756, 4
        %v6759 = vshll.u32 %v6389, 16
        %v6761 = vrot.slane %v6759, 5
        %v6762 = vor.u32 %v6758, %v6761
        %v6763 = vrot.slane %v6762, 4
        %v6765 = vshll.u32 %v6390, 16
        %v6767 = vrot.slane %v6765, 5
        %v6768 = vsel %vm6394, %v6763, %v6767
        %v6769 = vshrl.u32 %v6390, 16
        %v6771 = vrot.slane %v6769, 4
        %v6772 = vor.u32 %v6771, %v6767
        %v6773 = vrot.slane %v6772, 4
        %v6775 = vshll.u32 %v6391, 16
        %v6777 = vrot.slane %v6775, 5
        %v6778 = vsel %vm6394, %v6773, %v6777
        %v6811 = vunpack.c.l.bf16 %v6408
        %v6812 = vunpack.c.l.bf16 %v6418
        %v6813 = vunpack.c.l.bf16 %v6432
        %v6814 = vunpack.c.l.bf16 %v6442
        %v6815 = vunpack.c.l.bf16 %v6456
        %v6816 = vunpack.c.l.bf16 %v6466
        %v6817 = vunpack.c.l.bf16 %v6480
        %v6818 = vunpack.c.l.bf16 %v6490
        %v6819 = vunpack.c.l.bf16 %v6504
        %v6820 = vunpack.c.l.bf16 %v6514
        %v6821 = vunpack.c.l.bf16 %v6528
        %v6822 = vunpack.c.l.bf16 %v6538
        %v6823 = vunpack.c.l.bf16 %v6552
        %v6824 = vunpack.c.l.bf16 %v6562
        %v6825 = vunpack.c.l.bf16 %v6576
        %v6826 = vunpack.c.l.bf16 %v6586
        %v6827 = vunpack.c.l.bf16 %v6600
        %v6828 = vunpack.c.l.bf16 %v6610
        %v6829 = vunpack.c.l.bf16 %v6624
        %v6830 = vunpack.c.l.bf16 %v6634
        %v6831 = vunpack.c.l.bf16 %v6648
        %v6832 = vunpack.c.l.bf16 %v6658
        %v6833 = vunpack.c.l.bf16 %v6672
        %v6834 = vunpack.c.l.bf16 %v6682
        %v6835 = vunpack.c.l.bf16 %v6696
        %v6836 = vunpack.c.l.bf16 %v6706
        %v6837 = vunpack.c.l.bf16 %v6720
        %v6838 = vunpack.c.l.bf16 %v6730
        %v6839 = vunpack.c.l.bf16 %v6744
        %v6840 = vunpack.c.l.bf16 %v6754
        %v6841 = vunpack.c.l.bf16 %v6768
        %v6842 = vunpack.c.l.bf16 %v6778
        %v6843 = vadd.f32 %v6312, %v6811
        %v6844 = vadd.f32 %v6313, %v6812
        %v6845 = vadd.f32 %v6314, %v6813
        %v6846 = vadd.f32 %v6315, %v6814
        %v6847 = vadd.f32 %v6316, %v6815
        %v6848 = vadd.f32 %v6317, %v6816
        %v6849 = vadd.f32 %v6318, %v6817
        %v6850 = vadd.f32 %v6319, %v6818
        %v6851 = vadd.f32 %v6320, %v6819
        %v6852 = vadd.f32 %v6321, %v6820
        %v6853 = vadd.f32 %v6322, %v6821
        %v6854 = vadd.f32 %v6323, %v6822
        %v6855 = vadd.f32 %v6324, %v6823
        %v6856 = vadd.f32 %v6325, %v6824
        %v6857 = vadd.f32 %v6326, %v6825
        %v6858 = vadd.f32 %v6327, %v6826
        %v6859 = vadd.f32 %v6328, %v6827
        %v6860 = vadd.f32 %v6329, %v6828
        %v6861 = vadd.f32 %v6330, %v6829
        %v6862 = vadd.f32 %v6331, %v6830
        %v6863 = vadd.f32 %v6332, %v6831
        %v6864 = vadd.f32 %v6333, %v6832
        %v6865 = vadd.f32 %v6334, %v6833
        %v6866 = vadd.f32 %v6335, %v6834
        %v6867 = vadd.f32 %v6336, %v6835
        %v6868 = vadd.f32 %v6337, %v6836
        %v6869 = vadd.f32 %v6338, %v6837
        %v6870 = vadd.f32 %v6339, %v6838
        %v6871 = vadd.f32 %v6340, %v6839
        %v6872 = vadd.f32 %v6341, %v6840
        %v6873 = vadd.f32 %v6342, %v6841
        %v6874 = vadd.f32 %v6343, %v6842
        %v6875 = vmax.f32 %v6843, 0.0
        %v6876 = vmax.f32 %v6844, 0.0
        %v6877 = vmax.f32 %v6845, 0.0
        %v6878 = vmax.f32 %v6846, 0.0
        %v6879 = vmax.f32 %v6847, 0.0
        %v6880 = vmax.f32 %v6848, 0.0
        %v6881 = vmax.f32 %v6849, 0.0
        %v6882 = vmax.f32 %v6850, 0.0
        %v6883 = vmax.f32 %v6851, 0.0
        %v6884 = vmax.f32 %v6852, 0.0
        %v6885 = vmax.f32 %v6853, 0.0
        %v6886 = vmax.f32 %v6854, 0.0
        %v6887 = vmax.f32 %v6855, 0.0
        %v6888 = vmax.f32 %v6856, 0.0
        %v6889 = vmax.f32 %v6857, 0.0
        %v6890 = vmax.f32 %v6858, 0.0
        %v6891 = vmax.f32 %v6859, 0.0
        %v6892 = vmax.f32 %v6860, 0.0
        %v6893 = vmax.f32 %v6861, 0.0
        %v6894 = vmax.f32 %v6862, 0.0
        %v6895 = vmax.f32 %v6863, 0.0
        %v6896 = vmax.f32 %v6864, 0.0
        %v6897 = vmax.f32 %v6865, 0.0
        %v6898 = vmax.f32 %v6866, 0.0
        %v6899 = vmax.f32 %v6867, 0.0
        %v6900 = vmax.f32 %v6868, 0.0
        %v6901 = vmax.f32 %v6869, 0.0
        %v6902 = vmax.f32 %v6870, 0.0
        %v6903 = vmax.f32 %v6871, 0.0
        %v6904 = vmax.f32 %v6872, 0.0
        %v6905 = vmax.f32 %v6873, 0.0
        %v6906 = vmax.f32 %v6874, 0.0
        %v6907 = vpack.c.bf16 %v6875, %v6875
        %v6908 = vpack.c.bf16 %v6876, %v6876
        %v6909 = vpack.c.bf16 %v6877, %v6877
        %v6910 = vpack.c.bf16 %v6878, %v6878
        %v6911 = vpack.c.bf16 %v6879, %v6879
        %v6912 = vpack.c.bf16 %v6880, %v6880
        %v6913 = vpack.c.bf16 %v6881, %v6881
        %v6914 = vpack.c.bf16 %v6882, %v6882
        %v6915 = vpack.c.bf16 %v6883, %v6883
        %v6916 = vpack.c.bf16 %v6884, %v6884
        %v6917 = vpack.c.bf16 %v6885, %v6885
        %v6918 = vpack.c.bf16 %v6886, %v6886
        %v6919 = vpack.c.bf16 %v6887, %v6887
        %v6920 = vpack.c.bf16 %v6888, %v6888
        %v6921 = vpack.c.bf16 %v6889, %v6889
        %v6922 = vpack.c.bf16 %v6890, %v6890
        %v6923 = vpack.c.bf16 %v6891, %v6891
        %v6924 = vpack.c.bf16 %v6892, %v6892
        %v6925 = vpack.c.bf16 %v6893, %v6893
        %v6926 = vpack.c.bf16 %v6894, %v6894
        %v6927 = vpack.c.bf16 %v6895, %v6895
        %v6928 = vpack.c.bf16 %v6896, %v6896
        %v6929 = vpack.c.bf16 %v6897, %v6897
        %v6930 = vpack.c.bf16 %v6898, %v6898
        %v6931 = vpack.c.bf16 %v6899, %v6899
        %v6932 = vpack.c.bf16 %v6900, %v6900
        %v6933 = vpack.c.bf16 %v6901, %v6901
        %v6934 = vpack.c.bf16 %v6902, %v6902
        %v6935 = vpack.c.bf16 %v6903, %v6903
        %v6936 = vpack.c.bf16 %v6904, %v6904
        %v6937 = vpack.c.bf16 %v6905, %v6905
        %v6938 = vpack.c.bf16 %v6906, %v6906
        %6939 = vst.msk [vmem:[%s271] sm:$0xf] %vm282, %v6907
        %6940 = vst.msk [vmem:[%s271 + $0x4] sm:$0xf] %vm282, %v6908
        %6941 = vst.msk [vmem:[%s271 + $0x8] sm:$0xf] %vm282, %v6909
        %6942 = vst.msk [vmem:[%s271 + $0xc] sm:$0xf] %vm282, %v6910
        %6943 = vst.msk [vmem:[%s271 + $0x10] sm:$0xf] %vm282, %v6911
        %6944 = vst.msk [vmem:[%s271 + $0x14] sm:$0xf] %vm282, %v6912
        %6945 = vst.msk [vmem:[%s271 + $0x18] sm:$0xf] %vm282, %v6913
        %6946 = vst.msk [vmem:[%s271 + $0x1c] sm:$0xf] %vm282, %v6914
        %6947 = vst.msk [vmem:[%s271 + $0x20] sm:$0xf] %vm282, %v6915
        %6948 = vst.msk [vmem:[%s271 + $0x24] sm:$0xf] %vm282, %v6916
        %6949 = vst.msk [vmem:[%s271 + $0x28] sm:$0xf] %vm282, %v6917
        %6950 = vst.msk [vmem:[%s271 + $0x2c] sm:$0xf] %vm282, %v6918
        %6951 = vst.msk [vmem:[%s271 + $0x30] sm:$0xf] %vm282, %v6919
        %6952 = vst.msk [vmem:[%s271 + $0x34] sm:$0xf] %vm282, %v6920
        %6953 = vst.msk [vmem:[%s271 + $0x38] sm:$0xf] %vm282, %v6921
        %6954 = vst.msk [vmem:[%s271 + $0x3c] sm:$0xf] %vm282, %v6922
        %6955 = vst.msk [vmem:[%s271 + $0x40] sm:$0xf] %vm282, %v6923
        %6956 = vst.msk [vmem:[%s271 + $0x44] sm:$0xf] %vm282, %v6924
        %6957 = vst.msk [vmem:[%s271 + $0x48] sm:$0xf] %vm282, %v6925
        %6958 = vst.msk [vmem:[%s271 + $0x4c] sm:$0xf] %vm282, %v6926
        %6959 = vst.msk [vmem:[%s271 + $0x50] sm:$0xf] %vm282, %v6927
        %6960 = vst.msk [vmem:[%s271 + $0x54] sm:$0xf] %vm282, %v6928
        %6961 = vst.msk [vmem:[%s271 + $0x58] sm:$0xf] %vm282, %v6929
        %6962 = vst.msk [vmem:[%s271 + $0x5c] sm:$0xf] %vm282, %v6930
        %6963 = vst.msk [vmem:[%s271 + $0x60] sm:$0xf] %vm282, %v6931
        %6964 = vst.msk [vmem:[%s271 + $0x64] sm:$0xf] %vm282, %v6932
        %6965 = vst.msk [vmem:[%s271 + $0x68] sm:$0xf] %vm282, %v6933
        %6966 = vst.msk [vmem:[%s271 + $0x6c] sm:$0xf] %vm282, %v6934
        %6967 = vst.msk [vmem:[%s271 + $0x70] sm:$0xf] %vm282, %v6935
        %6968 = vst.msk [vmem:[%s271 + $0x74] sm:$0xf] %vm282, %v6936
        %6969 = vst.msk [vmem:[%s271 + $0x78] sm:$0xf] %vm282, %v6937
        %6970 = vst.msk [vmem:[%s271 + $0x7c] sm:$0xf] %vm282, %v6938
        %s6971 = sand.u32 %s181, 1
        %s6972 = scalar_lea.sflag [#allocation4], %s6971
        %s6973 = sand.u32 %s181, 1
        %s6974 = smul.addr %s6973, 128
        %s6975 = scalar_lea.vmem [#allocation3], %s6974
        // Predicated region
        $region49: #{tpu_custom_call.1} parent=47 // pred_check
          %p6976 = pneg %p191
        $region50: #{tpu_custom_call.1} parent=47 // pred_check_branch
          %6978 = sbr.rel (%p6976) target = $region52
        $region51: #{tpu_custom_call.1} parent=47 // pred_region
          %6980 = vsyncadd %s6972, 0
          %s6981 = smul.addr %s21, 32
          %s6982 = smul.addr %s6981, 4
          %s6983 = scalar_lea.hbm %s7, %s6982
          %s6984 = sshll.u32 %s6975, 4
          %s6985 = int_to_ptr.vmem [resolvable:$true] %s6984
          %s6986 = sshll.u32 %s6983, 4
          %s6987 = int_to_ptr.hbm [resolvable:$true] %s6986
          %6992 = dma.vmem_to_hbm [thread:$0]  %s6985, 2048, %s6987, %s6972, 64, 64, 4
        $region52: #{tpu_custom_call.1} parent=47 // pred_fallthru
          _
      $region48: #{tpu_custom_call.1} parent=5 // pred_fallthru
        _
      %p6993 = scmp.le.s32.totalorder 2, %s16
      // Predicated region
      $region53: #{tpu_custom_call.1} parent=5 // pred_check
        %p6994 = pneg %p6993
      $region54: #{tpu_custom_call.1} parent=5 // pred_check_branch
        %6996 = sbr.rel (%p6994) target = $region56
      $region55: #{tpu_custom_call.1} parent=5 // pred_region
        %s6997 = ssub.s32 %s16, 2
        // Predicated region
        $region57: #{tpu_custom_call.1} parent=55 // pred_check
          %p6998 = pneg %p197
        $region58: #{tpu_custom_call.1} parent=55 // pred_check_branch
          %7000 = sbr.rel (%p6998) target = $region60
        $region59: #{tpu_custom_call.1} parent=55 // pred_region
          %s7001 = sand.u32 %s182, 1
          %s7002 = scalar_lea.sflag [#allocation4], %s7001
          %s7003 = sand.u32 %s182, 1
          %s7004 = smul.addr %s7003, 128
          %s7005 = scalar_lea.vmem [#allocation3], %s7004
          %7007 = dma.done %s7002, 2048
        $region60: #{tpu_custom_call.1} parent=55 // pred_fallthru
          _
      $region56: #{tpu_custom_call.1} parent=5 // pred_fallthru
        _
    $region6: #{tpu_custom_call.1} parent=1 // loop_footer
      %s20 = sadd.s32 1, %s16
    $region7: #{tpu_custom_call.1} parent=1 // loop_footer_branch
      %15 = sbr.rel target = $region3
    $region8: #{tpu_custom_call.1} parent=1 // loop_exit
      _
    %7008 = vsyncpa [#allocation4], 1
    %s7009 = scalar_lea.sflag [#allocation4], 1
    %7010 = vsyncpa %s7009, 1

</llo_original>
